<compile_context>
chip_gen: v5e
topology: v5e:2x2
jax: 0.10.0
libtpu: 0.0.40
codegen_flags: <defaults>
</compile_context>

<pallas_src>
import functools

import jax
import jax.numpy as jnp
from jax.experimental import pallas as pl
from jax.experimental.pallas import tpu as pltpu


# ----------------------------- tiling helpers --------------------------------


def _round_up(a, b):
    return (a + b - 1) // b * b


def _device_kind():
    try:
        return jax.devices()[0].device_kind or ""
    except Exception:  # pragma: no cover - defensive
        return ""


def select_d_tile(expert_dim, device_kind=None):
    """Expert-intermediate tile: 256 on v7x (64 MiB VMEM), 512 on v5e/v6e."""
    kind = (_device_kind() if device_kind is None else device_kind).lower()
    cap = 256 if "v7" in kind else 512
    if expert_dim <= cap:
        return expert_dim
    if expert_dim % 128 != 0:
        return expert_dim  # TODO(synk): pad expert_dim to a multiple of 128
    best = 128
    cand = 256
    while cand <= cap:
        if expert_dim % cand == 0:
            best = cand
        cand += 128
    return best


def select_t_tile(n_tokens, device_kind=None):
    """Token tile: bigger tiles amortize weight streaming (traffic ~ T/t_tile)."""
    del device_kind
    return min(256, _round_up(n_tokens, 8))


def _vmem_limit_bytes(t_tile, d_tile, hidden, io_itemsize):
    # double-buffered bf16 weight tiles (fused gate_up + down) + io + f32 acc.
    weights = 2 * (hidden * 2 * d_tile + d_tile * hidden) * 2
    io = 2 * 2 * t_tile * hidden * io_itemsize
    acc = t_tile * hidden * 4
    scores = 2 * t_tile * 128 * 4
    need = weights + io + acc + scores + (4 << 20)
    return int(min(max(need, 32 << 20), 96 << 20))


# ------------------------------ Pallas kernel ---------------------------------


def moe_kernel(
    cnt_ref,    # SMEM (nT, S) int32  tokens per (tile, slot); 0 => skip compute
    aid_ref,    # SMEM (nT, S) int32  expert id per slot (used in index maps)
    x_ref,      # VMEM (Tt, H)        input tokens of this tile
    ss_ref,     # VMEM (1, 1, Tt, 1)  f32 router score of this slot's expert
    gu_w_ref,   # VMEM (1, H, 2*dt)   bf16 fused [gate_d | up_d] weight tile
    dn_w_ref,   # VMEM (1, dt, H)     bf16 down-proj weight tile
    out_ref,    # VMEM (Tt, H)        output tokens
    acc_ref,    # VMEM (Tt, H) f32    resident accumulator (across d, slot)
):
    t = pl.program_id(0)
    d = pl.program_id(1)
    s = pl.program_id(2)

    @pl.when((d == 0) & (s == 0))
    def _():
        acc_ref[...] = jnp.zeros_like(acc_ref)

    # Skipped for padding slots; weight DMAs of padding slots are elided because
    # their block index (aid, d) repeats the previous slot's.
    @pl.when(cnt_ref[t, s] > 0)
    def _():
        score = ss_ref[0, 0]                                            # (Tt, 1) f32
        x_in = (x_ref[...].astype(jnp.float32) * score).astype(jnp.bfloat16)
        gu = jnp.dot(x_in, gu_w_ref[0], preferred_element_type=jnp.float32)  # (Tt, 2dt)
        dt_ = dn_w_ref.shape[1]
        gate = gu[:, :dt_]
        up = gu[:, dt_:]
        act = (up * (gate * jax.nn.sigmoid(gate))).astype(jnp.bfloat16)      # up * silu(gate)
        acc_ref[...] += jnp.dot(act, dn_w_ref[0], preferred_element_type=jnp.float32)

    @pl.when((d == pl.num_programs(1) - 1) & (s == pl.num_programs(2) - 1))
    def _():
        out_ref[...] = acc_ref[...].astype(out_ref.dtype)


# -------------------------------- wrappers ------------------------------------


def run_moe(x_p, cnt, aid, slot_scores, gate_up_w, down_w, *, d_tile, t_tile,
            vmem_limit_bytes=None):
    """Fused (shared + routed) MoE over padded tokens.

    x_p        : (Tp, H)                 padded tokens
    cnt        : (nT, S) int32           tokens per (tile, slot)
    aid        : (nT, S) int32           expert id per slot (shared expert = E)
    slot_scores: (nT, S, t_tile, 1) f32  router score per (tile, slot, token)
    gate_up_w  : (E+1, H, 2D) bf16       per-d-tile packed [gate_d | up_d]
    down_w     : (E+1, D, H)  bf16
    """
    Tp, H = x_p.shape
    D = gate_up_w.shape[2] // 2
    assert Tp % t_tile == 0 and D % d_tile == 0
    nT, nD, S = Tp // t_tile, D // d_tile, cnt.shape[1]

    if vmem_limit_bytes is None:
        vmem_limit_bytes = _vmem_limit_bytes(t_tile, d_tile, H, x_p.dtype.itemsize)

    return pl.pallas_call(
        moe_kernel,
        out_shape=jax.ShapeDtypeStruct((Tp, H), x_p.dtype),
        grid_spec=pltpu.PrefetchScalarGridSpec(
            num_scalar_prefetch=2,
            grid=(nT, nD, S),
            in_specs=[
                pl.BlockSpec((t_tile, H), lambda t, d, s, cnt, aid: (t, 0)),
                pl.BlockSpec((1, 1, t_tile, 1), lambda t, d, s, cnt, aid: (t, s, 0, 0)),
                pl.BlockSpec((1, H, 2 * d_tile),
                             lambda t, d, s, cnt, aid: (aid[t, s], 0, d)),
                pl.BlockSpec((1, d_tile, H),
                             lambda t, d, s, cnt, aid: (aid[t, s], d, 0)),
            ],
            out_specs=pl.BlockSpec((t_tile, H), lambda t, d, s, cnt, aid: (t, 0)),
            scratch_shapes=[pltpu.VMEM((t_tile, H), jnp.float32)],
        ),
        compiler_params=pltpu.CompilerParams(
            dimension_semantics=("parallel", "arbitrary", "arbitrary"),
            vmem_limit_bytes=vmem_limit_bytes,
        ),
    )(cnt, aid, x_p, slot_scores, gate_up_w, down_w)


def build_routing(x, router_w_t, top_k, t_tile, n_experts):
    """Router + per-token-tile expert compaction (XLA glue).

    Returns (cnt, aid, slot_scores, Tp):
      cnt[t, s]  tokens of tile t routed to slot s (0 for padding slots)
      aid[t, s]  expert id of slot s (slot 0 is always the shared expert id E;
                 padding slots repeat the last active id so DMAs are elided)
      slot_scores[t, s, i, 0]  router score for token i of tile t at slot s.
    """
    T, _ = x.shape
    E = n_experts

    logits = jnp.dot(x, router_w_t)                                   # (T, E)
    top_vals, top_idx = jax.lax.top_k(logits, top_k)
    masked = jnp.full_like(logits, -jnp.inf)
    masked = masked.at[jnp.arange(T)[:, None], top_idx].set(top_vals)
    scores = jax.nn.sigmoid(masked.astype(jnp.float32))               # 0 for non-selected

    Tp = _round_up(T, t_tile)
    nT = Tp // t_tile
    pad = Tp - T
    scores_p = jnp.pad(scores, ((0, pad), (0, 0)))
    counts_tok = jax.nn.one_hot(top_idx, E, dtype=jnp.int32).sum(axis=1)   # (T, E)
    counts_p = jnp.pad(counts_tok, ((0, pad), (0, 0)))
    counts_tiles = counts_p.reshape(nT, t_tile, E).sum(axis=1)             # (nT, E)

    # Compact: active experts first (ascending id), then zero-count experts.
    s_routed = int(min(E, t_tile * top_k, T * top_k))
    active = counts_tiles > 0
    key = jnp.where(active, jnp.arange(E, dtype=jnp.int32)[None, :], E)
    order = jnp.argsort(key, axis=-1).astype(jnp.int32)                     # (nT, E)
    cnt_sorted = jnp.take_along_axis(counts_tiles, order, axis=-1)
    routed_aid = order[:, :s_routed]
    routed_cnt = cnt_sorted[:, :s_routed]

    # Pre-gather the per-slot scores (avoids a huge resident (E, Tt, lanes) block).
    scores_tiles = scores_p.reshape(nT, t_tile, E)
    gathered = jnp.take_along_axis(
        scores_tiles,
        jnp.broadcast_to(routed_aid[:, None, :], (nT, t_tile, s_routed)),
        axis=2)
    routed_scores = jnp.transpose(gathered, (0, 2, 1))                       # (nT, S_r, Tt)

    # Slot 0 = shared expert (id E), score 1.0 for every token, always active.
    shared_aid = jnp.full((nT, 1), E, jnp.int32)
    shared_cnt = jnp.full((nT, 1), t_tile, jnp.int32)
    shared_scores = jnp.ones((nT, 1, t_tile), jnp.float32)
    aid = jnp.concatenate([shared_aid, routed_aid], axis=1)
    cnt = jnp.concatenate([shared_cnt, routed_cnt], axis=1)
    slot_scores = jnp.concatenate([shared_scores, routed_scores], axis=1)

    # Padding slots repeat the LAST ACTIVE slot's expert id -> weight block index
    # unchanged between consecutive slots -> HBM DMA elided; compute skipped via cnt==0.
    n_act = jnp.sum(cnt > 0, axis=1)
    last_aid = jnp.take_along_axis(aid, (n_act - 1)[:, None], axis=1)
    aid = jnp.where(cnt > 0, aid, last_aid).astype(jnp.int32)

    return cnt.astype(jnp.int32), aid, slot_scores[..., None], Tp


def prepare_params(raw, d_tile=None, weight_dtype=jnp.bfloat16, device_kind=None):
    """One-time weight prep (load time, NOT per call): bf16 cast, per-d-tile
    [gate | up] packing, shared expert folded in as expert id E."""
    gu = raw["expert_gate_up"].astype(weight_dtype)        # (E, H, 2D)  gate | up
    E, H, two_d = gu.shape
    D = two_d // 2
    sgu = raw["shared_gate_up_w"].astype(weight_dtype)     # (2I, H)     gate ; up
    inter = sgu.shape[0] // 2
    # TODO(synk): if shared intermediate != expert_dim, run the shared expert as a
    #             separate d-tiled pallas_call instead of folding it as expert E.
    assert inter == D, "shared intermediate must equal expert_dim to fold the shared expert"

    if d_tile is None:
        d_tile = select_d_tile(D, device_kind)
    assert D % d_tile == 0 and (d_tile % 128 == 0 or d_tile == D)

    gate = jnp.concatenate([gu[..., :D], sgu[:inter].T[None]], axis=0)   # (E+1, H, D)
    up = jnp.concatenate([gu[..., D:], sgu[inter:].T[None]], axis=0)     # (E+1, H, D)
    nd = D // d_tile
    gate_up_w = jnp.concatenate(
        [gate.reshape(E + 1, H, nd, d_tile), up.reshape(E + 1, H, nd, d_tile)],
        axis=-1).reshape(E + 1, H, 2 * D)                                # per-tile [gate_d|up_d]
    down_w = jnp.concatenate(
        [raw["expert_down"].astype(weight_dtype),
         raw["shared_down_w"].T.astype(weight_dtype)[None]], axis=0)     # (E+1, D, H)

    params = {
        "router_w_t": raw["router_w"].T,   # (H, E)
        "gate_up_w": gate_up_w,
        "down_w": down_w,
    }
    return params, d_tile


def llama4_text_moe(x, params, *, top_k, d_tile, t_tile=None):
    """Matches Llama4TextMoe.forward(hidden_states) for process_group size == 1."""
    T, _ = x.shape
    E = params["router_w_t"].shape[1]
    if t_tile is None:
        t_tile = select_t_tile(T)
    assert t_tile % 8 == 0

    cnt, aid, slot_scores, Tp = build_routing(x, params["router_w_t"], top_k, t_tile, E)
    x_p = jnp.pad(x, ((0, Tp - T), (0, 0)))
    out_p = run_moe(x_p, cnt, aid, slot_scores, params["gate_up_w"], params["down_w"],
                    d_tile=d_tile, t_tile=t_tile)
    return out_p[:T]


# -------------------------------- reference -----------------------------------


def reference(x, raw, top_k):
    """Pure-JAX reference mirroring the module (bf16 weights, f32 accumulation)."""
    T, _ = x.shape
    logits = x @ raw["router_w"].T
    vals, idx = jax.lax.top_k(logits, top_k)
    masked = jnp.full_like(logits, -jnp.inf).at[jnp.arange(T)[:, None], idx].set(vals)
    scores = jax.nn.sigmoid(masked.astype(jnp.float32))                     # (T, E)

    gu_w = raw["expert_gate_up"].astype(jnp.bfloat16)                       # (E, H, 2D)
    dn_w = raw["expert_down"].astype(jnp.bfloat16)                          # (E, D, H)
    D = gu_w.shape[-1] // 2
    x_e = (x[None].astype(jnp.float32) * scores.T[:, :, None]).astype(jnp.bfloat16)
    gu = jnp.einsum("eth,ehd->etd", x_e, gu_w, preferred_element_type=jnp.float32)
    gate, up = gu[..., :D], gu[..., D:]
    routed = jnp.einsum("etd,edh->eth",
                        (up * jax.nn.silu(gate)).astype(jnp.bfloat16),
                        dn_w, preferred_element_type=jnp.float32)

    wgu_s = raw["shared_gate_up_w"].astype(jnp.bfloat16)                    # (2I, H)
    wdn_s = raw["shared_down_w"].astype(jnp.bfloat16)                       # (H, I)
    inter = wgu_s.shape[0] // 2
    gus = jnp.dot(x.astype(jnp.bfloat16), wgu_s.T, preferred_element_type=jnp.float32)
    shared = jnp.dot((jax.nn.silu(gus[:, :inter]) * gus[:, inter:]).astype(jnp.bfloat16),
                     wdn_s.T, preferred_element_type=jnp.float32)
    return (shared + routed.sum(axis=0)).astype(x.dtype)


# ----------------------------------- main --------------------------------------


if __name__ == "__main__":
    # small config (process_group size == 1); shared intermediate == expert_dim as in Llama4
    T = 12       # tokens (not a multiple of the token tile -> exercises padding)
    H = 128      # hidden_size
    E = 8        # num_local_experts
    D = 256      # expert intermediate_size (expert_dim)
    I = 256      # shared-expert intermediate_size (== D in Llama4)
    TOP_K = 1    # num_experts_per_tok

    key = jax.random.PRNGKey(0)
    ks = jax.random.split(key, 6)
    scale = 0.05
    raw = {
        "router_w": jax.random.normal(ks[0], (E, H), jnp.float32) * scale,
        "expert_gate_up": jax.random.normal(ks[1], (E, H, 2 * D), jnp.float32) * scale,
        "expert_down": jax.random.normal(ks[2], (E, D, H), jnp.float32) * scale,
        "shared_gate_up_w": jax.random.normal(ks[3], (2 * I, H), jnp.float32) * scale,
        "shared_down_w": jax.random.normal(ks[4], (H, I), jnp.float32) * scale,
    }
    x = jax.random.normal(ks[5], (T, H), jnp.float32)

    # Demo overrides: d_tile=128 exercises the D-tiled accumulation, t_tile=8
    # exercises multiple token tiles + ragged padding.  Production omits these
    # and gets per-generation defaults (d_tile 256 on v7x / 512 on v5e,v6e;
    # t_tile up to 256).
    params, d_tile = prepare_params(raw, d_tile=128)

    fwd = jax.jit(functools.partial(llama4_text_moe, top_k=TOP_K, d_tile=d_tile, t_tile=8))
    out = jax.block_until_ready(fwd(x, params))
    ref = reference(x, raw, TOP_K)

    assert out.shape == (T, H)
    err = float(jnp.max(jnp.abs(out.astype(jnp.float32) - ref.astype(jnp.float32))))
    assert err < 1e-2, err
    print("KERNEL_OK")
</pallas_src>

<mosaic_0001>
module attributes {stable_mosaic.version = 11 : i64} {
  func.func @moe_kernel(%arg0: i32, %arg1: i32, %arg2: i32, %arg3: memref<2x9xi32, #tpu.memory_space<smem>>, %arg4: memref<2x9xi32, #tpu.memory_space<smem>>, %arg5: memref<8x128xf32, #tpu.memory_space<vmem>>, %arg6: memref<1x1x8x1xf32, #tpu.memory_space<vmem>>, %arg7: memref<1x128x256xbf16, #tpu.memory_space<vmem>>, %arg8: memref<1x128x128xbf16, #tpu.memory_space<vmem>>, %arg9: memref<8x128xf32, #tpu.memory_space<vmem>>, %arg10: memref<8x128xf32, #tpu.memory_space<vmem>>) attributes {dimension_semantics = [#tpu.dimension_semantics<parallel>, #tpu.dimension_semantics<arbitrary>, #tpu.dimension_semantics<arbitrary>], iteration_bounds = array<i64: 2, 2, 9>, scalar_prefetch = 2 : i64, scratch_operands = 1 : i64, tpu.core_type = #tpu.core_type<tc>, window_params = [{transform_indices = @transform_0, window_bounds = array<i64: 8, 128>}, {transform_indices = @transform_1, window_bounds = array<i64: 1, 1, 8, 1>}, {transform_indices = @transform_2, window_bounds = array<i64: 1, 128, 256>}, {transform_indices = @transform_3, window_bounds = array<i64: 1, 128, 128>}, {transform_indices = @transform_4, window_bounds = array<i64: 8, 128>}]} {
    %c0_i32 = arith.constant 0 : i32
    %0 = arith.cmpi eq, %arg1, %c0_i32 : i32
    %c0_i32_0 = arith.constant 0 : i32
    %1 = arith.cmpi eq, %arg2, %c0_i32_0 : i32
    %2 = arith.andi %0, %1 : i1
    %3 = arith.extui %2 : i1 to i32
    %c0_i32_1 = arith.constant 0 : i32
    %4 = arith.cmpi ne, %3, %c0_i32_1 : i32
    scf.if %4 {
      %cst = arith.constant 0.000000e+00 : f32
      %16 = vector.broadcast %cst : f32 to vector<8x128xf32>
      %c0 = arith.constant 0 : index
      %c0_5 = arith.constant 0 : index
      %17 = vector.load %arg10[%c0, %c0_5] : memref<8x128xf32, #tpu.memory_space<vmem>>, vector<8x128xf32>
      tpu.vector_store %arg10[%c0, %c0_5], %16 {strides = array<i32>} : memref<8x128xf32, #tpu.memory_space<vmem>>, vector<8x128xf32>,
    } else {
    }
    %5 = arith.index_cast %arg0 : i32 to index
    %6 = arith.index_cast %arg2 : i32 to index
    %7 = memref.load %arg3[%5, %6] : memref<2x9xi32, #tpu.memory_space<smem>>
    %c0_i32_2 = arith.constant 0 : i32
    %8 = arith.cmpi sgt, %7, %c0_i32_2 : i32
    %9 = arith.extui %8 : i1 to i32
    %c0_i32_3 = arith.constant 0 : i32
    %10 = arith.cmpi ne, %9, %c0_i32_3 : i32
    scf.if %10 {
      %c0 = arith.constant 0 : index
      %c0_5 = arith.constant 0 : index
      %c0_6 = arith.constant 0 : index
      %c0_7 = arith.constant 0 : index
      %16 = vector.load %arg6[%c0, %c0_5, %c0_6, %c0_7] : memref<1x1x8x1xf32, #tpu.memory_space<vmem>>, vector<1x1x8x1xf32>
      %17 = vector.shape_cast %16 : vector<1x1x8x1xf32> to vector<8x1xf32>
      %c0_8 = arith.constant 0 : index
      %c0_9 = arith.constant 0 : index
      %18 = vector.load %arg5[%c0_8, %c0_9] : memref<8x128xf32, #tpu.memory_space<vmem>>, vector<8x128xf32>
      %19 = vector.broadcast %17 : vector<8x1xf32> to vector<8x128xf32>
      %20 = arith.mulf %18, %19 : vector<8x128xf32>
      %21 = arith.truncf %20 : vector<8x128xf32> to vector<8x128xbf16>
      %c0_10 = arith.constant 0 : index
      %c0_11 = arith.constant 0 : index
      %c0_12 = arith.constant 0 : index
      %22 = vector.load %arg7[%c0_10, %c0_11, %c0_12] : memref<1x128x256xbf16, #tpu.memory_space<vmem>>, vector<1x128x256xbf16>
      %23 = vector.shape_cast %22 : vector<1x128x256xbf16> to vector<128x256xbf16>
      %cst = arith.constant dense<0.000000e+00> : vector<8x256xf32>
      %24 = tpu.matmul %21, %23, %cst {dimension_numbers = #tpu.dot_dimension_numbers<[1], [0], [0], [1], [0, 0, 1, 1], [], []>} : vector<8x128xbf16>, vector<128x256xbf16>, vector<8x256xf32> -> vector<8x256xf32>
      %25 = vector.extract_strided_slice %24 {offsets = [0, 0], sizes = [8, 128], strides = [1, 1]} : vector<8x256xf32> to vector<8x128xf32>
      %26 = vector.extract_strided_slice %24 {offsets = [0, 128], sizes = [8, 128], strides = [1, 1]} : vector<8x256xf32> to vector<8x128xf32>
      %27 = arith.negf %25 : vector<8x128xf32>
      %28 = math.exp %27 : vector<8x128xf32>
      %cst_13 = arith.constant 1.000000e+00 : f32
      %29 = vector.broadcast %cst_13 : f32 to vector<8x128xf32>
      %30 = arith.addf %29, %28 : vector<8x128xf32>
      %31 = arith.divf %29, %30 : vector<8x128xf32>
      %32 = arith.mulf %25, %31 : vector<8x128xf32>
      %33 = arith.mulf %26, %32 : vector<8x128xf32>
      %34 = arith.truncf %33 : vector<8x128xf32> to vector<8x128xbf16>
      %c0_14 = arith.constant 0 : index
      %c0_15 = arith.constant 0 : index
      %35 = vector.load %arg10[%c0_14, %c0_15] : memref<8x128xf32, #tpu.memory_space<vmem>>, vector<8x128xf32>
      %c0_16 = arith.constant 0 : index
      %c0_17 = arith.constant 0 : index
      %c0_18 = arith.constant 0 : index
      %36 = vector.load %arg8[%c0_16, %c0_17, %c0_18] : memref<1x128x128xbf16, #tpu.memory_space<vmem>>, vector<1x128x128xbf16>
      %37 = vector.shape_cast %36 : vector<1x128x128xbf16> to vector<128x128xbf16>
      %cst_19 = arith.constant dense<0.000000e+00> : vector<8x128xf32>
      %38 = tpu.matmul %34, %37, %cst_19 {dimension_numbers = #tpu.dot_dimension_numbers<[1], [0], [0], [1], [0, 0, 1, 1], [], []>} : vector<8x128xbf16>, vector<128x128xbf16>, vector<8x128xf32> -> vector<8x128xf32>
      %39 = arith.addf %35, %38 : vector<8x128xf32>
      %c0_20 = arith.constant 0 : index
      %c0_21 = arith.constant 0 : index
      %40 = vector.load %arg10[%c0_20, %c0_21] : memref<8x128xf32, #tpu.memory_space<vmem>>, vector<8x128xf32>
      tpu.vector_store %arg10[%c0_20, %c0_21], %39 {strides = array<i32>} : memref<8x128xf32, #tpu.memory_space<vmem>>, vector<8x128xf32>,
    } else {
    }
    %c1_i32 = arith.constant 1 : i32
    %11 = arith.cmpi eq, %arg1, %c1_i32 : i32
    %c8_i32 = arith.constant 8 : i32
    %12 = arith.cmpi eq, %arg2, %c8_i32 : i32
    %13 = arith.andi %11, %12 : i1
    %14 = arith.extui %13 : i1 to i32
    %c0_i32_4 = arith.constant 0 : i32
    %15 = arith.cmpi ne, %14, %c0_i32_4 : i32
    scf.if %15 {
      %c0 = arith.constant 0 : index
      %c0_5 = arith.constant 0 : index
      %16 = vector.load %arg10[%c0, %c0_5] : memref<8x128xf32, #tpu.memory_space<vmem>>, vector<8x128xf32>
      %c0_6 = arith.constant 0 : index
      %c0_7 = arith.constant 0 : index
      %17 = vector.load %arg9[%c0_6, %c0_7] : memref<8x128xf32, #tpu.memory_space<vmem>>, vector<8x128xf32>
      tpu.vector_store %arg9[%c0_6, %c0_7], %16 {strides = array<i32>} : memref<8x128xf32, #tpu.memory_space<vmem>>, vector<8x128xf32>,
    } else {
    }
    return
  }
  func.func @transform_0(%arg0: i32, %arg1: i32, %arg2: i32, %arg3: memref<2x9xi32, #tpu.memory_space<smem>>, %arg4: memref<2x9xi32, #tpu.memory_space<smem>>) -> (i32, i32) {
    %c0_i32 = arith.constant 0 : i32
    %c0_i32_0 = arith.constant 0 : i32
    return %arg0, %c0_i32 : i32, i32
  }
  func.func @transform_1(%arg0: i32, %arg1: i32, %arg2: i32, %arg3: memref<2x9xi32, #tpu.memory_space<smem>>, %arg4: memref<2x9xi32, #tpu.memory_space<smem>>) -> (i32, i32, i32, i32) {
    %c0_i32 = arith.constant 0 : i32
    %c0_i32_0 = arith.constant 0 : i32
    %c0_i32_1 = arith.constant 0 : i32
    return %arg0, %arg2, %c0_i32, %c0_i32_0 : i32, i32, i32, i32
  }
  func.func @transform_2(%arg0: i32, %arg1: i32, %arg2: i32, %arg3: memref<2x9xi32, #tpu.memory_space<smem>>, %arg4: memref<2x9xi32, #tpu.memory_space<smem>>) -> (i32, i32, i32) {
    %0 = arith.index_cast %arg0 : i32 to index
    %1 = arith.index_cast %arg2 : i32 to index
    %2 = memref.load %arg4[%0, %1] : memref<2x9xi32, #tpu.memory_space<smem>>
    %c0_i32 = arith.constant 0 : i32
    %c0_i32_0 = arith.constant 0 : i32
    return %2, %c0_i32, %arg1 : i32, i32, i32
  }
  func.func @transform_3(%arg0: i32, %arg1: i32, %arg2: i32, %arg3: memref<2x9xi32, #tpu.memory_space<smem>>, %arg4: memref<2x9xi32, #tpu.memory_space<smem>>) -> (i32, i32, i32) {
    %0 = arith.index_cast %arg0 : i32 to index
    %1 = arith.index_cast %arg2 : i32 to index
    %2 = memref.load %arg4[%0, %1] : memref<2x9xi32, #tpu.memory_space<smem>>
    %c0_i32 = arith.constant 0 : i32
    %c0_i32_0 = arith.constant 0 : i32
    return %2, %arg1, %c0_i32 : i32, i32, i32
  }
  func.func @transform_4(%arg0: i32, %arg1: i32, %arg2: i32, %arg3: memref<2x9xi32, #tpu.memory_space<smem>>, %arg4: memref<2x9xi32, #tpu.memory_space<smem>>) -> (i32, i32) {
    %c0_i32 = arith.constant 0 : i32
    %c0_i32_0 = arith.constant 0 : i32
    return %arg0, %c0_i32 : i32, i32
  }
}

</mosaic_0001>

<llo_original>
// kernel: custom-call
$region0: #{custom-call}
  #allocation0 [shape = 'u32[8,128]{1,0}', space=vmem, size = 0x1000, scoped, tag = 'scratch']
  #allocation1 [shape = 'u32[8,128]{1,0}', space=vmem, size = 0x1000, scoped, tag = 'scratch']
  #allocation2 [shape = 'u32[8,128]{1,0}', space=vmem, size = 0x1000, scoped, tag = 'scratch']
  #allocation3 [shape = 'u32[8,128]{1,0}', space=vmem, size = 0x1000, scoped, tag = 'scratch']
  #allocation4 [shape = 'u32[8,128]{1,0}', space=vmem, size = 0x1000, scoped, tag = 'scratch']
  #allocation5 [shape = 'u32[8,128]{1,0}', space=vmem, size = 0x1000, scoped, tag = 'scratch']
  #allocation6 [shape = 'u32[8,128]{1,0}', space=vmem, size = 0x1000, scoped, tag = 'scratch']
  %s0 = inlined_call_operand.vmem [shape: f32[12,8], index: 0, kind: input, shape index: {}]
  %s1 = inlined_call_operand.vmem [shape: f32[12,1], index: 1, kind: output, shape index: {0}]
  %s2 = inlined_call_operand.vmem [shape: s32[12,1], index: 2, kind: output, shape index: {1}]
  %3 = xla_tuple %s1, %s2
  %4 = xla_tuple 2147483648, 2147483647
  $region1: #{custom-call} parent=0
    #allocation7 [shape = 'u8[4096]{0}', space=vmem, size = 0x1000, scoped, tag = 'operand span for operand 1']
    #allocation8 [shape = 'u8[512]{0}', space=vmem, size = 0x400, scoped, tag = 'packed  for operand 1']
    #allocation9 [shape = 'u8[4096]{0}', space=vmem, size = 0x1000, scoped, tag = 'operand span for operand 2']
    #allocation10 [shape = 'u8[512]{0}', space=vmem, size = 0x400, scoped, tag = 'packed  for operand 2']
    #allocation11 [shape = 'f32[1,128]{1,0:T(8,128)}', space=vmem, size = 0x1000, scoped, tag = 'scoped memory for custom-call']
    #allocation12 [shape = 'f32[1,128]{1,0:T(8,128)}', space=vmem, size = 0x1000, scoped, tag = 'scoped memory for custom-call']
    #allocation13 [shape = 's32[1,128]{1,0:T(8,128)}', space=vmem, size = 0x1000, scoped, tag = 'scoped memory for custom-call']
    #allocation14 [shape = 's32[1,128]{1,0:T(8,128)}', space=vmem, size = 0x1000, scoped, tag = 'scoped memory for custom-call']
    %5 = xla_tuple [#allocation7], [#allocation9]
    %6 = vst [vmem:[#allocation11] sm:$0xff] 2147483648
    %7 = vst [vmem:[#allocation13] sm:$0xff] 2147483647
    %8 = xla_tuple [#allocation11], [#allocation13]
    %9 = xla_tuple [#allocation12], [#allocation14]
    $region2: #{custom-call} parent=1
      #allocation15 [shape = 'u8[4096]{0}', space=vmem, size = 0x1000, scoped, tag = 'operand span for operand 0']
      #allocation16 [shape = 's32[1024]{0}', space=vmem, size = 0x1000, scoped, tag = 'scoped memory for custom-call']
      // Predicated region
      $region3: #{custom-call} parent=2 // pred_check
        _
      $region4: #{custom-call} parent=2 // pred_check_branch
        %11 = sbr.rel (0) target = $region6
      $region5: #{custom-call} parent=2 // pred_region
        // Predicated region
        $region7: #{custom-call} parent=5 // pred_check
          _
        $region8: #{custom-call} parent=5 // pred_check_branch
          %13 = sbr.rel (0) target = $region10
        $region9: #{custom-call} parent=5 // pred_region
          // Predicated region
          $region11: #{custom-call} parent=9 // pred_check
            _
          $region12: #{custom-call} parent=9 // pred_check_branch
            %15 = sbr.rel (0) target = $region14
          $region13: #{custom-call} parent=9 // pred_region
            // Predicated region
            $region26: #{custom-call} parent=13 // pred_check
              _
            $region27: #{custom-call} parent=13 // pred_check_branch
              %31 = sbr.rel (0) target = $region29
            $region28: #{custom-call} parent=13 // pred_region
              loop: start=0, step=1, limit=1
              $region30: #{custom-call} parent=28 // loop_pre_header
                _
              $region31: #{custom-call} parent=28 // loop_header
                %s33 = sphi 0, %s37
                %p34 = scmp.ge.s32.totalorder %s33, 1
                %s38 = sphi %s0, %s0
                %s39 = sphi [#allocation15], [#allocation15]
              $region32: #{custom-call} parent=28 // loop_header_branch
                %36 = sbr.rel (%p34) target = $region36
              $region33: #{custom-call} parent=28 // loop_body
                %v40 = vld [vmem:[%s38] sm:$0xff]
                %41 = vst [vmem:[%s39] sm:$0xff] %v40
              $region34: #{custom-call} parent=28 // loop_footer
                %s37 = sadd.s32 1, %s33
              $region35: #{custom-call} parent=28 // loop_footer_branch
                %32 = sbr.rel target = $region31
              $region36: #{custom-call} parent=28 // loop_exit
                _
            $region29: #{custom-call} parent=13 // pred_fallthru
              _
            // Predicated region
            $region37: #{custom-call} parent=13 // pred_check
              _
            $region38: #{custom-call} parent=13 // pred_check_branch
              %43 = sbr.rel target = $region40
            $region39: #{custom-call} parent=13 // pred_region
              _
            $region40: #{custom-call} parent=13 // pred_fallthru
              _
          $region14: #{custom-call} parent=9 // pred_fallthru
            _
          // Predicated region
          $region15: #{custom-call} parent=9 // pred_check
            _
          $region16: #{custom-call} parent=9 // pred_check_branch
            %17 = sbr.rel target = $region18
          $region17: #{custom-call} parent=9 // pred_region
            %s19 = ssub.s32 256, 1
            loop: start=0, step=1, limit=1
            $region19: #{custom-call} parent=17 // loop_pre_header
              _
            $region20: #{custom-call} parent=17 // loop_header
              %s21 = sphi 0, %s25
              %p22 = scmp.ge.s32.totalorder %s21, 1
              %s26 = sphi %s0, %s0
              %s27 = sphi [#allocation15], [#allocation15]
            $region21: #{custom-call} parent=17 // loop_header_branch
              %24 = sbr.rel (%p22) target = $region25
            $region22: #{custom-call} parent=17 // loop_body
              %v28 = vld [vmem:[%s26] sm:%s19]
              %29 = vst [vmem:[%s27] sm:%s19] %v28
            $region23: #{custom-call} parent=17 // loop_footer
              %s25 = sadd.s32 1, %s21
            $region24: #{custom-call} parent=17 // loop_footer_branch
              %20 = sbr.rel target = $region20
            $region25: #{custom-call} parent=17 // loop_exit
              _
          $region18: #{custom-call} parent=9 // pred_fallthru
            _
        $region10: #{custom-call} parent=5 // pred_fallthru
          _
        %44 = vnop
      $region6: #{custom-call} parent=2 // pred_fallthru
        _
      // Predicated region
      $region41: #{custom-call} parent=2 // pred_check
        _
      $region42: #{custom-call} parent=2 // pred_check_branch
        %46 = sbr.rel (0) target = $region44
      $region43: #{custom-call} parent=2 // pred_region
        _
      $region44: #{custom-call} parent=2 // pred_fallthru
        _
      %v47 = vlaneseq
      %v48 = vshrl.u32 %v47, 7
      %v50 = vld [vmem:[#allocation15] sm:$0xff]
      %vm51 = vcmp.lt.s32.totalorder %v50, 0
      %v52 = vsub.s32 2147483647, %v50
      %v53 = vsel %vm51, %v52, %v50
      %vm55 = vcmp.lt.s32.totalorder %v48, 8
      %v56 = vsel %vm55, %v53, 2147483648
      %57 = vst [vmem:[#allocation15] sm:$0xff] %v56
      %v58 = vlaneseq
      %v59 = vshrl.u32 %v58, 7
      %62 = vst [vmem:[#allocation16] sm:$0xff] %v59
      %63 = xla_tuple [#allocation15], [#allocation16]
      %64 = vst [vmem:[#allocation12] sm:$0xff] 2147483648
      %65 = vst [vmem:[#allocation14] sm:$0xff] 2147483647
      %66 = xla_tuple [#allocation12], [#allocation14]
      loop: start=0, step=1, limit=1
      $region45: #{custom-call} parent=2 // loop_pre_header
        _
      $region46: #{custom-call} parent=2 // loop_header
        %s68 = sphi 0, %s72
        %p69 = scmp.ge.s32.totalorder %s68, 1
      $region47: #{custom-call} parent=2 // loop_header_branch
        %71 = sbr.rel (%p69) target = $region51
      $region48: #{custom-call} parent=2 // loop_body
        %v73 = vld [vmem:[#allocation15] sm:$0xff]
        %v74 = vld [vmem:[#allocation16] sm:$0xff]
        %75 = xla_tuple %v73, %v74
        %v76 = vrot.slane %v73, 1
        %v77 = vrot.slane %v74, 1
        %78 = xla_tuple %v76, %v77
        %vm79 = vcmp.gt.s32.totalorder %v76, %v73
        %vm80 = vcmp.eq.s32.totalorder %v76, %v73
        %vm81 = vcmp.lt.s32.totalorder %v77, %v74
        %vm82 = vmand %vm80, %vm81
        %vm83 = vmor %vm79, %vm82
        %v84 = vsel %vm83, %v76, %v73
        %v85 = vsel %vm83, %v77, %v74
        %86 = xla_tuple %v84, %v85
        %v87 = vrot.slane %v84, 1
        %v88 = vrot.slane %v85, 1
        %89 = xla_tuple %v87, %v88
        %vm90 = vcmp.gt.s32.totalorder %v87, %v84
        %vm91 = vcmp.eq.s32.totalorder %v87, %v84
        %vm92 = vcmp.lt.s32.totalorder %v88, %v85
        %vm93 = vmand %vm91, %vm92
        %vm94 = vmor %vm90, %vm93
        %v95 = vsel %vm94, %v87, %v84
        %v96 = vsel %vm94, %v88, %v85
        %97 = xla_tuple %v95, %v96
        %v98 = vrot.slane %v95, 1
        %v99 = vrot.slane %v96, 1
        %100 = xla_tuple %v98, %v99
        %vm101 = vcmp.gt.s32.totalorder %v98, %v95
        %vm102 = vcmp.eq.s32.totalorder %v98, %v95
        %vm103 = vcmp.lt.s32.totalorder %v99, %v96
        %vm104 = vmand %vm102, %vm103
        %vm105 = vmor %vm101, %vm104
        %v106 = vsel %vm105, %v98, %v95
        %v107 = vsel %vm105, %v99, %v96
        %108 = xla_tuple %v106, %v107
        %v109 = vrot.slane %v106, 1
        %v110 = vrot.slane %v107, 1
        %111 = xla_tuple %v109, %v110
        %vm112 = vcmp.gt.s32.totalorder %v109, %v106
        %vm113 = vcmp.eq.s32.totalorder %v109, %v106
        %vm114 = vcmp.lt.s32.totalorder %v110, %v107
        %vm115 = vmand %vm113, %vm114
        %vm116 = vmor %vm112, %vm115
        %v117 = vsel %vm116, %v109, %v106
        %v118 = vsel %vm116, %v110, %v107
        %119 = xla_tuple %v117, %v118
        %v120 = vrot.slane %v117, 1
        %v121 = vrot.slane %v118, 1
        %122 = xla_tuple %v120, %v121
        %vm123 = vcmp.gt.s32.totalorder %v120, %v117
        %vm124 = vcmp.eq.s32.totalorder %v120, %v117
        %vm125 = vcmp.lt.s32.totalorder %v121, %v118
        %vm126 = vmand %vm124, %vm125
        %vm127 = vmor %vm123, %vm126
        %v128 = vsel %vm127, %v120, %v117
        %v129 = vsel %vm127, %v121, %v118
        %130 = xla_tuple %v128, %v129
        %v131 = vrot.slane %v128, 1
        %v132 = vrot.slane %v129, 1
        %133 = xla_tuple %v131, %v132
        %vm134 = vcmp.gt.s32.totalorder %v131, %v128
        %vm135 = vcmp.eq.s32.totalorder %v131, %v128
        %vm136 = vcmp.lt.s32.totalorder %v132, %v129
        %vm137 = vmand %vm135, %vm136
        %vm138 = vmor %vm134, %vm137
        %v139 = vsel %vm138, %v131, %v128
        %v140 = vsel %vm138, %v132, %v129
        %141 = xla_tuple %v139, %v140
        %v142 = vrot.slane %v139, 1
        %v143 = vrot.slane %v140, 1
        %144 = xla_tuple %v142, %v143
        %vm145 = vcmp.gt.s32.totalorder %v142, %v139
        %vm146 = vcmp.eq.s32.totalorder %v142, %v139
        %vm147 = vcmp.lt.s32.totalorder %v143, %v140
        %vm148 = vmand %vm146, %vm147
        %vm149 = vmor %vm145, %vm148
        %v150 = vsel %vm149, %v142, %v139
        %v151 = vsel %vm149, %v143, %v140
        %152 = xla_tuple %v150, %v151
        %s153 = scalar_lea.vmem [#allocation12], %s68
        %154 = vst [vmem:[%s153] sm:$0x1] %v150
        %s155 = scalar_lea.vmem [#allocation14], %s68
        %156 = vst [vmem:[%s155] sm:$0x1] %v151
        %157 = xla_tuple %154, %156
        %158 = vxpose.xlu0.b32.start [1/16] %v151, 128
        %159 = vxpose.xlu0.b32.cont [2/16] 0.0, 128
        %160 = vxpose.xlu0.b32.cont [3/16] 0.0, 128
        %161 = vxpose.xlu0.b32.cont [4/16] 0.0, 128
        %162 = vxpose.xlu0.b32.cont [5/16] 0.0, 128
        %163 = vxpose.xlu0.b32.cont [6/16] 0.0, 128
        %164 = vxpose.xlu0.b32.cont [7/16] 0.0, 128
        %165 = vxpose.xlu0.b32.cont [8/16] 0.0, 128
        %166 = vxpose.xlu0.b32.cont [9/16] 0.0, 128
        %167 = vxpose.xlu0.b32.cont [10/16] 0.0, 128
        %168 = vxpose.xlu0.b32.cont [11/16] 0.0, 128
        %169 = vxpose.xlu0.b32.cont [12/16] 0.0, 128
        %170 = vxpose.xlu0.b32.cont [13/16] 0.0, 128
        %171 = vxpose.xlu0.b32.cont [14/16] 0.0, 128
        %172 = vxpose.xlu0.b32.cont [15/16] 0.0, 128
        %173 = vxpose.xlu0.b32.end [16/16] 0.0, 128
        %v174 = vpop.trf.xlu0
        %v175 = vpop.trf.xlu0
        %v176 = vpop.trf.xlu0
        %v177 = vpop.trf.xlu0
        %v178 = vpop.trf.xlu0
        %v179 = vpop.trf.xlu0
        %v180 = vpop.trf.xlu0
        %v181 = vpop.trf.xlu0
        %v182 = vpop.trf.xlu0
        %v183 = vpop.trf.xlu0
        %v184 = vpop.trf.xlu0
        %v185 = vpop.trf.xlu0
        %v186 = vpop.trf.xlu0
        %v187 = vpop.trf.xlu0
        %v188 = vpop.trf.xlu0
        %v189 = vpop.trf.xlu0
        %s190 = vtos %v174
        %s191 = sshrl.u32 %s190, 3
        %p192 = scmp.lt.s32.totalorder %s190, 0
        %s193 = ssub.s32 0, %s190
        %s194 = scalar_select %p192, %s193, %s190
        %s195 = sand.u32 %s194, 7
        %s196 = ssub.s32 0, %s195
        %s197 = scalar_select %p192, %s196, %s195
        %v198 = vlaneseq
        %s199 = smul.u32 %s197, 128
        %v200 = vstv %s199
        %vm202 = vcmp.eq.s32.totalorder %v198, %v200
        %s203 = smul.addr %s191, 8
        %s204 = scalar_lea.vmem [#allocation15], %s203
        %205 = vst.msk [vmem:[%s204] sm:$0xff] %vm202, 2147483648
        %s206 = smul.addr %s191, 8
        %s207 = scalar_lea.vmem [#allocation16], %s206
        %208 = vst.msk [vmem:[%s207] sm:$0xff] %vm202, 2147483647
        %209 = xla_tuple %205, %208
        %v210 = vrot.slane %v174, 1
        %s211 = vtos %v210
        %s212 = sshrl.u32 %s211, 3
        %p213 = scmp.lt.s32.totalorder %s211, 0
        %s214 = ssub.s32 0, %s211
        %s215 = scalar_select %p213, %s214, %s211
        %s216 = sand.u32 %s215, 7
        %s217 = ssub.s32 0, %s216
        %s218 = scalar_select %p213, %s217, %s216
        %v219 = vlaneseq
        %s220 = smul.u32 %s218, 128
        %v221 = vstv %s220
        %v222 = vadd.s32 %v221, 1
        %vm223 = vcmp.eq.s32.totalorder %v219, %v222
        %s224 = smul.addr %s212, 8
        %s225 = scalar_lea.vmem [#allocation15], %s224
        %226 = vst.msk [vmem:[%s225] sm:$0xff] %vm223, 2147483648
        %s227 = smul.addr %s212, 8
        %s228 = scalar_lea.vmem [#allocation16], %s227
        %229 = vst.msk [vmem:[%s228] sm:$0xff] %vm223, 2147483647
        %230 = xla_tuple %226, %229
        %v231 = vrot.slane %v210, 1
        %s232 = vtos %v231
        %s233 = sshrl.u32 %s232, 3
        %p234 = scmp.lt.s32.totalorder %s232, 0
        %s235 = ssub.s32 0, %s232
        %s236 = scalar_select %p234, %s235, %s232
        %s237 = sand.u32 %s236, 7
        %s238 = ssub.s32 0, %s237
        %s239 = scalar_select %p234, %s238, %s237
        %v240 = vlaneseq
        %s241 = smul.u32 %s239, 128
        %v242 = vstv %s241
        %v243 = vadd.s32 %v242, 2
        %vm244 = vcmp.eq.s32.totalorder %v240, %v243
        %s245 = smul.addr %s233, 8
        %s246 = scalar_lea.vmem [#allocation15], %s245
        %247 = vst.msk [vmem:[%s246] sm:$0xff] %vm244, 2147483648
        %s248 = smul.addr %s233, 8
        %s249 = scalar_lea.vmem [#allocation16], %s248
        %250 = vst.msk [vmem:[%s249] sm:$0xff] %vm244, 2147483647
        %251 = xla_tuple %247, %250
        %v252 = vrot.slane %v231, 1
        %s253 = vtos %v252
        %s254 = sshrl.u32 %s253, 3
        %p255 = scmp.lt.s32.totalorder %s253, 0
        %s256 = ssub.s32 0, %s253
        %s257 = scalar_select %p255, %s256, %s253
        %s258 = sand.u32 %s257, 7
        %s259 = ssub.s32 0, %s258
        %s260 = scalar_select %p255, %s259, %s258
        %v261 = vlaneseq
        %s262 = smul.u32 %s260, 128
        %v263 = vstv %s262
        %v264 = vadd.s32 %v263, 3
        %vm265 = vcmp.eq.s32.totalorder %v261, %v264
        %s266 = smul.addr %s254, 8
        %s267 = scalar_lea.vmem [#allocation15], %s266
        %268 = vst.msk [vmem:[%s267] sm:$0xff] %vm265, 2147483648
        %s269 = smul.addr %s254, 8
        %s270 = scalar_lea.vmem [#allocation16], %s269
        %271 = vst.msk [vmem:[%s270] sm:$0xff] %vm265, 2147483647
        %272 = xla_tuple %268, %271
        %v273 = vrot.slane %v252, 1
        %s274 = vtos %v273
        %s275 = sshrl.u32 %s274, 3
        %p276 = scmp.lt.s32.totalorder %s274, 0
        %s277 = ssub.s32 0, %s274
        %s278 = scalar_select %p276, %s277, %s274
        %s279 = sand.u32 %s278, 7
        %s280 = ssub.s32 0, %s279
        %s281 = scalar_select %p276, %s280, %s279
        %v282 = vlaneseq
        %s283 = smul.u32 %s281, 128
        %v284 = vstv %s283
        %v285 = vadd.s32 %v284, 4
        %vm286 = vcmp.eq.s32.totalorder %v282, %v285
        %s287 = smul.addr %s275, 8
        %s288 = scalar_lea.vmem [#allocation15], %s287
        %289 = vst.msk [vmem:[%s288] sm:$0xff] %vm286, 2147483648
        %s290 = smul.addr %s275, 8
        %s291 = scalar_lea.vmem [#allocation16], %s290
        %292 = vst.msk [vmem:[%s291] sm:$0xff] %vm286, 2147483647
        %293 = xla_tuple %289, %292
        %v294 = vrot.slane %v273, 1
        %s295 = vtos %v294
        %s296 = sshrl.u32 %s295, 3
        %p297 = scmp.lt.s32.totalorder %s295, 0
        %s298 = ssub.s32 0, %s295
        %s299 = scalar_select %p297, %s298, %s295
        %s300 = sand.u32 %s299, 7
        %s301 = ssub.s32 0, %s300
        %s302 = scalar_select %p297, %s301, %s300
        %v303 = vlaneseq
        %s304 = smul.u32 %s302, 128
        %v305 = vstv %s304
        %v306 = vadd.s32 %v305, 5
        %vm307 = vcmp.eq.s32.totalorder %v303, %v306
        %s308 = smul.addr %s296, 8
        %s309 = scalar_lea.vmem [#allocation15], %s308
        %310 = vst.msk [vmem:[%s309] sm:$0xff] %vm307, 2147483648
        %s311 = smul.addr %s296, 8
        %s312 = scalar_lea.vmem [#allocation16], %s311
        %313 = vst.msk [vmem:[%s312] sm:$0xff] %vm307, 2147483647
        %314 = xla_tuple %310, %313
        %v315 = vrot.slane %v294, 1
        %s316 = vtos %v315
        %s317 = sshrl.u32 %s316, 3
        %p318 = scmp.lt.s32.totalorder %s316, 0
        %s319 = ssub.s32 0, %s316
        %s320 = scalar_select %p318, %s319, %s316
        %s321 = sand.u32 %s320, 7
        %s322 = ssub.s32 0, %s321
        %s323 = scalar_select %p318, %s322, %s321
        %v324 = vlaneseq
        %s325 = smul.u32 %s323, 128
        %v326 = vstv %s325
        %v327 = vadd.s32 %v326, 6
        %vm328 = vcmp.eq.s32.totalorder %v324, %v327
        %s329 = smul.addr %s317, 8
        %s330 = scalar_lea.vmem [#allocation15], %s329
        %331 = vst.msk [vmem:[%s330] sm:$0xff] %vm328, 2147483648
        %s332 = smul.addr %s317, 8
        %s333 = scalar_lea.vmem [#allocation16], %s332
        %334 = vst.msk [vmem:[%s333] sm:$0xff] %vm328, 2147483647
        %335 = xla_tuple %331, %334
        %v336 = vrot.slane %v315, 1
        %s337 = vtos %v336
        %s338 = sshrl.u32 %s337, 3
        %p339 = scmp.lt.s32.totalorder %s337, 0
        %s340 = ssub.s32 0, %s337
        %s341 = scalar_select %p339, %s340, %s337
        %s342 = sand.u32 %s341, 7
        %s343 = ssub.s32 0, %s342
        %s344 = scalar_select %p339, %s343, %s342
        %v345 = vlaneseq
        %s346 = smul.u32 %s344, 128
        %v347 = vstv %s346
        %v348 = vadd.s32 %v347, 7
        %vm349 = vcmp.eq.s32.totalorder %v345, %v348
        %s350 = smul.addr %s338, 8
        %s351 = scalar_lea.vmem [#allocation15], %s350
        %352 = vst.msk [vmem:[%s351] sm:$0xff] %vm349, 2147483648
        %s353 = smul.addr %s338, 8
        %s354 = scalar_lea.vmem [#allocation16], %s353
        %355 = vst.msk [vmem:[%s354] sm:$0xff] %vm349, 2147483647
        %356 = xla_tuple %352, %355
        %v357 = vrot.slane %v336, 1
        %s358 = vtos %v175
        %s359 = sshrl.u32 %s358, 3
        %p360 = scmp.lt.s32.totalorder %s358, 0
        %s361 = ssub.s32 0, %s358
        %s362 = scalar_select %p360, %s361, %s358
        %s363 = sand.u32 %s362, 7
        %s364 = ssub.s32 0, %s363
        %s365 = scalar_select %p360, %s364, %s363
        %v366 = vlaneseq
        %s367 = smul.u32 %s365, 128
        %v368 = vstv %s367
        %v369 = vadd.s32 %v368, 8
        %vm370 = vcmp.eq.s32.totalorder %v366, %v369
        %s371 = smul.addr %s359, 8
        %s372 = scalar_lea.vmem [#allocation15], %s371
        %373 = vst.msk [vmem:[%s372] sm:$0xff] %vm370, 2147483648
        %s374 = smul.addr %s359, 8
        %s375 = scalar_lea.vmem [#allocation16], %s374
        %376 = vst.msk [vmem:[%s375] sm:$0xff] %vm370, 2147483647
        %377 = xla_tuple %373, %376
        %v378 = vrot.slane %v175, 1
        %s379 = vtos %v378
        %s380 = sshrl.u32 %s379, 3
        %p381 = scmp.lt.s32.totalorder %s379, 0
        %s382 = ssub.s32 0, %s379
        %s383 = scalar_select %p381, %s382, %s379
        %s384 = sand.u32 %s383, 7
        %s385 = ssub.s32 0, %s384
        %s386 = scalar_select %p381, %s385, %s384
        %v387 = vlaneseq
        %s388 = smul.u32 %s386, 128
        %v389 = vstv %s388
        %v390 = vadd.s32 %v389, 9
        %vm391 = vcmp.eq.s32.totalorder %v387, %v390
        %s392 = smul.addr %s380, 8
        %s393 = scalar_lea.vmem [#allocation15], %s392
        %394 = vst.msk [vmem:[%s393] sm:$0xff] %vm391, 2147483648
        %s395 = smul.addr %s380, 8
        %s396 = scalar_lea.vmem [#allocation16], %s395
        %397 = vst.msk [vmem:[%s396] sm:$0xff] %vm391, 2147483647
        %398 = xla_tuple %394, %397
        %v399 = vrot.slane %v378, 1
        %s400 = vtos %v399
        %s401 = sshrl.u32 %s400, 3
        %p402 = scmp.lt.s32.totalorder %s400, 0
        %s403 = ssub.s32 0, %s400
        %s404 = scalar_select %p402, %s403, %s400
        %s405 = sand.u32 %s404, 7
        %s406 = ssub.s32 0, %s405
        %s407 = scalar_select %p402, %s406, %s405
        %v408 = vlaneseq
        %s409 = smul.u32 %s407, 128
        %v410 = vstv %s409
        %v411 = vadd.s32 %v410, 10
        %vm412 = vcmp.eq.s32.totalorder %v408, %v411
        %s413 = smul.addr %s401, 8
        %s414 = scalar_lea.vmem [#allocation15], %s413
        %415 = vst.msk [vmem:[%s414] sm:$0xff] %vm412, 2147483648
        %s416 = smul.addr %s401, 8
        %s417 = scalar_lea.vmem [#allocation16], %s416
        %418 = vst.msk [vmem:[%s417] sm:$0xff] %vm412, 2147483647
        %419 = xla_tuple %415, %418
        %v420 = vrot.slane %v399, 1
        %s421 = vtos %v420
        %s422 = sshrl.u32 %s421, 3
        %p423 = scmp.lt.s32.totalorder %s421, 0
        %s424 = ssub.s32 0, %s421
        %s425 = scalar_select %p423, %s424, %s421
        %s426 = sand.u32 %s425, 7
        %s427 = ssub.s32 0, %s426
        %s428 = scalar_select %p423, %s427, %s426
        %v429 = vlaneseq
        %s430 = smul.u32 %s428, 128
        %v431 = vstv %s430
        %v432 = vadd.s32 %v431, 11
        %vm433 = vcmp.eq.s32.totalorder %v429, %v432
        %s434 = smul.addr %s422, 8
        %s435 = scalar_lea.vmem [#allocation15], %s434
        %436 = vst.msk [vmem:[%s435] sm:$0xff] %vm433, 2147483648
        %s437 = smul.addr %s422, 8
        %s438 = scalar_lea.vmem [#allocation16], %s437
        %439 = vst.msk [vmem:[%s438] sm:$0xff] %vm433, 2147483647
        %440 = xla_tuple %436, %439
        %v441 = vrot.slane %v420, 1
        %s442 = vtos %v441
        %s443 = sshrl.u32 %s442, 3
        %p444 = scmp.lt.s32.totalorder %s442, 0
        %s445 = ssub.s32 0, %s442
        %s446 = scalar_select %p444, %s445, %s442
        %s447 = sand.u32 %s446, 7
        %s448 = ssub.s32 0, %s447
        %s449 = scalar_select %p444, %s448, %s447
        %v450 = vlaneseq
        %s451 = smul.u32 %s449, 128
        %v452 = vstv %s451
        %v453 = vadd.s32 %v452, 12
        %vm454 = vcmp.eq.s32.totalorder %v450, %v453
        %s455 = smul.addr %s443, 8
        %s456 = scalar_lea.vmem [#allocation15], %s455
        %457 = vst.msk [vmem:[%s456] sm:$0xff] %vm454, 2147483648
        %s458 = smul.addr %s443, 8
        %s459 = scalar_lea.vmem [#allocation16], %s458
        %460 = vst.msk [vmem:[%s459] sm:$0xff] %vm454, 2147483647
        %461 = xla_tuple %457, %460
        %v462 = vrot.slane %v441, 1
        %s463 = vtos %v462
        %s464 = sshrl.u32 %s463, 3
        %p465 = scmp.lt.s32.totalorder %s463, 0
        %s466 = ssub.s32 0, %s463
        %s467 = scalar_select %p465, %s466, %s463
        %s468 = sand.u32 %s467, 7
        %s469 = ssub.s32 0, %s468
        %s470 = scalar_select %p465, %s469, %s468
        %v471 = vlaneseq
        %s472 = smul.u32 %s470, 128
        %v473 = vstv %s472
        %v474 = vadd.s32 %v473, 13
        %vm475 = vcmp.eq.s32.totalorder %v471, %v474
        %s476 = smul.addr %s464, 8
        %s477 = scalar_lea.vmem [#allocation15], %s476
        %478 = vst.msk [vmem:[%s477] sm:$0xff] %vm475, 2147483648
        %s479 = smul.addr %s464, 8
        %s480 = scalar_lea.vmem [#allocation16], %s479
        %481 = vst.msk [vmem:[%s480] sm:$0xff] %vm475, 2147483647
        %482 = xla_tuple %478, %481
        %v483 = vrot.slane %v462, 1
        %s484 = vtos %v483
        %s485 = sshrl.u32 %s484, 3
        %p486 = scmp.lt.s32.totalorder %s484, 0
        %s487 = ssub.s32 0, %s484
        %s488 = scalar_select %p486, %s487, %s484
        %s489 = sand.u32 %s488, 7
        %s490 = ssub.s32 0, %s489
        %s491 = scalar_select %p486, %s490, %s489
        %v492 = vlaneseq
        %s493 = smul.u32 %s491, 128
        %v494 = vstv %s493
        %v495 = vadd.s32 %v494, 14
        %vm496 = vcmp.eq.s32.totalorder %v492, %v495
        %s497 = smul.addr %s485, 8
        %s498 = scalar_lea.vmem [#allocation15], %s497
        %499 = vst.msk [vmem:[%s498] sm:$0xff] %vm496, 2147483648
        %s500 = smul.addr %s485, 8
        %s501 = scalar_lea.vmem [#allocation16], %s500
        %502 = vst.msk [vmem:[%s501] sm:$0xff] %vm496, 2147483647
        %503 = xla_tuple %499, %502
        %v504 = vrot.slane %v483, 1
        %s505 = vtos %v504
        %s506 = sshrl.u32 %s505, 3
        %p507 = scmp.lt.s32.totalorder %s505, 0
        %s508 = ssub.s32 0, %s505
        %s509 = scalar_select %p507, %s508, %s505
        %s510 = sand.u32 %s509, 7
        %s511 = ssub.s32 0, %s510
        %s512 = scalar_select %p507, %s511, %s510
        %v513 = vlaneseq
        %s514 = smul.u32 %s512, 128
        %v515 = vstv %s514
        %v516 = vadd.s32 %v515, 15
        %vm517 = vcmp.eq.s32.totalorder %v513, %v516
        %s518 = smul.addr %s506, 8
        %s519 = scalar_lea.vmem [#allocation15], %s518
        %520 = vst.msk [vmem:[%s519] sm:$0xff] %vm517, 2147483648
        %s521 = smul.addr %s506, 8
        %s522 = scalar_lea.vmem [#allocation16], %s521
        %523 = vst.msk [vmem:[%s522] sm:$0xff] %vm517, 2147483647
        %524 = xla_tuple %520, %523
        %v525 = vrot.slane %v504, 1
        %s526 = vtos %v176
        %s527 = sshrl.u32 %s526, 3
        %p528 = scmp.lt.s32.totalorder %s526, 0
        %s529 = ssub.s32 0, %s526
        %s530 = scalar_select %p528, %s529, %s526
        %s531 = sand.u32 %s530, 7
        %s532 = ssub.s32 0, %s531
        %s533 = scalar_select %p528, %s532, %s531
        %v534 = vlaneseq
        %s535 = smul.u32 %s533, 128
        %v536 = vstv %s535
        %v537 = vadd.s32 %v536, 16
        %vm538 = vcmp.eq.s32.totalorder %v534, %v537
        %s539 = smul.addr %s527, 8
        %s540 = scalar_lea.vmem [#allocation15], %s539
        %541 = vst.msk [vmem:[%s540] sm:$0xff] %vm538, 2147483648
        %s542 = smul.addr %s527, 8
        %s543 = scalar_lea.vmem [#allocation16], %s542
        %544 = vst.msk [vmem:[%s543] sm:$0xff] %vm538, 2147483647
        %545 = xla_tuple %541, %544
        %v546 = vrot.slane %v176, 1
        %s547 = vtos %v546
        %s548 = sshrl.u32 %s547, 3
        %p549 = scmp.lt.s32.totalorder %s547, 0
        %s550 = ssub.s32 0, %s547
        %s551 = scalar_select %p549, %s550, %s547
        %s552 = sand.u32 %s551, 7
        %s553 = ssub.s32 0, %s552
        %s554 = scalar_select %p549, %s553, %s552
        %v555 = vlaneseq
        %s556 = smul.u32 %s554, 128
        %v557 = vstv %s556
        %v558 = vadd.s32 %v557, 17
        %vm559 = vcmp.eq.s32.totalorder %v555, %v558
        %s560 = smul.addr %s548, 8
        %s561 = scalar_lea.vmem [#allocation15], %s560
        %562 = vst.msk [vmem:[%s561] sm:$0xff] %vm559, 2147483648
        %s563 = smul.addr %s548, 8
        %s564 = scalar_lea.vmem [#allocation16], %s563
        %565 = vst.msk [vmem:[%s564] sm:$0xff] %vm559, 2147483647
        %566 = xla_tuple %562, %565
        %v567 = vrot.slane %v546, 1
        %s568 = vtos %v567
        %s569 = sshrl.u32 %s568, 3
        %p570 = scmp.lt.s32.totalorder %s568, 0
        %s571 = ssub.s32 0, %s568
        %s572 = scalar_select %p570, %s571, %s568
        %s573 = sand.u32 %s572, 7
        %s574 = ssub.s32 0, %s573
        %s575 = scalar_select %p570, %s574, %s573
        %v576 = vlaneseq
        %s577 = smul.u32 %s575, 128
        %v578 = vstv %s577
        %v579 = vadd.s32 %v578, 18
        %vm580 = vcmp.eq.s32.totalorder %v576, %v579
        %s581 = smul.addr %s569, 8
        %s582 = scalar_lea.vmem [#allocation15], %s581
        %583 = vst.msk [vmem:[%s582] sm:$0xff] %vm580, 2147483648
        %s584 = smul.addr %s569, 8
        %s585 = scalar_lea.vmem [#allocation16], %s584
        %586 = vst.msk [vmem:[%s585] sm:$0xff] %vm580, 2147483647
        %587 = xla_tuple %583, %586
        %v588 = vrot.slane %v567, 1
        %s589 = vtos %v588
        %s590 = sshrl.u32 %s589, 3
        %p591 = scmp.lt.s32.totalorder %s589, 0
        %s592 = ssub.s32 0, %s589
        %s593 = scalar_select %p591, %s592, %s589
        %s594 = sand.u32 %s593, 7
        %s595 = ssub.s32 0, %s594
        %s596 = scalar_select %p591, %s595, %s594
        %v597 = vlaneseq
        %s598 = smul.u32 %s596, 128
        %v599 = vstv %s598
        %v600 = vadd.s32 %v599, 19
        %vm601 = vcmp.eq.s32.totalorder %v597, %v600
        %s602 = smul.addr %s590, 8
        %s603 = scalar_lea.vmem [#allocation15], %s602
        %604 = vst.msk [vmem:[%s603] sm:$0xff] %vm601, 2147483648
        %s605 = smul.addr %s590, 8
        %s606 = scalar_lea.vmem [#allocation16], %s605
        %607 = vst.msk [vmem:[%s606] sm:$0xff] %vm601, 2147483647
        %608 = xla_tuple %604, %607
        %v609 = vrot.slane %v588, 1
        %s610 = vtos %v609
        %s611 = sshrl.u32 %s610, 3
        %p612 = scmp.lt.s32.totalorder %s610, 0
        %s613 = ssub.s32 0, %s610
        %s614 = scalar_select %p612, %s613, %s610
        %s615 = sand.u32 %s614, 7
        %s616 = ssub.s32 0, %s615
        %s617 = scalar_select %p612, %s616, %s615
        %v618 = vlaneseq
        %s619 = smul.u32 %s617, 128
        %v620 = vstv %s619
        %v621 = vadd.s32 %v620, 20
        %vm622 = vcmp.eq.s32.totalorder %v618, %v621
        %s623 = smul.addr %s611, 8
        %s624 = scalar_lea.vmem [#allocation15], %s623
        %625 = vst.msk [vmem:[%s624] sm:$0xff] %vm622, 2147483648
        %s626 = smul.addr %s611, 8
        %s627 = scalar_lea.vmem [#allocation16], %s626
        %628 = vst.msk [vmem:[%s627] sm:$0xff] %vm622, 2147483647
        %629 = xla_tuple %625, %628
        %v630 = vrot.slane %v609, 1
        %s631 = vtos %v630
        %s632 = sshrl.u32 %s631, 3
        %p633 = scmp.lt.s32.totalorder %s631, 0
        %s634 = ssub.s32 0, %s631
        %s635 = scalar_select %p633, %s634, %s631
        %s636 = sand.u32 %s635, 7
        %s637 = ssub.s32 0, %s636
        %s638 = scalar_select %p633, %s637, %s636
        %v639 = vlaneseq
        %s640 = smul.u32 %s638, 128
        %v641 = vstv %s640
        %v642 = vadd.s32 %v641, 21
        %vm643 = vcmp.eq.s32.totalorder %v639, %v642
        %s644 = smul.addr %s632, 8
        %s645 = scalar_lea.vmem [#allocation15], %s644
        %646 = vst.msk [vmem:[%s645] sm:$0xff] %vm643, 2147483648
        %s647 = smul.addr %s632, 8
        %s648 = scalar_lea.vmem [#allocation16], %s647
        %649 = vst.msk [vmem:[%s648] sm:$0xff] %vm643, 2147483647
        %650 = xla_tuple %646, %649
        %v651 = vrot.slane %v630, 1
        %s652 = vtos %v651
        %s653 = sshrl.u32 %s652, 3
        %p654 = scmp.lt.s32.totalorder %s652, 0
        %s655 = ssub.s32 0, %s652
        %s656 = scalar_select %p654, %s655, %s652
        %s657 = sand.u32 %s656, 7
        %s658 = ssub.s32 0, %s657
        %s659 = scalar_select %p654, %s658, %s657
        %v660 = vlaneseq
        %s661 = smul.u32 %s659, 128
        %v662 = vstv %s661
        %v663 = vadd.s32 %v662, 22
        %vm664 = vcmp.eq.s32.totalorder %v660, %v663
        %s665 = smul.addr %s653, 8
        %s666 = scalar_lea.vmem [#allocation15], %s665
        %667 = vst.msk [vmem:[%s666] sm:$0xff] %vm664, 2147483648
        %s668 = smul.addr %s653, 8
        %s669 = scalar_lea.vmem [#allocation16], %s668
        %670 = vst.msk [vmem:[%s669] sm:$0xff] %vm664, 2147483647
        %671 = xla_tuple %667, %670
        %v672 = vrot.slane %v651, 1
        %s673 = vtos %v672
        %s674 = sshrl.u32 %s673, 3
        %p675 = scmp.lt.s32.totalorder %s673, 0
        %s676 = ssub.s32 0, %s673
        %s677 = scalar_select %p675, %s676, %s673
        %s678 = sand.u32 %s677, 7
        %s679 = ssub.s32 0, %s678
        %s680 = scalar_select %p675, %s679, %s678
        %v681 = vlaneseq
        %s682 = smul.u32 %s680, 128
        %v683 = vstv %s682
        %v684 = vadd.s32 %v683, 23
        %vm685 = vcmp.eq.s32.totalorder %v681, %v684
        %s686 = smul.addr %s674, 8
        %s687 = scalar_lea.vmem [#allocation15], %s686
        %688 = vst.msk [vmem:[%s687] sm:$0xff] %vm685, 2147483648
        %s689 = smul.addr %s674, 8
        %s690 = scalar_lea.vmem [#allocation16], %s689
        %691 = vst.msk [vmem:[%s690] sm:$0xff] %vm685, 2147483647
        %692 = xla_tuple %688, %691
        %v693 = vrot.slane %v672, 1
        %s694 = vtos %v177
        %s695 = sshrl.u32 %s694, 3
        %p696 = scmp.lt.s32.totalorder %s694, 0
        %s697 = ssub.s32 0, %s694
        %s698 = scalar_select %p696, %s697, %s694
        %s699 = sand.u32 %s698, 7
        %s700 = ssub.s32 0, %s699
        %s701 = scalar_select %p696, %s700, %s699
        %v702 = vlaneseq
        %s703 = smul.u32 %s701, 128
        %v704 = vstv %s703
        %v705 = vadd.s32 %v704, 24
        %vm706 = vcmp.eq.s32.totalorder %v702, %v705
        %s707 = smul.addr %s695, 8
        %s708 = scalar_lea.vmem [#allocation15], %s707
        %709 = vst.msk [vmem:[%s708] sm:$0xff] %vm706, 2147483648
        %s710 = smul.addr %s695, 8
        %s711 = scalar_lea.vmem [#allocation16], %s710
        %712 = vst.msk [vmem:[%s711] sm:$0xff] %vm706, 2147483647
        %713 = xla_tuple %709, %712
        %v714 = vrot.slane %v177, 1
        %s715 = vtos %v714
        %s716 = sshrl.u32 %s715, 3
        %p717 = scmp.lt.s32.totalorder %s715, 0
        %s718 = ssub.s32 0, %s715
        %s719 = scalar_select %p717, %s718, %s715
        %s720 = sand.u32 %s719, 7
        %s721 = ssub.s32 0, %s720
        %s722 = scalar_select %p717, %s721, %s720
        %v723 = vlaneseq
        %s724 = smul.u32 %s722, 128
        %v725 = vstv %s724
        %v726 = vadd.s32 %v725, 25
        %vm727 = vcmp.eq.s32.totalorder %v723, %v726
        %s728 = smul.addr %s716, 8
        %s729 = scalar_lea.vmem [#allocation15], %s728
        %730 = vst.msk [vmem:[%s729] sm:$0xff] %vm727, 2147483648
        %s731 = smul.addr %s716, 8
        %s732 = scalar_lea.vmem [#allocation16], %s731
        %733 = vst.msk [vmem:[%s732] sm:$0xff] %vm727, 2147483647
        %734 = xla_tuple %730, %733
        %v735 = vrot.slane %v714, 1
        %s736 = vtos %v735
        %s737 = sshrl.u32 %s736, 3
        %p738 = scmp.lt.s32.totalorder %s736, 0
        %s739 = ssub.s32 0, %s736
        %s740 = scalar_select %p738, %s739, %s736
        %s741 = sand.u32 %s740, 7
        %s742 = ssub.s32 0, %s741
        %s743 = scalar_select %p738, %s742, %s741
        %v744 = vlaneseq
        %s745 = smul.u32 %s743, 128
        %v746 = vstv %s745
        %v747 = vadd.s32 %v746, 26
        %vm748 = vcmp.eq.s32.totalorder %v744, %v747
        %s749 = smul.addr %s737, 8
        %s750 = scalar_lea.vmem [#allocation15], %s749
        %751 = vst.msk [vmem:[%s750] sm:$0xff] %vm748, 2147483648
        %s752 = smul.addr %s737, 8
        %s753 = scalar_lea.vmem [#allocation16], %s752
        %754 = vst.msk [vmem:[%s753] sm:$0xff] %vm748, 2147483647
        %755 = xla_tuple %751, %754
        %v756 = vrot.slane %v735, 1
        %s757 = vtos %v756
        %s758 = sshrl.u32 %s757, 3
        %p759 = scmp.lt.s32.totalorder %s757, 0
        %s760 = ssub.s32 0, %s757
        %s761 = scalar_select %p759, %s760, %s757
        %s762 = sand.u32 %s761, 7
        %s763 = ssub.s32 0, %s762
        %s764 = scalar_select %p759, %s763, %s762
        %v765 = vlaneseq
        %s766 = smul.u32 %s764, 128
        %v767 = vstv %s766
        %v768 = vadd.s32 %v767, 27
        %vm769 = vcmp.eq.s32.totalorder %v765, %v768
        %s770 = smul.addr %s758, 8
        %s771 = scalar_lea.vmem [#allocation15], %s770
        %772 = vst.msk [vmem:[%s771] sm:$0xff] %vm769, 2147483648
        %s773 = smul.addr %s758, 8
        %s774 = scalar_lea.vmem [#allocation16], %s773
        %775 = vst.msk [vmem:[%s774] sm:$0xff] %vm769, 2147483647
        %776 = xla_tuple %772, %775
        %v777 = vrot.slane %v756, 1
        %s778 = vtos %v777
        %s779 = sshrl.u32 %s778, 3
        %p780 = scmp.lt.s32.totalorder %s778, 0
        %s781 = ssub.s32 0, %s778
        %s782 = scalar_select %p780, %s781, %s778
        %s783 = sand.u32 %s782, 7
        %s784 = ssub.s32 0, %s783
        %s785 = scalar_select %p780, %s784, %s783
        %v786 = vlaneseq
        %s787 = smul.u32 %s785, 128
        %v788 = vstv %s787
        %v789 = vadd.s32 %v788, 28
        %vm790 = vcmp.eq.s32.totalorder %v786, %v789
        %s791 = smul.addr %s779, 8
        %s792 = scalar_lea.vmem [#allocation15], %s791
        %793 = vst.msk [vmem:[%s792] sm:$0xff] %vm790, 2147483648
        %s794 = smul.addr %s779, 8
        %s795 = scalar_lea.vmem [#allocation16], %s794
        %796 = vst.msk [vmem:[%s795] sm:$0xff] %vm790, 2147483647
        %797 = xla_tuple %793, %796
        %v798 = vrot.slane %v777, 1
        %s799 = vtos %v798
        %s800 = sshrl.u32 %s799, 3
        %p801 = scmp.lt.s32.totalorder %s799, 0
        %s802 = ssub.s32 0, %s799
        %s803 = scalar_select %p801, %s802, %s799
        %s804 = sand.u32 %s803, 7
        %s805 = ssub.s32 0, %s804
        %s806 = scalar_select %p801, %s805, %s804
        %v807 = vlaneseq
        %s808 = smul.u32 %s806, 128
        %v809 = vstv %s808
        %v810 = vadd.s32 %v809, 29
        %vm811 = vcmp.eq.s32.totalorder %v807, %v810
        %s812 = smul.addr %s800, 8
        %s813 = scalar_lea.vmem [#allocation15], %s812
        %814 = vst.msk [vmem:[%s813] sm:$0xff] %vm811, 2147483648
        %s815 = smul.addr %s800, 8
        %s816 = scalar_lea.vmem [#allocation16], %s815
        %817 = vst.msk [vmem:[%s816] sm:$0xff] %vm811, 2147483647
        %818 = xla_tuple %814, %817
        %v819 = vrot.slane %v798, 1
        %s820 = vtos %v819
        %s821 = sshrl.u32 %s820, 3
        %p822 = scmp.lt.s32.totalorder %s820, 0
        %s823 = ssub.s32 0, %s820
        %s824 = scalar_select %p822, %s823, %s820
        %s825 = sand.u32 %s824, 7
        %s826 = ssub.s32 0, %s825
        %s827 = scalar_select %p822, %s826, %s825
        %v828 = vlaneseq
        %s829 = smul.u32 %s827, 128
        %v830 = vstv %s829
        %v831 = vadd.s32 %v830, 30
        %vm832 = vcmp.eq.s32.totalorder %v828, %v831
        %s833 = smul.addr %s821, 8
        %s834 = scalar_lea.vmem [#allocation15], %s833
        %835 = vst.msk [vmem:[%s834] sm:$0xff] %vm832, 2147483648
        %s836 = smul.addr %s821, 8
        %s837 = scalar_lea.vmem [#allocation16], %s836
        %838 = vst.msk [vmem:[%s837] sm:$0xff] %vm832, 2147483647
        %839 = xla_tuple %835, %838
        %v840 = vrot.slane %v819, 1
        %s841 = vtos %v840
        %s842 = sshrl.u32 %s841, 3
        %p843 = scmp.lt.s32.totalorder %s841, 0
        %s844 = ssub.s32 0, %s841
        %s845 = scalar_select %p843, %s844, %s841
        %s846 = sand.u32 %s845, 7
        %s847 = ssub.s32 0, %s846
        %s848 = scalar_select %p843, %s847, %s846
        %v849 = vlaneseq
        %s850 = smul.u32 %s848, 128
        %v851 = vstv %s850
        %v852 = vadd.s32 %v851, 31
        %vm853 = vcmp.eq.s32.totalorder %v849, %v852
        %s854 = smul.addr %s842, 8
        %s855 = scalar_lea.vmem [#allocation15], %s854
        %856 = vst.msk [vmem:[%s855] sm:$0xff] %vm853, 2147483648
        %s857 = smul.addr %s842, 8
        %s858 = scalar_lea.vmem [#allocation16], %s857
        %859 = vst.msk [vmem:[%s858] sm:$0xff] %vm853, 2147483647
        %860 = xla_tuple %856, %859
        %v861 = vrot.slane %v840, 1
        %s862 = vtos %v178
        %s863 = sshrl.u32 %s862, 3
        %p864 = scmp.lt.s32.totalorder %s862, 0
        %s865 = ssub.s32 0, %s862
        %s866 = scalar_select %p864, %s865, %s862
        %s867 = sand.u32 %s866, 7
        %s868 = ssub.s32 0, %s867
        %s869 = scalar_select %p864, %s868, %s867
        %v870 = vlaneseq
        %s871 = smul.u32 %s869, 128
        %v872 = vstv %s871
        %v873 = vadd.s32 %v872, 32
        %vm874 = vcmp.eq.s32.totalorder %v870, %v873
        %s875 = smul.addr %s863, 8
        %s876 = scalar_lea.vmem [#allocation15], %s875
        %877 = vst.msk [vmem:[%s876] sm:$0xff] %vm874, 2147483648
        %s878 = smul.addr %s863, 8
        %s879 = scalar_lea.vmem [#allocation16], %s878
        %880 = vst.msk [vmem:[%s879] sm:$0xff] %vm874, 2147483647
        %881 = xla_tuple %877, %880
        %v882 = vrot.slane %v178, 1
        %s883 = vtos %v882
        %s884 = sshrl.u32 %s883, 3
        %p885 = scmp.lt.s32.totalorder %s883, 0
        %s886 = ssub.s32 0, %s883
        %s887 = scalar_select %p885, %s886, %s883
        %s888 = sand.u32 %s887, 7
        %s889 = ssub.s32 0, %s888
        %s890 = scalar_select %p885, %s889, %s888
        %v891 = vlaneseq
        %s892 = smul.u32 %s890, 128
        %v893 = vstv %s892
        %v894 = vadd.s32 %v893, 33
        %vm895 = vcmp.eq.s32.totalorder %v891, %v894
        %s896 = smul.addr %s884, 8
        %s897 = scalar_lea.vmem [#allocation15], %s896
        %898 = vst.msk [vmem:[%s897] sm:$0xff] %vm895, 2147483648
        %s899 = smul.addr %s884, 8
        %s900 = scalar_lea.vmem [#allocation16], %s899
        %901 = vst.msk [vmem:[%s900] sm:$0xff] %vm895, 2147483647
        %902 = xla_tuple %898, %901
        %v903 = vrot.slane %v882, 1
        %s904 = vtos %v903
        %s905 = sshrl.u32 %s904, 3
        %p906 = scmp.lt.s32.totalorder %s904, 0
        %s907 = ssub.s32 0, %s904
        %s908 = scalar_select %p906, %s907, %s904
        %s909 = sand.u32 %s908, 7
        %s910 = ssub.s32 0, %s909
        %s911 = scalar_select %p906, %s910, %s909
        %v912 = vlaneseq
        %s913 = smul.u32 %s911, 128
        %v914 = vstv %s913
        %v915 = vadd.s32 %v914, 34
        %vm916 = vcmp.eq.s32.totalorder %v912, %v915
        %s917 = smul.addr %s905, 8
        %s918 = scalar_lea.vmem [#allocation15], %s917
        %919 = vst.msk [vmem:[%s918] sm:$0xff] %vm916, 2147483648
        %s920 = smul.addr %s905, 8
        %s921 = scalar_lea.vmem [#allocation16], %s920
        %922 = vst.msk [vmem:[%s921] sm:$0xff] %vm916, 2147483647
        %923 = xla_tuple %919, %922
        %v924 = vrot.slane %v903, 1
        %s925 = vtos %v924
        %s926 = sshrl.u32 %s925, 3
        %p927 = scmp.lt.s32.totalorder %s925, 0
        %s928 = ssub.s32 0, %s925
        %s929 = scalar_select %p927, %s928, %s925
        %s930 = sand.u32 %s929, 7
        %s931 = ssub.s32 0, %s930
        %s932 = scalar_select %p927, %s931, %s930
        %v933 = vlaneseq
        %s934 = smul.u32 %s932, 128
        %v935 = vstv %s934
        %v936 = vadd.s32 %v935, 35
        %vm937 = vcmp.eq.s32.totalorder %v933, %v936
        %s938 = smul.addr %s926, 8
        %s939 = scalar_lea.vmem [#allocation15], %s938
        %940 = vst.msk [vmem:[%s939] sm:$0xff] %vm937, 2147483648
        %s941 = smul.addr %s926, 8
        %s942 = scalar_lea.vmem [#allocation16], %s941
        %943 = vst.msk [vmem:[%s942] sm:$0xff] %vm937, 2147483647
        %944 = xla_tuple %940, %943
        %v945 = vrot.slane %v924, 1
        %s946 = vtos %v945
        %s947 = sshrl.u32 %s946, 3
        %p948 = scmp.lt.s32.totalorder %s946, 0
        %s949 = ssub.s32 0, %s946
        %s950 = scalar_select %p948, %s949, %s946
        %s951 = sand.u32 %s950, 7
        %s952 = ssub.s32 0, %s951
        %s953 = scalar_select %p948, %s952, %s951
        %v954 = vlaneseq
        %s955 = smul.u32 %s953, 128
        %v956 = vstv %s955
        %v957 = vadd.s32 %v956, 36
        %vm958 = vcmp.eq.s32.totalorder %v954, %v957
        %s959 = smul.addr %s947, 8
        %s960 = scalar_lea.vmem [#allocation15], %s959
        %961 = vst.msk [vmem:[%s960] sm:$0xff] %vm958, 2147483648
        %s962 = smul.addr %s947, 8
        %s963 = scalar_lea.vmem [#allocation16], %s962
        %964 = vst.msk [vmem:[%s963] sm:$0xff] %vm958, 2147483647
        %965 = xla_tuple %961, %964
        %v966 = vrot.slane %v945, 1
        %s967 = vtos %v966
        %s968 = sshrl.u32 %s967, 3
        %p969 = scmp.lt.s32.totalorder %s967, 0
        %s970 = ssub.s32 0, %s967
        %s971 = scalar_select %p969, %s970, %s967
        %s972 = sand.u32 %s971, 7
        %s973 = ssub.s32 0, %s972
        %s974 = scalar_select %p969, %s973, %s972
        %v975 = vlaneseq
        %s976 = smul.u32 %s974, 128
        %v977 = vstv %s976
        %v978 = vadd.s32 %v977, 37
        %vm979 = vcmp.eq.s32.totalorder %v975, %v978
        %s980 = smul.addr %s968, 8
        %s981 = scalar_lea.vmem [#allocation15], %s980
        %982 = vst.msk [vmem:[%s981] sm:$0xff] %vm979, 2147483648
        %s983 = smul.addr %s968, 8
        %s984 = scalar_lea.vmem [#allocation16], %s983
        %985 = vst.msk [vmem:[%s984] sm:$0xff] %vm979, 2147483647
        %986 = xla_tuple %982, %985
        %v987 = vrot.slane %v966, 1
        %s988 = vtos %v987
        %s989 = sshrl.u32 %s988, 3
        %p990 = scmp.lt.s32.totalorder %s988, 0
        %s991 = ssub.s32 0, %s988
        %s992 = scalar_select %p990, %s991, %s988
        %s993 = sand.u32 %s992, 7
        %s994 = ssub.s32 0, %s993
        %s995 = scalar_select %p990, %s994, %s993
        %v996 = vlaneseq
        %s997 = smul.u32 %s995, 128
        %v998 = vstv %s997
        %v999 = vadd.s32 %v998, 38
        %vm1000 = vcmp.eq.s32.totalorder %v996, %v999
        %s1001 = smul.addr %s989, 8
        %s1002 = scalar_lea.vmem [#allocation15], %s1001
        %1003 = vst.msk [vmem:[%s1002] sm:$0xff] %vm1000, 2147483648
        %s1004 = smul.addr %s989, 8
        %s1005 = scalar_lea.vmem [#allocation16], %s1004
        %1006 = vst.msk [vmem:[%s1005] sm:$0xff] %vm1000, 2147483647
        %1007 = xla_tuple %1003, %1006
        %v1008 = vrot.slane %v987, 1
        %s1009 = vtos %v1008
        %s1010 = sshrl.u32 %s1009, 3
        %p1011 = scmp.lt.s32.totalorder %s1009, 0
        %s1012 = ssub.s32 0, %s1009
        %s1013 = scalar_select %p1011, %s1012, %s1009
        %s1014 = sand.u32 %s1013, 7
        %s1015 = ssub.s32 0, %s1014
        %s1016 = scalar_select %p1011, %s1015, %s1014
        %v1017 = vlaneseq
        %s1018 = smul.u32 %s1016, 128
        %v1019 = vstv %s1018
        %v1020 = vadd.s32 %v1019, 39
        %vm1021 = vcmp.eq.s32.totalorder %v1017, %v1020
        %s1022 = smul.addr %s1010, 8
        %s1023 = scalar_lea.vmem [#allocation15], %s1022
        %1024 = vst.msk [vmem:[%s1023] sm:$0xff] %vm1021, 2147483648
        %s1025 = smul.addr %s1010, 8
        %s1026 = scalar_lea.vmem [#allocation16], %s1025
        %1027 = vst.msk [vmem:[%s1026] sm:$0xff] %vm1021, 2147483647
        %1028 = xla_tuple %1024, %1027
        %v1029 = vrot.slane %v1008, 1
        %s1030 = vtos %v179
        %s1031 = sshrl.u32 %s1030, 3
        %p1032 = scmp.lt.s32.totalorder %s1030, 0
        %s1033 = ssub.s32 0, %s1030
        %s1034 = scalar_select %p1032, %s1033, %s1030
        %s1035 = sand.u32 %s1034, 7
        %s1036 = ssub.s32 0, %s1035
        %s1037 = scalar_select %p1032, %s1036, %s1035
        %v1038 = vlaneseq
        %s1039 = smul.u32 %s1037, 128
        %v1040 = vstv %s1039
        %v1041 = vadd.s32 %v1040, 40
        %vm1042 = vcmp.eq.s32.totalorder %v1038, %v1041
        %s1043 = smul.addr %s1031, 8
        %s1044 = scalar_lea.vmem [#allocation15], %s1043
        %1045 = vst.msk [vmem:[%s1044] sm:$0xff] %vm1042, 2147483648
        %s1046 = smul.addr %s1031, 8
        %s1047 = scalar_lea.vmem [#allocation16], %s1046
        %1048 = vst.msk [vmem:[%s1047] sm:$0xff] %vm1042, 2147483647
        %1049 = xla_tuple %1045, %1048
        %v1050 = vrot.slane %v179, 1
        %s1051 = vtos %v1050
        %s1052 = sshrl.u32 %s1051, 3
        %p1053 = scmp.lt.s32.totalorder %s1051, 0
        %s1054 = ssub.s32 0, %s1051
        %s1055 = scalar_select %p1053, %s1054, %s1051
        %s1056 = sand.u32 %s1055, 7
        %s1057 = ssub.s32 0, %s1056
        %s1058 = scalar_select %p1053, %s1057, %s1056
        %v1059 = vlaneseq
        %s1060 = smul.u32 %s1058, 128
        %v1061 = vstv %s1060
        %v1062 = vadd.s32 %v1061, 41
        %vm1063 = vcmp.eq.s32.totalorder %v1059, %v1062
        %s1064 = smul.addr %s1052, 8
        %s1065 = scalar_lea.vmem [#allocation15], %s1064
        %1066 = vst.msk [vmem:[%s1065] sm:$0xff] %vm1063, 2147483648
        %s1067 = smul.addr %s1052, 8
        %s1068 = scalar_lea.vmem [#allocation16], %s1067
        %1069 = vst.msk [vmem:[%s1068] sm:$0xff] %vm1063, 2147483647
        %1070 = xla_tuple %1066, %1069
        %v1071 = vrot.slane %v1050, 1
        %s1072 = vtos %v1071
        %s1073 = sshrl.u32 %s1072, 3
        %p1074 = scmp.lt.s32.totalorder %s1072, 0
        %s1075 = ssub.s32 0, %s1072
        %s1076 = scalar_select %p1074, %s1075, %s1072
        %s1077 = sand.u32 %s1076, 7
        %s1078 = ssub.s32 0, %s1077
        %s1079 = scalar_select %p1074, %s1078, %s1077
        %v1080 = vlaneseq
        %s1081 = smul.u32 %s1079, 128
        %v1082 = vstv %s1081
        %v1083 = vadd.s32 %v1082, 42
        %vm1084 = vcmp.eq.s32.totalorder %v1080, %v1083
        %s1085 = smul.addr %s1073, 8
        %s1086 = scalar_lea.vmem [#allocation15], %s1085
        %1087 = vst.msk [vmem:[%s1086] sm:$0xff] %vm1084, 2147483648
        %s1088 = smul.addr %s1073, 8
        %s1089 = scalar_lea.vmem [#allocation16], %s1088
        %1090 = vst.msk [vmem:[%s1089] sm:$0xff] %vm1084, 2147483647
        %1091 = xla_tuple %1087, %1090
        %v1092 = vrot.slane %v1071, 1
        %s1093 = vtos %v1092
        %s1094 = sshrl.u32 %s1093, 3
        %p1095 = scmp.lt.s32.totalorder %s1093, 0
        %s1096 = ssub.s32 0, %s1093
        %s1097 = scalar_select %p1095, %s1096, %s1093
        %s1098 = sand.u32 %s1097, 7
        %s1099 = ssub.s32 0, %s1098
        %s1100 = scalar_select %p1095, %s1099, %s1098
        %v1101 = vlaneseq
        %s1102 = smul.u32 %s1100, 128
        %v1103 = vstv %s1102
        %v1104 = vadd.s32 %v1103, 43
        %vm1105 = vcmp.eq.s32.totalorder %v1101, %v1104
        %s1106 = smul.addr %s1094, 8
        %s1107 = scalar_lea.vmem [#allocation15], %s1106
        %1108 = vst.msk [vmem:[%s1107] sm:$0xff] %vm1105, 2147483648
        %s1109 = smul.addr %s1094, 8
        %s1110 = scalar_lea.vmem [#allocation16], %s1109
        %1111 = vst.msk [vmem:[%s1110] sm:$0xff] %vm1105, 2147483647
        %1112 = xla_tuple %1108, %1111
        %v1113 = vrot.slane %v1092, 1
        %s1114 = vtos %v1113
        %s1115 = sshrl.u32 %s1114, 3
        %p1116 = scmp.lt.s32.totalorder %s1114, 0
        %s1117 = ssub.s32 0, %s1114
        %s1118 = scalar_select %p1116, %s1117, %s1114
        %s1119 = sand.u32 %s1118, 7
        %s1120 = ssub.s32 0, %s1119
        %s1121 = scalar_select %p1116, %s1120, %s1119
        %v1122 = vlaneseq
        %s1123 = smul.u32 %s1121, 128
        %v1124 = vstv %s1123
        %v1125 = vadd.s32 %v1124, 44
        %vm1126 = vcmp.eq.s32.totalorder %v1122, %v1125
        %s1127 = smul.addr %s1115, 8
        %s1128 = scalar_lea.vmem [#allocation15], %s1127
        %1129 = vst.msk [vmem:[%s1128] sm:$0xff] %vm1126, 2147483648
        %s1130 = smul.addr %s1115, 8
        %s1131 = scalar_lea.vmem [#allocation16], %s1130
        %1132 = vst.msk [vmem:[%s1131] sm:$0xff] %vm1126, 2147483647
        %1133 = xla_tuple %1129, %1132
        %v1134 = vrot.slane %v1113, 1
        %s1135 = vtos %v1134
        %s1136 = sshrl.u32 %s1135, 3
        %p1137 = scmp.lt.s32.totalorder %s1135, 0
        %s1138 = ssub.s32 0, %s1135
        %s1139 = scalar_select %p1137, %s1138, %s1135
        %s1140 = sand.u32 %s1139, 7
        %s1141 = ssub.s32 0, %s1140
        %s1142 = scalar_select %p1137, %s1141, %s1140
        %v1143 = vlaneseq
        %s1144 = smul.u32 %s1142, 128
        %v1145 = vstv %s1144
        %v1146 = vadd.s32 %v1145, 45
        %vm1147 = vcmp.eq.s32.totalorder %v1143, %v1146
        %s1148 = smul.addr %s1136, 8
        %s1149 = scalar_lea.vmem [#allocation15], %s1148
        %1150 = vst.msk [vmem:[%s1149] sm:$0xff] %vm1147, 2147483648
        %s1151 = smul.addr %s1136, 8
        %s1152 = scalar_lea.vmem [#allocation16], %s1151
        %1153 = vst.msk [vmem:[%s1152] sm:$0xff] %vm1147, 2147483647
        %1154 = xla_tuple %1150, %1153
        %v1155 = vrot.slane %v1134, 1
        %s1156 = vtos %v1155
        %s1157 = sshrl.u32 %s1156, 3
        %p1158 = scmp.lt.s32.totalorder %s1156, 0
        %s1159 = ssub.s32 0, %s1156
        %s1160 = scalar_select %p1158, %s1159, %s1156
        %s1161 = sand.u32 %s1160, 7
        %s1162 = ssub.s32 0, %s1161
        %s1163 = scalar_select %p1158, %s1162, %s1161
        %v1164 = vlaneseq
        %s1165 = smul.u32 %s1163, 128
        %v1166 = vstv %s1165
        %v1167 = vadd.s32 %v1166, 46
        %vm1168 = vcmp.eq.s32.totalorder %v1164, %v1167
        %s1169 = smul.addr %s1157, 8
        %s1170 = scalar_lea.vmem [#allocation15], %s1169
        %1171 = vst.msk [vmem:[%s1170] sm:$0xff] %vm1168, 2147483648
        %s1172 = smul.addr %s1157, 8
        %s1173 = scalar_lea.vmem [#allocation16], %s1172
        %1174 = vst.msk [vmem:[%s1173] sm:$0xff] %vm1168, 2147483647
        %1175 = xla_tuple %1171, %1174
        %v1176 = vrot.slane %v1155, 1
        %s1177 = vtos %v1176
        %s1178 = sshrl.u32 %s1177, 3
        %p1179 = scmp.lt.s32.totalorder %s1177, 0
        %s1180 = ssub.s32 0, %s1177
        %s1181 = scalar_select %p1179, %s1180, %s1177
        %s1182 = sand.u32 %s1181, 7
        %s1183 = ssub.s32 0, %s1182
        %s1184 = scalar_select %p1179, %s1183, %s1182
        %v1185 = vlaneseq
        %s1186 = smul.u32 %s1184, 128
        %v1187 = vstv %s1186
        %v1188 = vadd.s32 %v1187, 47
        %vm1189 = vcmp.eq.s32.totalorder %v1185, %v1188
        %s1190 = smul.addr %s1178, 8
        %s1191 = scalar_lea.vmem [#allocation15], %s1190
        %1192 = vst.msk [vmem:[%s1191] sm:$0xff] %vm1189, 2147483648
        %s1193 = smul.addr %s1178, 8
        %s1194 = scalar_lea.vmem [#allocation16], %s1193
        %1195 = vst.msk [vmem:[%s1194] sm:$0xff] %vm1189, 2147483647
        %1196 = xla_tuple %1192, %1195
        %v1197 = vrot.slane %v1176, 1
        %s1198 = vtos %v180
        %s1199 = sshrl.u32 %s1198, 3
        %p1200 = scmp.lt.s32.totalorder %s1198, 0
        %s1201 = ssub.s32 0, %s1198
        %s1202 = scalar_select %p1200, %s1201, %s1198
        %s1203 = sand.u32 %s1202, 7
        %s1204 = ssub.s32 0, %s1203
        %s1205 = scalar_select %p1200, %s1204, %s1203
        %v1206 = vlaneseq
        %s1207 = smul.u32 %s1205, 128
        %v1208 = vstv %s1207
        %v1209 = vadd.s32 %v1208, 48
        %vm1210 = vcmp.eq.s32.totalorder %v1206, %v1209
        %s1211 = smul.addr %s1199, 8
        %s1212 = scalar_lea.vmem [#allocation15], %s1211
        %1213 = vst.msk [vmem:[%s1212] sm:$0xff] %vm1210, 2147483648
        %s1214 = smul.addr %s1199, 8
        %s1215 = scalar_lea.vmem [#allocation16], %s1214
        %1216 = vst.msk [vmem:[%s1215] sm:$0xff] %vm1210, 2147483647
        %1217 = xla_tuple %1213, %1216
        %v1218 = vrot.slane %v180, 1
        %s1219 = vtos %v1218
        %s1220 = sshrl.u32 %s1219, 3
        %p1221 = scmp.lt.s32.totalorder %s1219, 0
        %s1222 = ssub.s32 0, %s1219
        %s1223 = scalar_select %p1221, %s1222, %s1219
        %s1224 = sand.u32 %s1223, 7
        %s1225 = ssub.s32 0, %s1224
        %s1226 = scalar_select %p1221, %s1225, %s1224
        %v1227 = vlaneseq
        %s1228 = smul.u32 %s1226, 128
        %v1229 = vstv %s1228
        %v1230 = vadd.s32 %v1229, 49
        %vm1231 = vcmp.eq.s32.totalorder %v1227, %v1230
        %s1232 = smul.addr %s1220, 8
        %s1233 = scalar_lea.vmem [#allocation15], %s1232
        %1234 = vst.msk [vmem:[%s1233] sm:$0xff] %vm1231, 2147483648
        %s1235 = smul.addr %s1220, 8
        %s1236 = scalar_lea.vmem [#allocation16], %s1235
        %1237 = vst.msk [vmem:[%s1236] sm:$0xff] %vm1231, 2147483647
        %1238 = xla_tuple %1234, %1237
        %v1239 = vrot.slane %v1218, 1
        %s1240 = vtos %v1239
        %s1241 = sshrl.u32 %s1240, 3
        %p1242 = scmp.lt.s32.totalorder %s1240, 0
        %s1243 = ssub.s32 0, %s1240
        %s1244 = scalar_select %p1242, %s1243, %s1240
        %s1245 = sand.u32 %s1244, 7
        %s1246 = ssub.s32 0, %s1245
        %s1247 = scalar_select %p1242, %s1246, %s1245
        %v1248 = vlaneseq
        %s1249 = smul.u32 %s1247, 128
        %v1250 = vstv %s1249
        %v1251 = vadd.s32 %v1250, 50
        %vm1252 = vcmp.eq.s32.totalorder %v1248, %v1251
        %s1253 = smul.addr %s1241, 8
        %s1254 = scalar_lea.vmem [#allocation15], %s1253
        %1255 = vst.msk [vmem:[%s1254] sm:$0xff] %vm1252, 2147483648
        %s1256 = smul.addr %s1241, 8
        %s1257 = scalar_lea.vmem [#allocation16], %s1256
        %1258 = vst.msk [vmem:[%s1257] sm:$0xff] %vm1252, 2147483647
        %1259 = xla_tuple %1255, %1258
        %v1260 = vrot.slane %v1239, 1
        %s1261 = vtos %v1260
        %s1262 = sshrl.u32 %s1261, 3
        %p1263 = scmp.lt.s32.totalorder %s1261, 0
        %s1264 = ssub.s32 0, %s1261
        %s1265 = scalar_select %p1263, %s1264, %s1261
        %s1266 = sand.u32 %s1265, 7
        %s1267 = ssub.s32 0, %s1266
        %s1268 = scalar_select %p1263, %s1267, %s1266
        %v1269 = vlaneseq
        %s1270 = smul.u32 %s1268, 128
        %v1271 = vstv %s1270
        %v1272 = vadd.s32 %v1271, 51
        %vm1273 = vcmp.eq.s32.totalorder %v1269, %v1272
        %s1274 = smul.addr %s1262, 8
        %s1275 = scalar_lea.vmem [#allocation15], %s1274
        %1276 = vst.msk [vmem:[%s1275] sm:$0xff] %vm1273, 2147483648
        %s1277 = smul.addr %s1262, 8
        %s1278 = scalar_lea.vmem [#allocation16], %s1277
        %1279 = vst.msk [vmem:[%s1278] sm:$0xff] %vm1273, 2147483647
        %1280 = xla_tuple %1276, %1279
        %v1281 = vrot.slane %v1260, 1
        %s1282 = vtos %v1281
        %s1283 = sshrl.u32 %s1282, 3
        %p1284 = scmp.lt.s32.totalorder %s1282, 0
        %s1285 = ssub.s32 0, %s1282
        %s1286 = scalar_select %p1284, %s1285, %s1282
        %s1287 = sand.u32 %s1286, 7
        %s1288 = ssub.s32 0, %s1287
        %s1289 = scalar_select %p1284, %s1288, %s1287
        %v1290 = vlaneseq
        %s1291 = smul.u32 %s1289, 128
        %v1292 = vstv %s1291
        %v1293 = vadd.s32 %v1292, 52
        %vm1294 = vcmp.eq.s32.totalorder %v1290, %v1293
        %s1295 = smul.addr %s1283, 8
        %s1296 = scalar_lea.vmem [#allocation15], %s1295
        %1297 = vst.msk [vmem:[%s1296] sm:$0xff] %vm1294, 2147483648
        %s1298 = smul.addr %s1283, 8
        %s1299 = scalar_lea.vmem [#allocation16], %s1298
        %1300 = vst.msk [vmem:[%s1299] sm:$0xff] %vm1294, 2147483647
        %1301 = xla_tuple %1297, %1300
        %v1302 = vrot.slane %v1281, 1
        %s1303 = vtos %v1302
        %s1304 = sshrl.u32 %s1303, 3
        %p1305 = scmp.lt.s32.totalorder %s1303, 0
        %s1306 = ssub.s32 0, %s1303
        %s1307 = scalar_select %p1305, %s1306, %s1303
        %s1308 = sand.u32 %s1307, 7
        %s1309 = ssub.s32 0, %s1308
        %s1310 = scalar_select %p1305, %s1309, %s1308
        %v1311 = vlaneseq
        %s1312 = smul.u32 %s1310, 128
        %v1313 = vstv %s1312
        %v1314 = vadd.s32 %v1313, 53
        %vm1315 = vcmp.eq.s32.totalorder %v1311, %v1314
        %s1316 = smul.addr %s1304, 8
        %s1317 = scalar_lea.vmem [#allocation15], %s1316
        %1318 = vst.msk [vmem:[%s1317] sm:$0xff] %vm1315, 2147483648
        %s1319 = smul.addr %s1304, 8
        %s1320 = scalar_lea.vmem [#allocation16], %s1319
        %1321 = vst.msk [vmem:[%s1320] sm:$0xff] %vm1315, 2147483647
        %1322 = xla_tuple %1318, %1321
        %v1323 = vrot.slane %v1302, 1
        %s1324 = vtos %v1323
        %s1325 = sshrl.u32 %s1324, 3
        %p1326 = scmp.lt.s32.totalorder %s1324, 0
        %s1327 = ssub.s32 0, %s1324
        %s1328 = scalar_select %p1326, %s1327, %s1324
        %s1329 = sand.u32 %s1328, 7
        %s1330 = ssub.s32 0, %s1329
        %s1331 = scalar_select %p1326, %s1330, %s1329
        %v1332 = vlaneseq
        %s1333 = smul.u32 %s1331, 128
        %v1334 = vstv %s1333
        %v1335 = vadd.s32 %v1334, 54
        %vm1336 = vcmp.eq.s32.totalorder %v1332, %v1335
        %s1337 = smul.addr %s1325, 8
        %s1338 = scalar_lea.vmem [#allocation15], %s1337
        %1339 = vst.msk [vmem:[%s1338] sm:$0xff] %vm1336, 2147483648
        %s1340 = smul.addr %s1325, 8
        %s1341 = scalar_lea.vmem [#allocation16], %s1340
        %1342 = vst.msk [vmem:[%s1341] sm:$0xff] %vm1336, 2147483647
        %1343 = xla_tuple %1339, %1342
        %v1344 = vrot.slane %v1323, 1
        %s1345 = vtos %v1344
        %s1346 = sshrl.u32 %s1345, 3
        %p1347 = scmp.lt.s32.totalorder %s1345, 0
        %s1348 = ssub.s32 0, %s1345
        %s1349 = scalar_select %p1347, %s1348, %s1345
        %s1350 = sand.u32 %s1349, 7
        %s1351 = ssub.s32 0, %s1350
        %s1352 = scalar_select %p1347, %s1351, %s1350
        %v1353 = vlaneseq
        %s1354 = smul.u32 %s1352, 128
        %v1355 = vstv %s1354
        %v1356 = vadd.s32 %v1355, 55
        %vm1357 = vcmp.eq.s32.totalorder %v1353, %v1356
        %s1358 = smul.addr %s1346, 8
        %s1359 = scalar_lea.vmem [#allocation15], %s1358
        %1360 = vst.msk [vmem:[%s1359] sm:$0xff] %vm1357, 2147483648
        %s1361 = smul.addr %s1346, 8
        %s1362 = scalar_lea.vmem [#allocation16], %s1361
        %1363 = vst.msk [vmem:[%s1362] sm:$0xff] %vm1357, 2147483647
        %1364 = xla_tuple %1360, %1363
        %v1365 = vrot.slane %v1344, 1
        %s1366 = vtos %v181
        %s1367 = sshrl.u32 %s1366, 3
        %p1368 = scmp.lt.s32.totalorder %s1366, 0
        %s1369 = ssub.s32 0, %s1366
        %s1370 = scalar_select %p1368, %s1369, %s1366
        %s1371 = sand.u32 %s1370, 7
        %s1372 = ssub.s32 0, %s1371
        %s1373 = scalar_select %p1368, %s1372, %s1371
        %v1374 = vlaneseq
        %s1375 = smul.u32 %s1373, 128
        %v1376 = vstv %s1375
        %v1377 = vadd.s32 %v1376, 56
        %vm1378 = vcmp.eq.s32.totalorder %v1374, %v1377
        %s1379 = smul.addr %s1367, 8
        %s1380 = scalar_lea.vmem [#allocation15], %s1379
        %1381 = vst.msk [vmem:[%s1380] sm:$0xff] %vm1378, 2147483648
        %s1382 = smul.addr %s1367, 8
        %s1383 = scalar_lea.vmem [#allocation16], %s1382
        %1384 = vst.msk [vmem:[%s1383] sm:$0xff] %vm1378, 2147483647
        %1385 = xla_tuple %1381, %1384
        %v1386 = vrot.slane %v181, 1
        %s1387 = vtos %v1386
        %s1388 = sshrl.u32 %s1387, 3
        %p1389 = scmp.lt.s32.totalorder %s1387, 0
        %s1390 = ssub.s32 0, %s1387
        %s1391 = scalar_select %p1389, %s1390, %s1387
        %s1392 = sand.u32 %s1391, 7
        %s1393 = ssub.s32 0, %s1392
        %s1394 = scalar_select %p1389, %s1393, %s1392
        %v1395 = vlaneseq
        %s1396 = smul.u32 %s1394, 128
        %v1397 = vstv %s1396
        %v1398 = vadd.s32 %v1397, 57
        %vm1399 = vcmp.eq.s32.totalorder %v1395, %v1398
        %s1400 = smul.addr %s1388, 8
        %s1401 = scalar_lea.vmem [#allocation15], %s1400
        %1402 = vst.msk [vmem:[%s1401] sm:$0xff] %vm1399, 2147483648
        %s1403 = smul.addr %s1388, 8
        %s1404 = scalar_lea.vmem [#allocation16], %s1403
        %1405 = vst.msk [vmem:[%s1404] sm:$0xff] %vm1399, 2147483647
        %1406 = xla_tuple %1402, %1405
        %v1407 = vrot.slane %v1386, 1
        %s1408 = vtos %v1407
        %s1409 = sshrl.u32 %s1408, 3
        %p1410 = scmp.lt.s32.totalorder %s1408, 0
        %s1411 = ssub.s32 0, %s1408
        %s1412 = scalar_select %p1410, %s1411, %s1408
        %s1413 = sand.u32 %s1412, 7
        %s1414 = ssub.s32 0, %s1413
        %s1415 = scalar_select %p1410, %s1414, %s1413
        %v1416 = vlaneseq
        %s1417 = smul.u32 %s1415, 128
        %v1418 = vstv %s1417
        %v1419 = vadd.s32 %v1418, 58
        %vm1420 = vcmp.eq.s32.totalorder %v1416, %v1419
        %s1421 = smul.addr %s1409, 8
        %s1422 = scalar_lea.vmem [#allocation15], %s1421
        %1423 = vst.msk [vmem:[%s1422] sm:$0xff] %vm1420, 2147483648
        %s1424 = smul.addr %s1409, 8
        %s1425 = scalar_lea.vmem [#allocation16], %s1424
        %1426 = vst.msk [vmem:[%s1425] sm:$0xff] %vm1420, 2147483647
        %1427 = xla_tuple %1423, %1426
        %v1428 = vrot.slane %v1407, 1
        %s1429 = vtos %v1428
        %s1430 = sshrl.u32 %s1429, 3
        %p1431 = scmp.lt.s32.totalorder %s1429, 0
        %s1432 = ssub.s32 0, %s1429
        %s1433 = scalar_select %p1431, %s1432, %s1429
        %s1434 = sand.u32 %s1433, 7
        %s1435 = ssub.s32 0, %s1434
        %s1436 = scalar_select %p1431, %s1435, %s1434
        %v1437 = vlaneseq
        %s1438 = smul.u32 %s1436, 128
        %v1439 = vstv %s1438
        %v1440 = vadd.s32 %v1439, 59
        %vm1441 = vcmp.eq.s32.totalorder %v1437, %v1440
        %s1442 = smul.addr %s1430, 8
        %s1443 = scalar_lea.vmem [#allocation15], %s1442
        %1444 = vst.msk [vmem:[%s1443] sm:$0xff] %vm1441, 2147483648
        %s1445 = smul.addr %s1430, 8
        %s1446 = scalar_lea.vmem [#allocation16], %s1445
        %1447 = vst.msk [vmem:[%s1446] sm:$0xff] %vm1441, 2147483647
        %1448 = xla_tuple %1444, %1447
        %v1449 = vrot.slane %v1428, 1
        %s1450 = vtos %v1449
        %s1451 = sshrl.u32 %s1450, 3
        %p1452 = scmp.lt.s32.totalorder %s1450, 0
        %s1453 = ssub.s32 0, %s1450
        %s1454 = scalar_select %p1452, %s1453, %s1450
        %s1455 = sand.u32 %s1454, 7
        %s1456 = ssub.s32 0, %s1455
        %s1457 = scalar_select %p1452, %s1456, %s1455
        %v1458 = vlaneseq
        %s1459 = smul.u32 %s1457, 128
        %v1460 = vstv %s1459
        %v1461 = vadd.s32 %v1460, 60
        %vm1462 = vcmp.eq.s32.totalorder %v1458, %v1461
        %s1463 = smul.addr %s1451, 8
        %s1464 = scalar_lea.vmem [#allocation15], %s1463
        %1465 = vst.msk [vmem:[%s1464] sm:$0xff] %vm1462, 2147483648
        %s1466 = smul.addr %s1451, 8
        %s1467 = scalar_lea.vmem [#allocation16], %s1466
        %1468 = vst.msk [vmem:[%s1467] sm:$0xff] %vm1462, 2147483647
        %1469 = xla_tuple %1465, %1468
        %v1470 = vrot.slane %v1449, 1
        %s1471 = vtos %v1470
        %s1472 = sshrl.u32 %s1471, 3
        %p1473 = scmp.lt.s32.totalorder %s1471, 0
        %s1474 = ssub.s32 0, %s1471
        %s1475 = scalar_select %p1473, %s1474, %s1471
        %s1476 = sand.u32 %s1475, 7
        %s1477 = ssub.s32 0, %s1476
        %s1478 = scalar_select %p1473, %s1477, %s1476
        %v1479 = vlaneseq
        %s1480 = smul.u32 %s1478, 128
        %v1481 = vstv %s1480
        %v1482 = vadd.s32 %v1481, 61
        %vm1483 = vcmp.eq.s32.totalorder %v1479, %v1482
        %s1484 = smul.addr %s1472, 8
        %s1485 = scalar_lea.vmem [#allocation15], %s1484
        %1486 = vst.msk [vmem:[%s1485] sm:$0xff] %vm1483, 2147483648
        %s1487 = smul.addr %s1472, 8
        %s1488 = scalar_lea.vmem [#allocation16], %s1487
        %1489 = vst.msk [vmem:[%s1488] sm:$0xff] %vm1483, 2147483647
        %1490 = xla_tuple %1486, %1489
        %v1491 = vrot.slane %v1470, 1
        %s1492 = vtos %v1491
        %s1493 = sshrl.u32 %s1492, 3
        %p1494 = scmp.lt.s32.totalorder %s1492, 0
        %s1495 = ssub.s32 0, %s1492
        %s1496 = scalar_select %p1494, %s1495, %s1492
        %s1497 = sand.u32 %s1496, 7
        %s1498 = ssub.s32 0, %s1497
        %s1499 = scalar_select %p1494, %s1498, %s1497
        %v1500 = vlaneseq
        %s1501 = smul.u32 %s1499, 128
        %v1502 = vstv %s1501
        %v1503 = vadd.s32 %v1502, 62
        %vm1504 = vcmp.eq.s32.totalorder %v1500, %v1503
        %s1505 = smul.addr %s1493, 8
        %s1506 = scalar_lea.vmem [#allocation15], %s1505
        %1507 = vst.msk [vmem:[%s1506] sm:$0xff] %vm1504, 2147483648
        %s1508 = smul.addr %s1493, 8
        %s1509 = scalar_lea.vmem [#allocation16], %s1508
        %1510 = vst.msk [vmem:[%s1509] sm:$0xff] %vm1504, 2147483647
        %1511 = xla_tuple %1507, %1510
        %v1512 = vrot.slane %v1491, 1
        %s1513 = vtos %v1512
        %s1514 = sshrl.u32 %s1513, 3
        %p1515 = scmp.lt.s32.totalorder %s1513, 0
        %s1516 = ssub.s32 0, %s1513
        %s1517 = scalar_select %p1515, %s1516, %s1513
        %s1518 = sand.u32 %s1517, 7
        %s1519 = ssub.s32 0, %s1518
        %s1520 = scalar_select %p1515, %s1519, %s1518
        %v1521 = vlaneseq
        %s1522 = smul.u32 %s1520, 128
        %v1523 = vstv %s1522
        %v1524 = vadd.s32 %v1523, 63
        %vm1525 = vcmp.eq.s32.totalorder %v1521, %v1524
        %s1526 = smul.addr %s1514, 8
        %s1527 = scalar_lea.vmem [#allocation15], %s1526
        %1528 = vst.msk [vmem:[%s1527] sm:$0xff] %vm1525, 2147483648
        %s1529 = smul.addr %s1514, 8
        %s1530 = scalar_lea.vmem [#allocation16], %s1529
        %1531 = vst.msk [vmem:[%s1530] sm:$0xff] %vm1525, 2147483647
        %1532 = xla_tuple %1528, %1531
        %v1533 = vrot.slane %v1512, 1
        %s1534 = vtos %v182
        %s1535 = sshrl.u32 %s1534, 3
        %p1536 = scmp.lt.s32.totalorder %s1534, 0
        %s1537 = ssub.s32 0, %s1534
        %s1538 = scalar_select %p1536, %s1537, %s1534
        %s1539 = sand.u32 %s1538, 7
        %s1540 = ssub.s32 0, %s1539
        %s1541 = scalar_select %p1536, %s1540, %s1539
        %v1542 = vlaneseq
        %s1543 = smul.u32 %s1541, 128
        %v1544 = vstv %s1543
        %v1545 = vadd.s32 %v1544, 64
        %vm1546 = vcmp.eq.s32.totalorder %v1542, %v1545
        %s1547 = smul.addr %s1535, 8
        %s1548 = scalar_lea.vmem [#allocation15], %s1547
        %1549 = vst.msk [vmem:[%s1548] sm:$0xff] %vm1546, 2147483648
        %s1550 = smul.addr %s1535, 8
        %s1551 = scalar_lea.vmem [#allocation16], %s1550
        %1552 = vst.msk [vmem:[%s1551] sm:$0xff] %vm1546, 2147483647
        %1553 = xla_tuple %1549, %1552
        %v1554 = vrot.slane %v182, 1
        %s1555 = vtos %v1554
        %s1556 = sshrl.u32 %s1555, 3
        %p1557 = scmp.lt.s32.totalorder %s1555, 0
        %s1558 = ssub.s32 0, %s1555
        %s1559 = scalar_select %p1557, %s1558, %s1555
        %s1560 = sand.u32 %s1559, 7
        %s1561 = ssub.s32 0, %s1560
        %s1562 = scalar_select %p1557, %s1561, %s1560
        %v1563 = vlaneseq
        %s1564 = smul.u32 %s1562, 128
        %v1565 = vstv %s1564
        %v1566 = vadd.s32 %v1565, 65
        %vm1567 = vcmp.eq.s32.totalorder %v1563, %v1566
        %s1568 = smul.addr %s1556, 8
        %s1569 = scalar_lea.vmem [#allocation15], %s1568
        %1570 = vst.msk [vmem:[%s1569] sm:$0xff] %vm1567, 2147483648
        %s1571 = smul.addr %s1556, 8
        %s1572 = scalar_lea.vmem [#allocation16], %s1571
        %1573 = vst.msk [vmem:[%s1572] sm:$0xff] %vm1567, 2147483647
        %1574 = xla_tuple %1570, %1573
        %v1575 = vrot.slane %v1554, 1
        %s1576 = vtos %v1575
        %s1577 = sshrl.u32 %s1576, 3
        %p1578 = scmp.lt.s32.totalorder %s1576, 0
        %s1579 = ssub.s32 0, %s1576
        %s1580 = scalar_select %p1578, %s1579, %s1576
        %s1581 = sand.u32 %s1580, 7
        %s1582 = ssub.s32 0, %s1581
        %s1583 = scalar_select %p1578, %s1582, %s1581
        %v1584 = vlaneseq
        %s1585 = smul.u32 %s1583, 128
        %v1586 = vstv %s1585
        %v1587 = vadd.s32 %v1586, 66
        %vm1588 = vcmp.eq.s32.totalorder %v1584, %v1587
        %s1589 = smul.addr %s1577, 8
        %s1590 = scalar_lea.vmem [#allocation15], %s1589
        %1591 = vst.msk [vmem:[%s1590] sm:$0xff] %vm1588, 2147483648
        %s1592 = smul.addr %s1577, 8
        %s1593 = scalar_lea.vmem [#allocation16], %s1592
        %1594 = vst.msk [vmem:[%s1593] sm:$0xff] %vm1588, 2147483647
        %1595 = xla_tuple %1591, %1594
        %v1596 = vrot.slane %v1575, 1
        %s1597 = vtos %v1596
        %s1598 = sshrl.u32 %s1597, 3
        %p1599 = scmp.lt.s32.totalorder %s1597, 0
        %s1600 = ssub.s32 0, %s1597
        %s1601 = scalar_select %p1599, %s1600, %s1597
        %s1602 = sand.u32 %s1601, 7
        %s1603 = ssub.s32 0, %s1602
        %s1604 = scalar_select %p1599, %s1603, %s1602
        %v1605 = vlaneseq
        %s1606 = smul.u32 %s1604, 128
        %v1607 = vstv %s1606
        %v1608 = vadd.s32 %v1607, 67
        %vm1609 = vcmp.eq.s32.totalorder %v1605, %v1608
        %s1610 = smul.addr %s1598, 8
        %s1611 = scalar_lea.vmem [#allocation15], %s1610
        %1612 = vst.msk [vmem:[%s1611] sm:$0xff] %vm1609, 2147483648
        %s1613 = smul.addr %s1598, 8
        %s1614 = scalar_lea.vmem [#allocation16], %s1613
        %1615 = vst.msk [vmem:[%s1614] sm:$0xff] %vm1609, 2147483647
        %1616 = xla_tuple %1612, %1615
        %v1617 = vrot.slane %v1596, 1
        %s1618 = vtos %v1617
        %s1619 = sshrl.u32 %s1618, 3
        %p1620 = scmp.lt.s32.totalorder %s1618, 0
        %s1621 = ssub.s32 0, %s1618
        %s1622 = scalar_select %p1620, %s1621, %s1618
        %s1623 = sand.u32 %s1622, 7
        %s1624 = ssub.s32 0, %s1623
        %s1625 = scalar_select %p1620, %s1624, %s1623
        %v1626 = vlaneseq
        %s1627 = smul.u32 %s1625, 128
        %v1628 = vstv %s1627
        %v1629 = vadd.s32 %v1628, 68
        %vm1630 = vcmp.eq.s32.totalorder %v1626, %v1629
        %s1631 = smul.addr %s1619, 8
        %s1632 = scalar_lea.vmem [#allocation15], %s1631
        %1633 = vst.msk [vmem:[%s1632] sm:$0xff] %vm1630, 2147483648
        %s1634 = smul.addr %s1619, 8
        %s1635 = scalar_lea.vmem [#allocation16], %s1634
        %1636 = vst.msk [vmem:[%s1635] sm:$0xff] %vm1630, 2147483647
        %1637 = xla_tuple %1633, %1636
        %v1638 = vrot.slane %v1617, 1
        %s1639 = vtos %v1638
        %s1640 = sshrl.u32 %s1639, 3
        %p1641 = scmp.lt.s32.totalorder %s1639, 0
        %s1642 = ssub.s32 0, %s1639
        %s1643 = scalar_select %p1641, %s1642, %s1639
        %s1644 = sand.u32 %s1643, 7
        %s1645 = ssub.s32 0, %s1644
        %s1646 = scalar_select %p1641, %s1645, %s1644
        %v1647 = vlaneseq
        %s1648 = smul.u32 %s1646, 128
        %v1649 = vstv %s1648
        %v1650 = vadd.s32 %v1649, 69
        %vm1651 = vcmp.eq.s32.totalorder %v1647, %v1650
        %s1652 = smul.addr %s1640, 8
        %s1653 = scalar_lea.vmem [#allocation15], %s1652
        %1654 = vst.msk [vmem:[%s1653] sm:$0xff] %vm1651, 2147483648
        %s1655 = smul.addr %s1640, 8
        %s1656 = scalar_lea.vmem [#allocation16], %s1655
        %1657 = vst.msk [vmem:[%s1656] sm:$0xff] %vm1651, 2147483647
        %1658 = xla_tuple %1654, %1657
        %v1659 = vrot.slane %v1638, 1
        %s1660 = vtos %v1659
        %s1661 = sshrl.u32 %s1660, 3
        %p1662 = scmp.lt.s32.totalorder %s1660, 0
        %s1663 = ssub.s32 0, %s1660
        %s1664 = scalar_select %p1662, %s1663, %s1660
        %s1665 = sand.u32 %s1664, 7
        %s1666 = ssub.s32 0, %s1665
        %s1667 = scalar_select %p1662, %s1666, %s1665
        %v1668 = vlaneseq
        %s1669 = smul.u32 %s1667, 128
        %v1670 = vstv %s1669
        %v1671 = vadd.s32 %v1670, 70
        %vm1672 = vcmp.eq.s32.totalorder %v1668, %v1671
        %s1673 = smul.addr %s1661, 8
        %s1674 = scalar_lea.vmem [#allocation15], %s1673
        %1675 = vst.msk [vmem:[%s1674] sm:$0xff] %vm1672, 2147483648
        %s1676 = smul.addr %s1661, 8
        %s1677 = scalar_lea.vmem [#allocation16], %s1676
        %1678 = vst.msk [vmem:[%s1677] sm:$0xff] %vm1672, 2147483647
        %1679 = xla_tuple %1675, %1678
        %v1680 = vrot.slane %v1659, 1
        %s1681 = vtos %v1680
        %s1682 = sshrl.u32 %s1681, 3
        %p1683 = scmp.lt.s32.totalorder %s1681, 0
        %s1684 = ssub.s32 0, %s1681
        %s1685 = scalar_select %p1683, %s1684, %s1681
        %s1686 = sand.u32 %s1685, 7
        %s1687 = ssub.s32 0, %s1686
        %s1688 = scalar_select %p1683, %s1687, %s1686
        %v1689 = vlaneseq
        %s1690 = smul.u32 %s1688, 128
        %v1691 = vstv %s1690
        %v1692 = vadd.s32 %v1691, 71
        %vm1693 = vcmp.eq.s32.totalorder %v1689, %v1692
        %s1694 = smul.addr %s1682, 8
        %s1695 = scalar_lea.vmem [#allocation15], %s1694
        %1696 = vst.msk [vmem:[%s1695] sm:$0xff] %vm1693, 2147483648
        %s1697 = smul.addr %s1682, 8
        %s1698 = scalar_lea.vmem [#allocation16], %s1697
        %1699 = vst.msk [vmem:[%s1698] sm:$0xff] %vm1693, 2147483647
        %1700 = xla_tuple %1696, %1699
        %v1701 = vrot.slane %v1680, 1
        %s1702 = vtos %v183
        %s1703 = sshrl.u32 %s1702, 3
        %p1704 = scmp.lt.s32.totalorder %s1702, 0
        %s1705 = ssub.s32 0, %s1702
        %s1706 = scalar_select %p1704, %s1705, %s1702
        %s1707 = sand.u32 %s1706, 7
        %s1708 = ssub.s32 0, %s1707
        %s1709 = scalar_select %p1704, %s1708, %s1707
        %v1710 = vlaneseq
        %s1711 = smul.u32 %s1709, 128
        %v1712 = vstv %s1711
        %v1713 = vadd.s32 %v1712, 72
        %vm1714 = vcmp.eq.s32.totalorder %v1710, %v1713
        %s1715 = smul.addr %s1703, 8
        %s1716 = scalar_lea.vmem [#allocation15], %s1715
        %1717 = vst.msk [vmem:[%s1716] sm:$0xff] %vm1714, 2147483648
        %s1718 = smul.addr %s1703, 8
        %s1719 = scalar_lea.vmem [#allocation16], %s1718
        %1720 = vst.msk [vmem:[%s1719] sm:$0xff] %vm1714, 2147483647
        %1721 = xla_tuple %1717, %1720
        %v1722 = vrot.slane %v183, 1
        %s1723 = vtos %v1722
        %s1724 = sshrl.u32 %s1723, 3
        %p1725 = scmp.lt.s32.totalorder %s1723, 0
        %s1726 = ssub.s32 0, %s1723
        %s1727 = scalar_select %p1725, %s1726, %s1723
        %s1728 = sand.u32 %s1727, 7
        %s1729 = ssub.s32 0, %s1728
        %s1730 = scalar_select %p1725, %s1729, %s1728
        %v1731 = vlaneseq
        %s1732 = smul.u32 %s1730, 128
        %v1733 = vstv %s1732
        %v1734 = vadd.s32 %v1733, 73
        %vm1735 = vcmp.eq.s32.totalorder %v1731, %v1734
        %s1736 = smul.addr %s1724, 8
        %s1737 = scalar_lea.vmem [#allocation15], %s1736
        %1738 = vst.msk [vmem:[%s1737] sm:$0xff] %vm1735, 2147483648
        %s1739 = smul.addr %s1724, 8
        %s1740 = scalar_lea.vmem [#allocation16], %s1739
        %1741 = vst.msk [vmem:[%s1740] sm:$0xff] %vm1735, 2147483647
        %1742 = xla_tuple %1738, %1741
        %v1743 = vrot.slane %v1722, 1
        %s1744 = vtos %v1743
        %s1745 = sshrl.u32 %s1744, 3
        %p1746 = scmp.lt.s32.totalorder %s1744, 0
        %s1747 = ssub.s32 0, %s1744
        %s1748 = scalar_select %p1746, %s1747, %s1744
        %s1749 = sand.u32 %s1748, 7
        %s1750 = ssub.s32 0, %s1749
        %s1751 = scalar_select %p1746, %s1750, %s1749
        %v1752 = vlaneseq
        %s1753 = smul.u32 %s1751, 128
        %v1754 = vstv %s1753
        %v1755 = vadd.s32 %v1754, 74
        %vm1756 = vcmp.eq.s32.totalorder %v1752, %v1755
        %s1757 = smul.addr %s1745, 8
        %s1758 = scalar_lea.vmem [#allocation15], %s1757
        %1759 = vst.msk [vmem:[%s1758] sm:$0xff] %vm1756, 2147483648
        %s1760 = smul.addr %s1745, 8
        %s1761 = scalar_lea.vmem [#allocation16], %s1760
        %1762 = vst.msk [vmem:[%s1761] sm:$0xff] %vm1756, 2147483647
        %1763 = xla_tuple %1759, %1762
        %v1764 = vrot.slane %v1743, 1
        %s1765 = vtos %v1764
        %s1766 = sshrl.u32 %s1765, 3
        %p1767 = scmp.lt.s32.totalorder %s1765, 0
        %s1768 = ssub.s32 0, %s1765
        %s1769 = scalar_select %p1767, %s1768, %s1765
        %s1770 = sand.u32 %s1769, 7
        %s1771 = ssub.s32 0, %s1770
        %s1772 = scalar_select %p1767, %s1771, %s1770
        %v1773 = vlaneseq
        %s1774 = smul.u32 %s1772, 128
        %v1775 = vstv %s1774
        %v1776 = vadd.s32 %v1775, 75
        %vm1777 = vcmp.eq.s32.totalorder %v1773, %v1776
        %s1778 = smul.addr %s1766, 8
        %s1779 = scalar_lea.vmem [#allocation15], %s1778
        %1780 = vst.msk [vmem:[%s1779] sm:$0xff] %vm1777, 2147483648
        %s1781 = smul.addr %s1766, 8
        %s1782 = scalar_lea.vmem [#allocation16], %s1781
        %1783 = vst.msk [vmem:[%s1782] sm:$0xff] %vm1777, 2147483647
        %1784 = xla_tuple %1780, %1783
        %v1785 = vrot.slane %v1764, 1
        %s1786 = vtos %v1785
        %s1787 = sshrl.u32 %s1786, 3
        %p1788 = scmp.lt.s32.totalorder %s1786, 0
        %s1789 = ssub.s32 0, %s1786
        %s1790 = scalar_select %p1788, %s1789, %s1786
        %s1791 = sand.u32 %s1790, 7
        %s1792 = ssub.s32 0, %s1791
        %s1793 = scalar_select %p1788, %s1792, %s1791
        %v1794 = vlaneseq
        %s1795 = smul.u32 %s1793, 128
        %v1796 = vstv %s1795
        %v1797 = vadd.s32 %v1796, 76
        %vm1798 = vcmp.eq.s32.totalorder %v1794, %v1797
        %s1799 = smul.addr %s1787, 8
        %s1800 = scalar_lea.vmem [#allocation15], %s1799
        %1801 = vst.msk [vmem:[%s1800] sm:$0xff] %vm1798, 2147483648
        %s1802 = smul.addr %s1787, 8
        %s1803 = scalar_lea.vmem [#allocation16], %s1802
        %1804 = vst.msk [vmem:[%s1803] sm:$0xff] %vm1798, 2147483647
        %1805 = xla_tuple %1801, %1804
        %v1806 = vrot.slane %v1785, 1
        %s1807 = vtos %v1806
        %s1808 = sshrl.u32 %s1807, 3
        %p1809 = scmp.lt.s32.totalorder %s1807, 0
        %s1810 = ssub.s32 0, %s1807
        %s1811 = scalar_select %p1809, %s1810, %s1807
        %s1812 = sand.u32 %s1811, 7
        %s1813 = ssub.s32 0, %s1812
        %s1814 = scalar_select %p1809, %s1813, %s1812
        %v1815 = vlaneseq
        %s1816 = smul.u32 %s1814, 128
        %v1817 = vstv %s1816
        %v1818 = vadd.s32 %v1817, 77
        %vm1819 = vcmp.eq.s32.totalorder %v1815, %v1818
        %s1820 = smul.addr %s1808, 8
        %s1821 = scalar_lea.vmem [#allocation15], %s1820
        %1822 = vst.msk [vmem:[%s1821] sm:$0xff] %vm1819, 2147483648
        %s1823 = smul.addr %s1808, 8
        %s1824 = scalar_lea.vmem [#allocation16], %s1823
        %1825 = vst.msk [vmem:[%s1824] sm:$0xff] %vm1819, 2147483647
        %1826 = xla_tuple %1822, %1825
        %v1827 = vrot.slane %v1806, 1
        %s1828 = vtos %v1827
        %s1829 = sshrl.u32 %s1828, 3
        %p1830 = scmp.lt.s32.totalorder %s1828, 0
        %s1831 = ssub.s32 0, %s1828
        %s1832 = scalar_select %p1830, %s1831, %s1828
        %s1833 = sand.u32 %s1832, 7
        %s1834 = ssub.s32 0, %s1833
        %s1835 = scalar_select %p1830, %s1834, %s1833
        %v1836 = vlaneseq
        %s1837 = smul.u32 %s1835, 128
        %v1838 = vstv %s1837
        %v1839 = vadd.s32 %v1838, 78
        %vm1840 = vcmp.eq.s32.totalorder %v1836, %v1839
        %s1841 = smul.addr %s1829, 8
        %s1842 = scalar_lea.vmem [#allocation15], %s1841
        %1843 = vst.msk [vmem:[%s1842] sm:$0xff] %vm1840, 2147483648
        %s1844 = smul.addr %s1829, 8
        %s1845 = scalar_lea.vmem [#allocation16], %s1844
        %1846 = vst.msk [vmem:[%s1845] sm:$0xff] %vm1840, 2147483647
        %1847 = xla_tuple %1843, %1846
        %v1848 = vrot.slane %v1827, 1
        %s1849 = vtos %v1848
        %s1850 = sshrl.u32 %s1849, 3
        %p1851 = scmp.lt.s32.totalorder %s1849, 0
        %s1852 = ssub.s32 0, %s1849
        %s1853 = scalar_select %p1851, %s1852, %s1849
        %s1854 = sand.u32 %s1853, 7
        %s1855 = ssub.s32 0, %s1854
        %s1856 = scalar_select %p1851, %s1855, %s1854
        %v1857 = vlaneseq
        %s1858 = smul.u32 %s1856, 128
        %v1859 = vstv %s1858
        %v1860 = vadd.s32 %v1859, 79
        %vm1861 = vcmp.eq.s32.totalorder %v1857, %v1860
        %s1862 = smul.addr %s1850, 8
        %s1863 = scalar_lea.vmem [#allocation15], %s1862
        %1864 = vst.msk [vmem:[%s1863] sm:$0xff] %vm1861, 2147483648
        %s1865 = smul.addr %s1850, 8
        %s1866 = scalar_lea.vmem [#allocation16], %s1865
        %1867 = vst.msk [vmem:[%s1866] sm:$0xff] %vm1861, 2147483647
        %1868 = xla_tuple %1864, %1867
        %v1869 = vrot.slane %v1848, 1
        %s1870 = vtos %v184
        %s1871 = sshrl.u32 %s1870, 3
        %p1872 = scmp.lt.s32.totalorder %s1870, 0
        %s1873 = ssub.s32 0, %s1870
        %s1874 = scalar_select %p1872, %s1873, %s1870
        %s1875 = sand.u32 %s1874, 7
        %s1876 = ssub.s32 0, %s1875
        %s1877 = scalar_select %p1872, %s1876, %s1875
        %v1878 = vlaneseq
        %s1879 = smul.u32 %s1877, 128
        %v1880 = vstv %s1879
        %v1881 = vadd.s32 %v1880, 80
        %vm1882 = vcmp.eq.s32.totalorder %v1878, %v1881
        %s1883 = smul.addr %s1871, 8
        %s1884 = scalar_lea.vmem [#allocation15], %s1883
        %1885 = vst.msk [vmem:[%s1884] sm:$0xff] %vm1882, 2147483648
        %s1886 = smul.addr %s1871, 8
        %s1887 = scalar_lea.vmem [#allocation16], %s1886
        %1888 = vst.msk [vmem:[%s1887] sm:$0xff] %vm1882, 2147483647
        %1889 = xla_tuple %1885, %1888
        %v1890 = vrot.slane %v184, 1
        %s1891 = vtos %v1890
        %s1892 = sshrl.u32 %s1891, 3
        %p1893 = scmp.lt.s32.totalorder %s1891, 0
        %s1894 = ssub.s32 0, %s1891
        %s1895 = scalar_select %p1893, %s1894, %s1891
        %s1896 = sand.u32 %s1895, 7
        %s1897 = ssub.s32 0, %s1896
        %s1898 = scalar_select %p1893, %s1897, %s1896
        %v1899 = vlaneseq
        %s1900 = smul.u32 %s1898, 128
        %v1901 = vstv %s1900
        %v1902 = vadd.s32 %v1901, 81
        %vm1903 = vcmp.eq.s32.totalorder %v1899, %v1902
        %s1904 = smul.addr %s1892, 8
        %s1905 = scalar_lea.vmem [#allocation15], %s1904
        %1906 = vst.msk [vmem:[%s1905] sm:$0xff] %vm1903, 2147483648
        %s1907 = smul.addr %s1892, 8
        %s1908 = scalar_lea.vmem [#allocation16], %s1907
        %1909 = vst.msk [vmem:[%s1908] sm:$0xff] %vm1903, 2147483647
        %1910 = xla_tuple %1906, %1909
        %v1911 = vrot.slane %v1890, 1
        %s1912 = vtos %v1911
        %s1913 = sshrl.u32 %s1912, 3
        %p1914 = scmp.lt.s32.totalorder %s1912, 0
        %s1915 = ssub.s32 0, %s1912
        %s1916 = scalar_select %p1914, %s1915, %s1912
        %s1917 = sand.u32 %s1916, 7
        %s1918 = ssub.s32 0, %s1917
        %s1919 = scalar_select %p1914, %s1918, %s1917
        %v1920 = vlaneseq
        %s1921 = smul.u32 %s1919, 128
        %v1922 = vstv %s1921
        %v1923 = vadd.s32 %v1922, 82
        %vm1924 = vcmp.eq.s32.totalorder %v1920, %v1923
        %s1925 = smul.addr %s1913, 8
        %s1926 = scalar_lea.vmem [#allocation15], %s1925
        %1927 = vst.msk [vmem:[%s1926] sm:$0xff] %vm1924, 2147483648
        %s1928 = smul.addr %s1913, 8
        %s1929 = scalar_lea.vmem [#allocation16], %s1928
        %1930 = vst.msk [vmem:[%s1929] sm:$0xff] %vm1924, 2147483647
        %1931 = xla_tuple %1927, %1930
        %v1932 = vrot.slane %v1911, 1
        %s1933 = vtos %v1932
        %s1934 = sshrl.u32 %s1933, 3
        %p1935 = scmp.lt.s32.totalorder %s1933, 0
        %s1936 = ssub.s32 0, %s1933
        %s1937 = scalar_select %p1935, %s1936, %s1933
        %s1938 = sand.u32 %s1937, 7
        %s1939 = ssub.s32 0, %s1938
        %s1940 = scalar_select %p1935, %s1939, %s1938
        %v1941 = vlaneseq
        %s1942 = smul.u32 %s1940, 128
        %v1943 = vstv %s1942
        %v1944 = vadd.s32 %v1943, 83
        %vm1945 = vcmp.eq.s32.totalorder %v1941, %v1944
        %s1946 = smul.addr %s1934, 8
        %s1947 = scalar_lea.vmem [#allocation15], %s1946
        %1948 = vst.msk [vmem:[%s1947] sm:$0xff] %vm1945, 2147483648
        %s1949 = smul.addr %s1934, 8
        %s1950 = scalar_lea.vmem [#allocation16], %s1949
        %1951 = vst.msk [vmem:[%s1950] sm:$0xff] %vm1945, 2147483647
        %1952 = xla_tuple %1948, %1951
        %v1953 = vrot.slane %v1932, 1
        %s1954 = vtos %v1953
        %s1955 = sshrl.u32 %s1954, 3
        %p1956 = scmp.lt.s32.totalorder %s1954, 0
        %s1957 = ssub.s32 0, %s1954
        %s1958 = scalar_select %p1956, %s1957, %s1954
        %s1959 = sand.u32 %s1958, 7
        %s1960 = ssub.s32 0, %s1959
        %s1961 = scalar_select %p1956, %s1960, %s1959
        %v1962 = vlaneseq
        %s1963 = smul.u32 %s1961, 128
        %v1964 = vstv %s1963
        %v1965 = vadd.s32 %v1964, 84
        %vm1966 = vcmp.eq.s32.totalorder %v1962, %v1965
        %s1967 = smul.addr %s1955, 8
        %s1968 = scalar_lea.vmem [#allocation15], %s1967
        %1969 = vst.msk [vmem:[%s1968] sm:$0xff] %vm1966, 2147483648
        %s1970 = smul.addr %s1955, 8
        %s1971 = scalar_lea.vmem [#allocation16], %s1970
        %1972 = vst.msk [vmem:[%s1971] sm:$0xff] %vm1966, 2147483647
        %1973 = xla_tuple %1969, %1972
        %v1974 = vrot.slane %v1953, 1
        %s1975 = vtos %v1974
        %s1976 = sshrl.u32 %s1975, 3
        %p1977 = scmp.lt.s32.totalorder %s1975, 0
        %s1978 = ssub.s32 0, %s1975
        %s1979 = scalar_select %p1977, %s1978, %s1975
        %s1980 = sand.u32 %s1979, 7
        %s1981 = ssub.s32 0, %s1980
        %s1982 = scalar_select %p1977, %s1981, %s1980
        %v1983 = vlaneseq
        %s1984 = smul.u32 %s1982, 128
        %v1985 = vstv %s1984
        %v1986 = vadd.s32 %v1985, 85
        %vm1987 = vcmp.eq.s32.totalorder %v1983, %v1986
        %s1988 = smul.addr %s1976, 8
        %s1989 = scalar_lea.vmem [#allocation15], %s1988
        %1990 = vst.msk [vmem:[%s1989] sm:$0xff] %vm1987, 2147483648
        %s1991 = smul.addr %s1976, 8
        %s1992 = scalar_lea.vmem [#allocation16], %s1991
        %1993 = vst.msk [vmem:[%s1992] sm:$0xff] %vm1987, 2147483647
        %1994 = xla_tuple %1990, %1993
        %v1995 = vrot.slane %v1974, 1
        %s1996 = vtos %v1995
        %s1997 = sshrl.u32 %s1996, 3
        %p1998 = scmp.lt.s32.totalorder %s1996, 0
        %s1999 = ssub.s32 0, %s1996
        %s2000 = scalar_select %p1998, %s1999, %s1996
        %s2001 = sand.u32 %s2000, 7
        %s2002 = ssub.s32 0, %s2001
        %s2003 = scalar_select %p1998, %s2002, %s2001
        %v2004 = vlaneseq
        %s2005 = smul.u32 %s2003, 128
        %v2006 = vstv %s2005
        %v2007 = vadd.s32 %v2006, 86
        %vm2008 = vcmp.eq.s32.totalorder %v2004, %v2007
        %s2009 = smul.addr %s1997, 8
        %s2010 = scalar_lea.vmem [#allocation15], %s2009
        %2011 = vst.msk [vmem:[%s2010] sm:$0xff] %vm2008, 2147483648
        %s2012 = smul.addr %s1997, 8
        %s2013 = scalar_lea.vmem [#allocation16], %s2012
        %2014 = vst.msk [vmem:[%s2013] sm:$0xff] %vm2008, 2147483647
        %2015 = xla_tuple %2011, %2014
        %v2016 = vrot.slane %v1995, 1
        %s2017 = vtos %v2016
        %s2018 = sshrl.u32 %s2017, 3
        %p2019 = scmp.lt.s32.totalorder %s2017, 0
        %s2020 = ssub.s32 0, %s2017
        %s2021 = scalar_select %p2019, %s2020, %s2017
        %s2022 = sand.u32 %s2021, 7
        %s2023 = ssub.s32 0, %s2022
        %s2024 = scalar_select %p2019, %s2023, %s2022
        %v2025 = vlaneseq
        %s2026 = smul.u32 %s2024, 128
        %v2027 = vstv %s2026
        %v2028 = vadd.s32 %v2027, 87
        %vm2029 = vcmp.eq.s32.totalorder %v2025, %v2028
        %s2030 = smul.addr %s2018, 8
        %s2031 = scalar_lea.vmem [#allocation15], %s2030
        %2032 = vst.msk [vmem:[%s2031] sm:$0xff] %vm2029, 2147483648
        %s2033 = smul.addr %s2018, 8
        %s2034 = scalar_lea.vmem [#allocation16], %s2033
        %2035 = vst.msk [vmem:[%s2034] sm:$0xff] %vm2029, 2147483647
        %2036 = xla_tuple %2032, %2035
        %v2037 = vrot.slane %v2016, 1
        %s2038 = vtos %v185
        %s2039 = sshrl.u32 %s2038, 3
        %p2040 = scmp.lt.s32.totalorder %s2038, 0
        %s2041 = ssub.s32 0, %s2038
        %s2042 = scalar_select %p2040, %s2041, %s2038
        %s2043 = sand.u32 %s2042, 7
        %s2044 = ssub.s32 0, %s2043
        %s2045 = scalar_select %p2040, %s2044, %s2043
        %v2046 = vlaneseq
        %s2047 = smul.u32 %s2045, 128
        %v2048 = vstv %s2047
        %v2049 = vadd.s32 %v2048, 88
        %vm2050 = vcmp.eq.s32.totalorder %v2046, %v2049
        %s2051 = smul.addr %s2039, 8
        %s2052 = scalar_lea.vmem [#allocation15], %s2051
        %2053 = vst.msk [vmem:[%s2052] sm:$0xff] %vm2050, 2147483648
        %s2054 = smul.addr %s2039, 8
        %s2055 = scalar_lea.vmem [#allocation16], %s2054
        %2056 = vst.msk [vmem:[%s2055] sm:$0xff] %vm2050, 2147483647
        %2057 = xla_tuple %2053, %2056
        %v2058 = vrot.slane %v185, 1
        %s2059 = vtos %v2058
        %s2060 = sshrl.u32 %s2059, 3
        %p2061 = scmp.lt.s32.totalorder %s2059, 0
        %s2062 = ssub.s32 0, %s2059
        %s2063 = scalar_select %p2061, %s2062, %s2059
        %s2064 = sand.u32 %s2063, 7
        %s2065 = ssub.s32 0, %s2064
        %s2066 = scalar_select %p2061, %s2065, %s2064
        %v2067 = vlaneseq
        %s2068 = smul.u32 %s2066, 128
        %v2069 = vstv %s2068
        %v2070 = vadd.s32 %v2069, 89
        %vm2071 = vcmp.eq.s32.totalorder %v2067, %v2070
        %s2072 = smul.addr %s2060, 8
        %s2073 = scalar_lea.vmem [#allocation15], %s2072
        %2074 = vst.msk [vmem:[%s2073] sm:$0xff] %vm2071, 2147483648
        %s2075 = smul.addr %s2060, 8
        %s2076 = scalar_lea.vmem [#allocation16], %s2075
        %2077 = vst.msk [vmem:[%s2076] sm:$0xff] %vm2071, 2147483647
        %2078 = xla_tuple %2074, %2077
        %v2079 = vrot.slane %v2058, 1
        %s2080 = vtos %v2079
        %s2081 = sshrl.u32 %s2080, 3
        %p2082 = scmp.lt.s32.totalorder %s2080, 0
        %s2083 = ssub.s32 0, %s2080
        %s2084 = scalar_select %p2082, %s2083, %s2080
        %s2085 = sand.u32 %s2084, 7
        %s2086 = ssub.s32 0, %s2085
        %s2087 = scalar_select %p2082, %s2086, %s2085
        %v2088 = vlaneseq
        %s2089 = smul.u32 %s2087, 128
        %v2090 = vstv %s2089
        %v2091 = vadd.s32 %v2090, 90
        %vm2092 = vcmp.eq.s32.totalorder %v2088, %v2091
        %s2093 = smul.addr %s2081, 8
        %s2094 = scalar_lea.vmem [#allocation15], %s2093
        %2095 = vst.msk [vmem:[%s2094] sm:$0xff] %vm2092, 2147483648
        %s2096 = smul.addr %s2081, 8
        %s2097 = scalar_lea.vmem [#allocation16], %s2096
        %2098 = vst.msk [vmem:[%s2097] sm:$0xff] %vm2092, 2147483647
        %2099 = xla_tuple %2095, %2098
        %v2100 = vrot.slane %v2079, 1
        %s2101 = vtos %v2100
        %s2102 = sshrl.u32 %s2101, 3
        %p2103 = scmp.lt.s32.totalorder %s2101, 0
        %s2104 = ssub.s32 0, %s2101
        %s2105 = scalar_select %p2103, %s2104, %s2101
        %s2106 = sand.u32 %s2105, 7
        %s2107 = ssub.s32 0, %s2106
        %s2108 = scalar_select %p2103, %s2107, %s2106
        %v2109 = vlaneseq
        %s2110 = smul.u32 %s2108, 128
        %v2111 = vstv %s2110
        %v2112 = vadd.s32 %v2111, 91
        %vm2113 = vcmp.eq.s32.totalorder %v2109, %v2112
        %s2114 = smul.addr %s2102, 8
        %s2115 = scalar_lea.vmem [#allocation15], %s2114
        %2116 = vst.msk [vmem:[%s2115] sm:$0xff] %vm2113, 2147483648
        %s2117 = smul.addr %s2102, 8
        %s2118 = scalar_lea.vmem [#allocation16], %s2117
        %2119 = vst.msk [vmem:[%s2118] sm:$0xff] %vm2113, 2147483647
        %2120 = xla_tuple %2116, %2119
        %v2121 = vrot.slane %v2100, 1
        %s2122 = vtos %v2121
        %s2123 = sshrl.u32 %s2122, 3
        %p2124 = scmp.lt.s32.totalorder %s2122, 0
        %s2125 = ssub.s32 0, %s2122
        %s2126 = scalar_select %p2124, %s2125, %s2122
        %s2127 = sand.u32 %s2126, 7
        %s2128 = ssub.s32 0, %s2127
        %s2129 = scalar_select %p2124, %s2128, %s2127
        %v2130 = vlaneseq
        %s2131 = smul.u32 %s2129, 128
        %v2132 = vstv %s2131
        %v2133 = vadd.s32 %v2132, 92
        %vm2134 = vcmp.eq.s32.totalorder %v2130, %v2133
        %s2135 = smul.addr %s2123, 8
        %s2136 = scalar_lea.vmem [#allocation15], %s2135
        %2137 = vst.msk [vmem:[%s2136] sm:$0xff] %vm2134, 2147483648
        %s2138 = smul.addr %s2123, 8
        %s2139 = scalar_lea.vmem [#allocation16], %s2138
        %2140 = vst.msk [vmem:[%s2139] sm:$0xff] %vm2134, 2147483647
        %2141 = xla_tuple %2137, %2140
        %v2142 = vrot.slane %v2121, 1
        %s2143 = vtos %v2142
        %s2144 = sshrl.u32 %s2143, 3
        %p2145 = scmp.lt.s32.totalorder %s2143, 0
        %s2146 = ssub.s32 0, %s2143
        %s2147 = scalar_select %p2145, %s2146, %s2143
        %s2148 = sand.u32 %s2147, 7
        %s2149 = ssub.s32 0, %s2148
        %s2150 = scalar_select %p2145, %s2149, %s2148
        %v2151 = vlaneseq
        %s2152 = smul.u32 %s2150, 128
        %v2153 = vstv %s2152
        %v2154 = vadd.s32 %v2153, 93
        %vm2155 = vcmp.eq.s32.totalorder %v2151, %v2154
        %s2156 = smul.addr %s2144, 8
        %s2157 = scalar_lea.vmem [#allocation15], %s2156
        %2158 = vst.msk [vmem:[%s2157] sm:$0xff] %vm2155, 2147483648
        %s2159 = smul.addr %s2144, 8
        %s2160 = scalar_lea.vmem [#allocation16], %s2159
        %2161 = vst.msk [vmem:[%s2160] sm:$0xff] %vm2155, 2147483647
        %2162 = xla_tuple %2158, %2161
        %v2163 = vrot.slane %v2142, 1
        %s2164 = vtos %v2163
        %s2165 = sshrl.u32 %s2164, 3
        %p2166 = scmp.lt.s32.totalorder %s2164, 0
        %s2167 = ssub.s32 0, %s2164
        %s2168 = scalar_select %p2166, %s2167, %s2164
        %s2169 = sand.u32 %s2168, 7
        %s2170 = ssub.s32 0, %s2169
        %s2171 = scalar_select %p2166, %s2170, %s2169
        %v2172 = vlaneseq
        %s2173 = smul.u32 %s2171, 128
        %v2174 = vstv %s2173
        %v2175 = vadd.s32 %v2174, 94
        %vm2176 = vcmp.eq.s32.totalorder %v2172, %v2175
        %s2177 = smul.addr %s2165, 8
        %s2178 = scalar_lea.vmem [#allocation15], %s2177
        %2179 = vst.msk [vmem:[%s2178] sm:$0xff] %vm2176, 2147483648
        %s2180 = smul.addr %s2165, 8
        %s2181 = scalar_lea.vmem [#allocation16], %s2180
        %2182 = vst.msk [vmem:[%s2181] sm:$0xff] %vm2176, 2147483647
        %2183 = xla_tuple %2179, %2182
        %v2184 = vrot.slane %v2163, 1
        %s2185 = vtos %v2184
        %s2186 = sshrl.u32 %s2185, 3
        %p2187 = scmp.lt.s32.totalorder %s2185, 0
        %s2188 = ssub.s32 0, %s2185
        %s2189 = scalar_select %p2187, %s2188, %s2185
        %s2190 = sand.u32 %s2189, 7
        %s2191 = ssub.s32 0, %s2190
        %s2192 = scalar_select %p2187, %s2191, %s2190
        %v2193 = vlaneseq
        %s2194 = smul.u32 %s2192, 128
        %v2195 = vstv %s2194
        %v2196 = vadd.s32 %v2195, 95
        %vm2197 = vcmp.eq.s32.totalorder %v2193, %v2196
        %s2198 = smul.addr %s2186, 8
        %s2199 = scalar_lea.vmem [#allocation15], %s2198
        %2200 = vst.msk [vmem:[%s2199] sm:$0xff] %vm2197, 2147483648
        %s2201 = smul.addr %s2186, 8
        %s2202 = scalar_lea.vmem [#allocation16], %s2201
        %2203 = vst.msk [vmem:[%s2202] sm:$0xff] %vm2197, 2147483647
        %2204 = xla_tuple %2200, %2203
        %v2205 = vrot.slane %v2184, 1
        %s2206 = vtos %v186
        %s2207 = sshrl.u32 %s2206, 3
        %p2208 = scmp.lt.s32.totalorder %s2206, 0
        %s2209 = ssub.s32 0, %s2206
        %s2210 = scalar_select %p2208, %s2209, %s2206
        %s2211 = sand.u32 %s2210, 7
        %s2212 = ssub.s32 0, %s2211
        %s2213 = scalar_select %p2208, %s2212, %s2211
        %v2214 = vlaneseq
        %s2215 = smul.u32 %s2213, 128
        %v2216 = vstv %s2215
        %v2217 = vadd.s32 %v2216, 96
        %vm2218 = vcmp.eq.s32.totalorder %v2214, %v2217
        %s2219 = smul.addr %s2207, 8
        %s2220 = scalar_lea.vmem [#allocation15], %s2219
        %2221 = vst.msk [vmem:[%s2220] sm:$0xff] %vm2218, 2147483648
        %s2222 = smul.addr %s2207, 8
        %s2223 = scalar_lea.vmem [#allocation16], %s2222
        %2224 = vst.msk [vmem:[%s2223] sm:$0xff] %vm2218, 2147483647
        %2225 = xla_tuple %2221, %2224
        %v2226 = vrot.slane %v186, 1
        %s2227 = vtos %v2226
        %s2228 = sshrl.u32 %s2227, 3
        %p2229 = scmp.lt.s32.totalorder %s2227, 0
        %s2230 = ssub.s32 0, %s2227
        %s2231 = scalar_select %p2229, %s2230, %s2227
        %s2232 = sand.u32 %s2231, 7
        %s2233 = ssub.s32 0, %s2232
        %s2234 = scalar_select %p2229, %s2233, %s2232
        %v2235 = vlaneseq
        %s2236 = smul.u32 %s2234, 128
        %v2237 = vstv %s2236
        %v2238 = vadd.s32 %v2237, 97
        %vm2239 = vcmp.eq.s32.totalorder %v2235, %v2238
        %s2240 = smul.addr %s2228, 8
        %s2241 = scalar_lea.vmem [#allocation15], %s2240
        %2242 = vst.msk [vmem:[%s2241] sm:$0xff] %vm2239, 2147483648
        %s2243 = smul.addr %s2228, 8
        %s2244 = scalar_lea.vmem [#allocation16], %s2243
        %2245 = vst.msk [vmem:[%s2244] sm:$0xff] %vm2239, 2147483647
        %2246 = xla_tuple %2242, %2245
        %v2247 = vrot.slane %v2226, 1
        %s2248 = vtos %v2247
        %s2249 = sshrl.u32 %s2248, 3
        %p2250 = scmp.lt.s32.totalorder %s2248, 0
        %s2251 = ssub.s32 0, %s2248
        %s2252 = scalar_select %p2250, %s2251, %s2248
        %s2253 = sand.u32 %s2252, 7
        %s2254 = ssub.s32 0, %s2253
        %s2255 = scalar_select %p2250, %s2254, %s2253
        %v2256 = vlaneseq
        %s2257 = smul.u32 %s2255, 128
        %v2258 = vstv %s2257
        %v2259 = vadd.s32 %v2258, 98
        %vm2260 = vcmp.eq.s32.totalorder %v2256, %v2259
        %s2261 = smul.addr %s2249, 8
        %s2262 = scalar_lea.vmem [#allocation15], %s2261
        %2263 = vst.msk [vmem:[%s2262] sm:$0xff] %vm2260, 2147483648
        %s2264 = smul.addr %s2249, 8
        %s2265 = scalar_lea.vmem [#allocation16], %s2264
        %2266 = vst.msk [vmem:[%s2265] sm:$0xff] %vm2260, 2147483647
        %2267 = xla_tuple %2263, %2266
        %v2268 = vrot.slane %v2247, 1
        %s2269 = vtos %v2268
        %s2270 = sshrl.u32 %s2269, 3
        %p2271 = scmp.lt.s32.totalorder %s2269, 0
        %s2272 = ssub.s32 0, %s2269
        %s2273 = scalar_select %p2271, %s2272, %s2269
        %s2274 = sand.u32 %s2273, 7
        %s2275 = ssub.s32 0, %s2274
        %s2276 = scalar_select %p2271, %s2275, %s2274
        %v2277 = vlaneseq
        %s2278 = smul.u32 %s2276, 128
        %v2279 = vstv %s2278
        %v2280 = vadd.s32 %v2279, 99
        %vm2281 = vcmp.eq.s32.totalorder %v2277, %v2280
        %s2282 = smul.addr %s2270, 8
        %s2283 = scalar_lea.vmem [#allocation15], %s2282
        %2284 = vst.msk [vmem:[%s2283] sm:$0xff] %vm2281, 2147483648
        %s2285 = smul.addr %s2270, 8
        %s2286 = scalar_lea.vmem [#allocation16], %s2285
        %2287 = vst.msk [vmem:[%s2286] sm:$0xff] %vm2281, 2147483647
        %2288 = xla_tuple %2284, %2287
        %v2289 = vrot.slane %v2268, 1
        %s2290 = vtos %v2289
        %s2291 = sshrl.u32 %s2290, 3
        %p2292 = scmp.lt.s32.totalorder %s2290, 0
        %s2293 = ssub.s32 0, %s2290
        %s2294 = scalar_select %p2292, %s2293, %s2290
        %s2295 = sand.u32 %s2294, 7
        %s2296 = ssub.s32 0, %s2295
        %s2297 = scalar_select %p2292, %s2296, %s2295
        %v2298 = vlaneseq
        %s2299 = smul.u32 %s2297, 128
        %v2300 = vstv %s2299
        %v2301 = vadd.s32 %v2300, 100
        %vm2302 = vcmp.eq.s32.totalorder %v2298, %v2301
        %s2303 = smul.addr %s2291, 8
        %s2304 = scalar_lea.vmem [#allocation15], %s2303
        %2305 = vst.msk [vmem:[%s2304] sm:$0xff] %vm2302, 2147483648
        %s2306 = smul.addr %s2291, 8
        %s2307 = scalar_lea.vmem [#allocation16], %s2306
        %2308 = vst.msk [vmem:[%s2307] sm:$0xff] %vm2302, 2147483647
        %2309 = xla_tuple %2305, %2308
        %v2310 = vrot.slane %v2289, 1
        %s2311 = vtos %v2310
        %s2312 = sshrl.u32 %s2311, 3
        %p2313 = scmp.lt.s32.totalorder %s2311, 0
        %s2314 = ssub.s32 0, %s2311
        %s2315 = scalar_select %p2313, %s2314, %s2311
        %s2316 = sand.u32 %s2315, 7
        %s2317 = ssub.s32 0, %s2316
        %s2318 = scalar_select %p2313, %s2317, %s2316
        %v2319 = vlaneseq
        %s2320 = smul.u32 %s2318, 128
        %v2321 = vstv %s2320
        %v2322 = vadd.s32 %v2321, 101
        %vm2323 = vcmp.eq.s32.totalorder %v2319, %v2322
        %s2324 = smul.addr %s2312, 8
        %s2325 = scalar_lea.vmem [#allocation15], %s2324
        %2326 = vst.msk [vmem:[%s2325] sm:$0xff] %vm2323, 2147483648
        %s2327 = smul.addr %s2312, 8
        %s2328 = scalar_lea.vmem [#allocation16], %s2327
        %2329 = vst.msk [vmem:[%s2328] sm:$0xff] %vm2323, 2147483647
        %2330 = xla_tuple %2326, %2329
        %v2331 = vrot.slane %v2310, 1
        %s2332 = vtos %v2331
        %s2333 = sshrl.u32 %s2332, 3
        %p2334 = scmp.lt.s32.totalorder %s2332, 0
        %s2335 = ssub.s32 0, %s2332
        %s2336 = scalar_select %p2334, %s2335, %s2332
        %s2337 = sand.u32 %s2336, 7
        %s2338 = ssub.s32 0, %s2337
        %s2339 = scalar_select %p2334, %s2338, %s2337
        %v2340 = vlaneseq
        %s2341 = smul.u32 %s2339, 128
        %v2342 = vstv %s2341
        %v2343 = vadd.s32 %v2342, 102
        %vm2344 = vcmp.eq.s32.totalorder %v2340, %v2343
        %s2345 = smul.addr %s2333, 8
        %s2346 = scalar_lea.vmem [#allocation15], %s2345
        %2347 = vst.msk [vmem:[%s2346] sm:$0xff] %vm2344, 2147483648
        %s2348 = smul.addr %s2333, 8
        %s2349 = scalar_lea.vmem [#allocation16], %s2348
        %2350 = vst.msk [vmem:[%s2349] sm:$0xff] %vm2344, 2147483647
        %2351 = xla_tuple %2347, %2350
        %v2352 = vrot.slane %v2331, 1
        %s2353 = vtos %v2352
        %s2354 = sshrl.u32 %s2353, 3
        %p2355 = scmp.lt.s32.totalorder %s2353, 0
        %s2356 = ssub.s32 0, %s2353
        %s2357 = scalar_select %p2355, %s2356, %s2353
        %s2358 = sand.u32 %s2357, 7
        %s2359 = ssub.s32 0, %s2358
        %s2360 = scalar_select %p2355, %s2359, %s2358
        %v2361 = vlaneseq
        %s2362 = smul.u32 %s2360, 128
        %v2363 = vstv %s2362
        %v2364 = vadd.s32 %v2363, 103
        %vm2365 = vcmp.eq.s32.totalorder %v2361, %v2364
        %s2366 = smul.addr %s2354, 8
        %s2367 = scalar_lea.vmem [#allocation15], %s2366
        %2368 = vst.msk [vmem:[%s2367] sm:$0xff] %vm2365, 2147483648
        %s2369 = smul.addr %s2354, 8
        %s2370 = scalar_lea.vmem [#allocation16], %s2369
        %2371 = vst.msk [vmem:[%s2370] sm:$0xff] %vm2365, 2147483647
        %2372 = xla_tuple %2368, %2371
        %v2373 = vrot.slane %v2352, 1
        %s2374 = vtos %v187
        %s2375 = sshrl.u32 %s2374, 3
        %p2376 = scmp.lt.s32.totalorder %s2374, 0
        %s2377 = ssub.s32 0, %s2374
        %s2378 = scalar_select %p2376, %s2377, %s2374
        %s2379 = sand.u32 %s2378, 7
        %s2380 = ssub.s32 0, %s2379
        %s2381 = scalar_select %p2376, %s2380, %s2379
        %v2382 = vlaneseq
        %s2383 = smul.u32 %s2381, 128
        %v2384 = vstv %s2383
        %v2385 = vadd.s32 %v2384, 104
        %vm2386 = vcmp.eq.s32.totalorder %v2382, %v2385
        %s2387 = smul.addr %s2375, 8
        %s2388 = scalar_lea.vmem [#allocation15], %s2387
        %2389 = vst.msk [vmem:[%s2388] sm:$0xff] %vm2386, 2147483648
        %s2390 = smul.addr %s2375, 8
        %s2391 = scalar_lea.vmem [#allocation16], %s2390
        %2392 = vst.msk [vmem:[%s2391] sm:$0xff] %vm2386, 2147483647
        %2393 = xla_tuple %2389, %2392
        %v2394 = vrot.slane %v187, 1
        %s2395 = vtos %v2394
        %s2396 = sshrl.u32 %s2395, 3
        %p2397 = scmp.lt.s32.totalorder %s2395, 0
        %s2398 = ssub.s32 0, %s2395
        %s2399 = scalar_select %p2397, %s2398, %s2395
        %s2400 = sand.u32 %s2399, 7
        %s2401 = ssub.s32 0, %s2400
        %s2402 = scalar_select %p2397, %s2401, %s2400
        %v2403 = vlaneseq
        %s2404 = smul.u32 %s2402, 128
        %v2405 = vstv %s2404
        %v2406 = vadd.s32 %v2405, 105
        %vm2407 = vcmp.eq.s32.totalorder %v2403, %v2406
        %s2408 = smul.addr %s2396, 8
        %s2409 = scalar_lea.vmem [#allocation15], %s2408
        %2410 = vst.msk [vmem:[%s2409] sm:$0xff] %vm2407, 2147483648
        %s2411 = smul.addr %s2396, 8
        %s2412 = scalar_lea.vmem [#allocation16], %s2411
        %2413 = vst.msk [vmem:[%s2412] sm:$0xff] %vm2407, 2147483647
        %2414 = xla_tuple %2410, %2413
        %v2415 = vrot.slane %v2394, 1
        %s2416 = vtos %v2415
        %s2417 = sshrl.u32 %s2416, 3
        %p2418 = scmp.lt.s32.totalorder %s2416, 0
        %s2419 = ssub.s32 0, %s2416
        %s2420 = scalar_select %p2418, %s2419, %s2416
        %s2421 = sand.u32 %s2420, 7
        %s2422 = ssub.s32 0, %s2421
        %s2423 = scalar_select %p2418, %s2422, %s2421
        %v2424 = vlaneseq
        %s2425 = smul.u32 %s2423, 128
        %v2426 = vstv %s2425
        %v2427 = vadd.s32 %v2426, 106
        %vm2428 = vcmp.eq.s32.totalorder %v2424, %v2427
        %s2429 = smul.addr %s2417, 8
        %s2430 = scalar_lea.vmem [#allocation15], %s2429
        %2431 = vst.msk [vmem:[%s2430] sm:$0xff] %vm2428, 2147483648
        %s2432 = smul.addr %s2417, 8
        %s2433 = scalar_lea.vmem [#allocation16], %s2432
        %2434 = vst.msk [vmem:[%s2433] sm:$0xff] %vm2428, 2147483647
        %2435 = xla_tuple %2431, %2434
        %v2436 = vrot.slane %v2415, 1
        %s2437 = vtos %v2436
        %s2438 = sshrl.u32 %s2437, 3
        %p2439 = scmp.lt.s32.totalorder %s2437, 0
        %s2440 = ssub.s32 0, %s2437
        %s2441 = scalar_select %p2439, %s2440, %s2437
        %s2442 = sand.u32 %s2441, 7
        %s2443 = ssub.s32 0, %s2442
        %s2444 = scalar_select %p2439, %s2443, %s2442
        %v2445 = vlaneseq
        %s2446 = smul.u32 %s2444, 128
        %v2447 = vstv %s2446
        %v2448 = vadd.s32 %v2447, 107
        %vm2449 = vcmp.eq.s32.totalorder %v2445, %v2448
        %s2450 = smul.addr %s2438, 8
        %s2451 = scalar_lea.vmem [#allocation15], %s2450
        %2452 = vst.msk [vmem:[%s2451] sm:$0xff] %vm2449, 2147483648
        %s2453 = smul.addr %s2438, 8
        %s2454 = scalar_lea.vmem [#allocation16], %s2453
        %2455 = vst.msk [vmem:[%s2454] sm:$0xff] %vm2449, 2147483647
        %2456 = xla_tuple %2452, %2455
        %v2457 = vrot.slane %v2436, 1
        %s2458 = vtos %v2457
        %s2459 = sshrl.u32 %s2458, 3
        %p2460 = scmp.lt.s32.totalorder %s2458, 0
        %s2461 = ssub.s32 0, %s2458
        %s2462 = scalar_select %p2460, %s2461, %s2458
        %s2463 = sand.u32 %s2462, 7
        %s2464 = ssub.s32 0, %s2463
        %s2465 = scalar_select %p2460, %s2464, %s2463
        %v2466 = vlaneseq
        %s2467 = smul.u32 %s2465, 128
        %v2468 = vstv %s2467
        %v2469 = vadd.s32 %v2468, 108
        %vm2470 = vcmp.eq.s32.totalorder %v2466, %v2469
        %s2471 = smul.addr %s2459, 8
        %s2472 = scalar_lea.vmem [#allocation15], %s2471
        %2473 = vst.msk [vmem:[%s2472] sm:$0xff] %vm2470, 2147483648
        %s2474 = smul.addr %s2459, 8
        %s2475 = scalar_lea.vmem [#allocation16], %s2474
        %2476 = vst.msk [vmem:[%s2475] sm:$0xff] %vm2470, 2147483647
        %2477 = xla_tuple %2473, %2476
        %v2478 = vrot.slane %v2457, 1
        %s2479 = vtos %v2478
        %s2480 = sshrl.u32 %s2479, 3
        %p2481 = scmp.lt.s32.totalorder %s2479, 0
        %s2482 = ssub.s32 0, %s2479
        %s2483 = scalar_select %p2481, %s2482, %s2479
        %s2484 = sand.u32 %s2483, 7
        %s2485 = ssub.s32 0, %s2484
        %s2486 = scalar_select %p2481, %s2485, %s2484
        %v2487 = vlaneseq
        %s2488 = smul.u32 %s2486, 128
        %v2489 = vstv %s2488
        %v2490 = vadd.s32 %v2489, 109
        %vm2491 = vcmp.eq.s32.totalorder %v2487, %v2490
        %s2492 = smul.addr %s2480, 8
        %s2493 = scalar_lea.vmem [#allocation15], %s2492
        %2494 = vst.msk [vmem:[%s2493] sm:$0xff] %vm2491, 2147483648
        %s2495 = smul.addr %s2480, 8
        %s2496 = scalar_lea.vmem [#allocation16], %s2495
        %2497 = vst.msk [vmem:[%s2496] sm:$0xff] %vm2491, 2147483647
        %2498 = xla_tuple %2494, %2497
        %v2499 = vrot.slane %v2478, 1
        %s2500 = vtos %v2499
        %s2501 = sshrl.u32 %s2500, 3
        %p2502 = scmp.lt.s32.totalorder %s2500, 0
        %s2503 = ssub.s32 0, %s2500
        %s2504 = scalar_select %p2502, %s2503, %s2500
        %s2505 = sand.u32 %s2504, 7
        %s2506 = ssub.s32 0, %s2505
        %s2507 = scalar_select %p2502, %s2506, %s2505
        %v2508 = vlaneseq
        %s2509 = smul.u32 %s2507, 128
        %v2510 = vstv %s2509
        %v2511 = vadd.s32 %v2510, 110
        %vm2512 = vcmp.eq.s32.totalorder %v2508, %v2511
        %s2513 = smul.addr %s2501, 8
        %s2514 = scalar_lea.vmem [#allocation15], %s2513
        %2515 = vst.msk [vmem:[%s2514] sm:$0xff] %vm2512, 2147483648
        %s2516 = smul.addr %s2501, 8
        %s2517 = scalar_lea.vmem [#allocation16], %s2516
        %2518 = vst.msk [vmem:[%s2517] sm:$0xff] %vm2512, 2147483647
        %2519 = xla_tuple %2515, %2518
        %v2520 = vrot.slane %v2499, 1
        %s2521 = vtos %v2520
        %s2522 = sshrl.u32 %s2521, 3
        %p2523 = scmp.lt.s32.totalorder %s2521, 0
        %s2524 = ssub.s32 0, %s2521
        %s2525 = scalar_select %p2523, %s2524, %s2521
        %s2526 = sand.u32 %s2525, 7
        %s2527 = ssub.s32 0, %s2526
        %s2528 = scalar_select %p2523, %s2527, %s2526
        %v2529 = vlaneseq
        %s2530 = smul.u32 %s2528, 128
        %v2531 = vstv %s2530
        %v2532 = vadd.s32 %v2531, 111
        %vm2533 = vcmp.eq.s32.totalorder %v2529, %v2532
        %s2534 = smul.addr %s2522, 8
        %s2535 = scalar_lea.vmem [#allocation15], %s2534
        %2536 = vst.msk [vmem:[%s2535] sm:$0xff] %vm2533, 2147483648
        %s2537 = smul.addr %s2522, 8
        %s2538 = scalar_lea.vmem [#allocation16], %s2537
        %2539 = vst.msk [vmem:[%s2538] sm:$0xff] %vm2533, 2147483647
        %2540 = xla_tuple %2536, %2539
        %v2541 = vrot.slane %v2520, 1
        %s2542 = vtos %v188
        %s2543 = sshrl.u32 %s2542, 3
        %p2544 = scmp.lt.s32.totalorder %s2542, 0
        %s2545 = ssub.s32 0, %s2542
        %s2546 = scalar_select %p2544, %s2545, %s2542
        %s2547 = sand.u32 %s2546, 7
        %s2548 = ssub.s32 0, %s2547
        %s2549 = scalar_select %p2544, %s2548, %s2547
        %v2550 = vlaneseq
        %s2551 = smul.u32 %s2549, 128
        %v2552 = vstv %s2551
        %v2553 = vadd.s32 %v2552, 112
        %vm2554 = vcmp.eq.s32.totalorder %v2550, %v2553
        %s2555 = smul.addr %s2543, 8
        %s2556 = scalar_lea.vmem [#allocation15], %s2555
        %2557 = vst.msk [vmem:[%s2556] sm:$0xff] %vm2554, 2147483648
        %s2558 = smul.addr %s2543, 8
        %s2559 = scalar_lea.vmem [#allocation16], %s2558
        %2560 = vst.msk [vmem:[%s2559] sm:$0xff] %vm2554, 2147483647
        %2561 = xla_tuple %2557, %2560
        %v2562 = vrot.slane %v188, 1
        %s2563 = vtos %v2562
        %s2564 = sshrl.u32 %s2563, 3
        %p2565 = scmp.lt.s32.totalorder %s2563, 0
        %s2566 = ssub.s32 0, %s2563
        %s2567 = scalar_select %p2565, %s2566, %s2563
        %s2568 = sand.u32 %s2567, 7
        %s2569 = ssub.s32 0, %s2568
        %s2570 = scalar_select %p2565, %s2569, %s2568
        %v2571 = vlaneseq
        %s2572 = smul.u32 %s2570, 128
        %v2573 = vstv %s2572
        %v2574 = vadd.s32 %v2573, 113
        %vm2575 = vcmp.eq.s32.totalorder %v2571, %v2574
        %s2576 = smul.addr %s2564, 8
        %s2577 = scalar_lea.vmem [#allocation15], %s2576
        %2578 = vst.msk [vmem:[%s2577] sm:$0xff] %vm2575, 2147483648
        %s2579 = smul.addr %s2564, 8
        %s2580 = scalar_lea.vmem [#allocation16], %s2579
        %2581 = vst.msk [vmem:[%s2580] sm:$0xff] %vm2575, 2147483647
        %2582 = xla_tuple %2578, %2581
        %v2583 = vrot.slane %v2562, 1
        %s2584 = vtos %v2583
        %s2585 = sshrl.u32 %s2584, 3
        %p2586 = scmp.lt.s32.totalorder %s2584, 0
        %s2587 = ssub.s32 0, %s2584
        %s2588 = scalar_select %p2586, %s2587, %s2584
        %s2589 = sand.u32 %s2588, 7
        %s2590 = ssub.s32 0, %s2589
        %s2591 = scalar_select %p2586, %s2590, %s2589
        %v2592 = vlaneseq
        %s2593 = smul.u32 %s2591, 128
        %v2594 = vstv %s2593
        %v2595 = vadd.s32 %v2594, 114
        %vm2596 = vcmp.eq.s32.totalorder %v2592, %v2595
        %s2597 = smul.addr %s2585, 8
        %s2598 = scalar_lea.vmem [#allocation15], %s2597
        %2599 = vst.msk [vmem:[%s2598] sm:$0xff] %vm2596, 2147483648
        %s2600 = smul.addr %s2585, 8
        %s2601 = scalar_lea.vmem [#allocation16], %s2600
        %2602 = vst.msk [vmem:[%s2601] sm:$0xff] %vm2596, 2147483647
        %2603 = xla_tuple %2599, %2602
        %v2604 = vrot.slane %v2583, 1
        %s2605 = vtos %v2604
        %s2606 = sshrl.u32 %s2605, 3
        %p2607 = scmp.lt.s32.totalorder %s2605, 0
        %s2608 = ssub.s32 0, %s2605
        %s2609 = scalar_select %p2607, %s2608, %s2605
        %s2610 = sand.u32 %s2609, 7
        %s2611 = ssub.s32 0, %s2610
        %s2612 = scalar_select %p2607, %s2611, %s2610
        %v2613 = vlaneseq
        %s2614 = smul.u32 %s2612, 128
        %v2615 = vstv %s2614
        %v2616 = vadd.s32 %v2615, 115
        %vm2617 = vcmp.eq.s32.totalorder %v2613, %v2616
        %s2618 = smul.addr %s2606, 8
        %s2619 = scalar_lea.vmem [#allocation15], %s2618
        %2620 = vst.msk [vmem:[%s2619] sm:$0xff] %vm2617, 2147483648
        %s2621 = smul.addr %s2606, 8
        %s2622 = scalar_lea.vmem [#allocation16], %s2621
        %2623 = vst.msk [vmem:[%s2622] sm:$0xff] %vm2617, 2147483647
        %2624 = xla_tuple %2620, %2623
        %v2625 = vrot.slane %v2604, 1
        %s2626 = vtos %v2625
        %s2627 = sshrl.u32 %s2626, 3
        %p2628 = scmp.lt.s32.totalorder %s2626, 0
        %s2629 = ssub.s32 0, %s2626
        %s2630 = scalar_select %p2628, %s2629, %s2626
        %s2631 = sand.u32 %s2630, 7
        %s2632 = ssub.s32 0, %s2631
        %s2633 = scalar_select %p2628, %s2632, %s2631
        %v2634 = vlaneseq
        %s2635 = smul.u32 %s2633, 128
        %v2636 = vstv %s2635
        %v2637 = vadd.s32 %v2636, 116
        %vm2638 = vcmp.eq.s32.totalorder %v2634, %v2637
        %s2639 = smul.addr %s2627, 8
        %s2640 = scalar_lea.vmem [#allocation15], %s2639
        %2641 = vst.msk [vmem:[%s2640] sm:$0xff] %vm2638, 2147483648
        %s2642 = smul.addr %s2627, 8
        %s2643 = scalar_lea.vmem [#allocation16], %s2642
        %2644 = vst.msk [vmem:[%s2643] sm:$0xff] %vm2638, 2147483647
        %2645 = xla_tuple %2641, %2644
        %v2646 = vrot.slane %v2625, 1
        %s2647 = vtos %v2646
        %s2648 = sshrl.u32 %s2647, 3
        %p2649 = scmp.lt.s32.totalorder %s2647, 0
        %s2650 = ssub.s32 0, %s2647
        %s2651 = scalar_select %p2649, %s2650, %s2647
        %s2652 = sand.u32 %s2651, 7
        %s2653 = ssub.s32 0, %s2652
        %s2654 = scalar_select %p2649, %s2653, %s2652
        %v2655 = vlaneseq
        %s2656 = smul.u32 %s2654, 128
        %v2657 = vstv %s2656
        %v2658 = vadd.s32 %v2657, 117
        %vm2659 = vcmp.eq.s32.totalorder %v2655, %v2658
        %s2660 = smul.addr %s2648, 8
        %s2661 = scalar_lea.vmem [#allocation15], %s2660
        %2662 = vst.msk [vmem:[%s2661] sm:$0xff] %vm2659, 2147483648
        %s2663 = smul.addr %s2648, 8
        %s2664 = scalar_lea.vmem [#allocation16], %s2663
        %2665 = vst.msk [vmem:[%s2664] sm:$0xff] %vm2659, 2147483647
        %2666 = xla_tuple %2662, %2665
        %v2667 = vrot.slane %v2646, 1
        %s2668 = vtos %v2667
        %s2669 = sshrl.u32 %s2668, 3
        %p2670 = scmp.lt.s32.totalorder %s2668, 0
        %s2671 = ssub.s32 0, %s2668
        %s2672 = scalar_select %p2670, %s2671, %s2668
        %s2673 = sand.u32 %s2672, 7
        %s2674 = ssub.s32 0, %s2673
        %s2675 = scalar_select %p2670, %s2674, %s2673
        %v2676 = vlaneseq
        %s2677 = smul.u32 %s2675, 128
        %v2678 = vstv %s2677
        %v2679 = vadd.s32 %v2678, 118
        %vm2680 = vcmp.eq.s32.totalorder %v2676, %v2679
        %s2681 = smul.addr %s2669, 8
        %s2682 = scalar_lea.vmem [#allocation15], %s2681
        %2683 = vst.msk [vmem:[%s2682] sm:$0xff] %vm2680, 2147483648
        %s2684 = smul.addr %s2669, 8
        %s2685 = scalar_lea.vmem [#allocation16], %s2684
        %2686 = vst.msk [vmem:[%s2685] sm:$0xff] %vm2680, 2147483647
        %2687 = xla_tuple %2683, %2686
        %v2688 = vrot.slane %v2667, 1
        %s2689 = vtos %v2688
        %s2690 = sshrl.u32 %s2689, 3
        %p2691 = scmp.lt.s32.totalorder %s2689, 0
        %s2692 = ssub.s32 0, %s2689
        %s2693 = scalar_select %p2691, %s2692, %s2689
        %s2694 = sand.u32 %s2693, 7
        %s2695 = ssub.s32 0, %s2694
        %s2696 = scalar_select %p2691, %s2695, %s2694
        %v2697 = vlaneseq
        %s2698 = smul.u32 %s2696, 128
        %v2699 = vstv %s2698
        %v2700 = vadd.s32 %v2699, 119
        %vm2701 = vcmp.eq.s32.totalorder %v2697, %v2700
        %s2702 = smul.addr %s2690, 8
        %s2703 = scalar_lea.vmem [#allocation15], %s2702
        %2704 = vst.msk [vmem:[%s2703] sm:$0xff] %vm2701, 2147483648
        %s2705 = smul.addr %s2690, 8
        %s2706 = scalar_lea.vmem [#allocation16], %s2705
        %2707 = vst.msk [vmem:[%s2706] sm:$0xff] %vm2701, 2147483647
        %2708 = xla_tuple %2704, %2707
        %v2709 = vrot.slane %v2688, 1
        %s2710 = vtos %v189
        %s2711 = sshrl.u32 %s2710, 3
        %p2712 = scmp.lt.s32.totalorder %s2710, 0
        %s2713 = ssub.s32 0, %s2710
        %s2714 = scalar_select %p2712, %s2713, %s2710
        %s2715 = sand.u32 %s2714, 7
        %s2716 = ssub.s32 0, %s2715
        %s2717 = scalar_select %p2712, %s2716, %s2715
        %v2718 = vlaneseq
        %s2719 = smul.u32 %s2717, 128
        %v2720 = vstv %s2719
        %v2721 = vadd.s32 %v2720, 120
        %vm2722 = vcmp.eq.s32.totalorder %v2718, %v2721
        %s2723 = smul.addr %s2711, 8
        %s2724 = scalar_lea.vmem [#allocation15], %s2723
        %2725 = vst.msk [vmem:[%s2724] sm:$0xff] %vm2722, 2147483648
        %s2726 = smul.addr %s2711, 8
        %s2727 = scalar_lea.vmem [#allocation16], %s2726
        %2728 = vst.msk [vmem:[%s2727] sm:$0xff] %vm2722, 2147483647
        %2729 = xla_tuple %2725, %2728
        %v2730 = vrot.slane %v189, 1
        %s2731 = vtos %v2730
        %s2732 = sshrl.u32 %s2731, 3
        %p2733 = scmp.lt.s32.totalorder %s2731, 0
        %s2734 = ssub.s32 0, %s2731
        %s2735 = scalar_select %p2733, %s2734, %s2731
        %s2736 = sand.u32 %s2735, 7
        %s2737 = ssub.s32 0, %s2736
        %s2738 = scalar_select %p2733, %s2737, %s2736
        %v2739 = vlaneseq
        %s2740 = smul.u32 %s2738, 128
        %v2741 = vstv %s2740
        %v2742 = vadd.s32 %v2741, 121
        %vm2743 = vcmp.eq.s32.totalorder %v2739, %v2742
        %s2744 = smul.addr %s2732, 8
        %s2745 = scalar_lea.vmem [#allocation15], %s2744
        %2746 = vst.msk [vmem:[%s2745] sm:$0xff] %vm2743, 2147483648
        %s2747 = smul.addr %s2732, 8
        %s2748 = scalar_lea.vmem [#allocation16], %s2747
        %2749 = vst.msk [vmem:[%s2748] sm:$0xff] %vm2743, 2147483647
        %2750 = xla_tuple %2746, %2749
        %v2751 = vrot.slane %v2730, 1
        %s2752 = vtos %v2751
        %s2753 = sshrl.u32 %s2752, 3
        %p2754 = scmp.lt.s32.totalorder %s2752, 0
        %s2755 = ssub.s32 0, %s2752
        %s2756 = scalar_select %p2754, %s2755, %s2752
        %s2757 = sand.u32 %s2756, 7
        %s2758 = ssub.s32 0, %s2757
        %s2759 = scalar_select %p2754, %s2758, %s2757
        %v2760 = vlaneseq
        %s2761 = smul.u32 %s2759, 128
        %v2762 = vstv %s2761
        %v2763 = vadd.s32 %v2762, 122
        %vm2764 = vcmp.eq.s32.totalorder %v2760, %v2763
        %s2765 = smul.addr %s2753, 8
        %s2766 = scalar_lea.vmem [#allocation15], %s2765
        %2767 = vst.msk [vmem:[%s2766] sm:$0xff] %vm2764, 2147483648
        %s2768 = smul.addr %s2753, 8
        %s2769 = scalar_lea.vmem [#allocation16], %s2768
        %2770 = vst.msk [vmem:[%s2769] sm:$0xff] %vm2764, 2147483647
        %2771 = xla_tuple %2767, %2770
        %v2772 = vrot.slane %v2751, 1
        %s2773 = vtos %v2772
        %s2774 = sshrl.u32 %s2773, 3
        %p2775 = scmp.lt.s32.totalorder %s2773, 0
        %s2776 = ssub.s32 0, %s2773
        %s2777 = scalar_select %p2775, %s2776, %s2773
        %s2778 = sand.u32 %s2777, 7
        %s2779 = ssub.s32 0, %s2778
        %s2780 = scalar_select %p2775, %s2779, %s2778
        %v2781 = vlaneseq
        %s2782 = smul.u32 %s2780, 128
        %v2783 = vstv %s2782
        %v2784 = vadd.s32 %v2783, 123
        %vm2785 = vcmp.eq.s32.totalorder %v2781, %v2784
        %s2786 = smul.addr %s2774, 8
        %s2787 = scalar_lea.vmem [#allocation15], %s2786
        %2788 = vst.msk [vmem:[%s2787] sm:$0xff] %vm2785, 2147483648
        %s2789 = smul.addr %s2774, 8
        %s2790 = scalar_lea.vmem [#allocation16], %s2789
        %2791 = vst.msk [vmem:[%s2790] sm:$0xff] %vm2785, 2147483647
        %2792 = xla_tuple %2788, %2791
        %v2793 = vrot.slane %v2772, 1
        %s2794 = vtos %v2793
        %s2795 = sshrl.u32 %s2794, 3
        %p2796 = scmp.lt.s32.totalorder %s2794, 0
        %s2797 = ssub.s32 0, %s2794
        %s2798 = scalar_select %p2796, %s2797, %s2794
        %s2799 = sand.u32 %s2798, 7
        %s2800 = ssub.s32 0, %s2799
        %s2801 = scalar_select %p2796, %s2800, %s2799
        %v2802 = vlaneseq
        %s2803 = smul.u32 %s2801, 128
        %v2804 = vstv %s2803
        %v2805 = vadd.s32 %v2804, 124
        %vm2806 = vcmp.eq.s32.totalorder %v2802, %v2805
        %s2807 = smul.addr %s2795, 8
        %s2808 = scalar_lea.vmem [#allocation15], %s2807
        %2809 = vst.msk [vmem:[%s2808] sm:$0xff] %vm2806, 2147483648
        %s2810 = smul.addr %s2795, 8
        %s2811 = scalar_lea.vmem [#allocation16], %s2810
        %2812 = vst.msk [vmem:[%s2811] sm:$0xff] %vm2806, 2147483647
        %2813 = xla_tuple %2809, %2812
        %v2814 = vrot.slane %v2793, 1
        %s2815 = vtos %v2814
        %s2816 = sshrl.u32 %s2815, 3
        %p2817 = scmp.lt.s32.totalorder %s2815, 0
        %s2818 = ssub.s32 0, %s2815
        %s2819 = scalar_select %p2817, %s2818, %s2815
        %s2820 = sand.u32 %s2819, 7
        %s2821 = ssub.s32 0, %s2820
        %s2822 = scalar_select %p2817, %s2821, %s2820
        %v2823 = vlaneseq
        %s2824 = smul.u32 %s2822, 128
        %v2825 = vstv %s2824
        %v2826 = vadd.s32 %v2825, 125
        %vm2827 = vcmp.eq.s32.totalorder %v2823, %v2826
        %s2828 = smul.addr %s2816, 8
        %s2829 = scalar_lea.vmem [#allocation15], %s2828
        %2830 = vst.msk [vmem:[%s2829] sm:$0xff] %vm2827, 2147483648
        %s2831 = smul.addr %s2816, 8
        %s2832 = scalar_lea.vmem [#allocation16], %s2831
        %2833 = vst.msk [vmem:[%s2832] sm:$0xff] %vm2827, 2147483647
        %2834 = xla_tuple %2830, %2833
        %v2835 = vrot.slane %v2814, 1
        %s2836 = vtos %v2835
        %s2837 = sshrl.u32 %s2836, 3
        %p2838 = scmp.lt.s32.totalorder %s2836, 0
        %s2839 = ssub.s32 0, %s2836
        %s2840 = scalar_select %p2838, %s2839, %s2836
        %s2841 = sand.u32 %s2840, 7
        %s2842 = ssub.s32 0, %s2841
        %s2843 = scalar_select %p2838, %s2842, %s2841
        %v2844 = vlaneseq
        %s2845 = smul.u32 %s2843, 128
        %v2846 = vstv %s2845
        %v2847 = vadd.s32 %v2846, 126
        %vm2848 = vcmp.eq.s32.totalorder %v2844, %v2847
        %s2849 = smul.addr %s2837, 8
        %s2850 = scalar_lea.vmem [#allocation15], %s2849
        %2851 = vst.msk [vmem:[%s2850] sm:$0xff] %vm2848, 2147483648
        %s2852 = smul.addr %s2837, 8
        %s2853 = scalar_lea.vmem [#allocation16], %s2852
        %2854 = vst.msk [vmem:[%s2853] sm:$0xff] %vm2848, 2147483647
        %2855 = xla_tuple %2851, %2854
        %v2856 = vrot.slane %v2835, 1
        %s2857 = vtos %v2856
        %s2858 = sshrl.u32 %s2857, 3
        %p2859 = scmp.lt.s32.totalorder %s2857, 0
        %s2860 = ssub.s32 0, %s2857
        %s2861 = scalar_select %p2859, %s2860, %s2857
        %s2862 = sand.u32 %s2861, 7
        %s2863 = ssub.s32 0, %s2862
        %s2864 = scalar_select %p2859, %s2863, %s2862
        %v2865 = vlaneseq
        %s2866 = smul.u32 %s2864, 128
        %v2867 = vstv %s2866
        %v2868 = vadd.s32 %v2867, 127
        %vm2869 = vcmp.eq.s32.totalorder %v2865, %v2868
        %s2870 = smul.addr %s2858, 8
        %s2871 = scalar_lea.vmem [#allocation15], %s2870
        %2872 = vst.msk [vmem:[%s2871] sm:$0xff] %vm2869, 2147483648
        %s2873 = smul.addr %s2858, 8
        %s2874 = scalar_lea.vmem [#allocation16], %s2873
        %2875 = vst.msk [vmem:[%s2874] sm:$0xff] %vm2869, 2147483647
        %2876 = xla_tuple %2872, %2875
        %v2877 = vrot.slane %v2856, 1
      $region49: #{custom-call} parent=2 // loop_footer
        %s72 = sadd.s32 1, %s68
      $region50: #{custom-call} parent=2 // loop_footer_branch
        %67 = sbr.rel target = $region46
      $region51: #{custom-call} parent=2 // loop_exit
        _
      %s2878 = scalar_lea.vmem [#allocation12], 7
      %v2879 = vld [vmem:[%s2878] ss:$-1 sm:$0xff]
      %s2880 = scalar_lea.vmem [#allocation12], 7
      %v2881 = vld [vmem:[%s2880] ss:$-1 sm:$0xff]
      %2882 = vst [vmem:[#allocation12] sm:$0xff] %v2881
      %2883 = vst [vmem:[#allocation12] sm:$0xff] %v2879
      %s2884 = scalar_lea.vmem [#allocation14], 7
      %v2885 = vld [vmem:[%s2884] ss:$-1 sm:$0xff]
      %s2886 = scalar_lea.vmem [#allocation14], 7
      %v2887 = vld [vmem:[%s2886] ss:$-1 sm:$0xff]
      %2888 = vst [vmem:[#allocation14] sm:$0xff] %v2887
      %2889 = vst [vmem:[#allocation14] sm:$0xff] %v2885
      %2890 = xla_tuple %2883, %2889
      %v2891 = vld [vmem:[#allocation11] sm:$0xff]
      %v2892 = vld [vmem:[#allocation13] sm:$0xff]
      %2893 = xla_tuple %v2891, %v2892
      %v2894 = vld [vmem:[#allocation12] sm:$0xff]
      %v2895 = vld [vmem:[#allocation14] sm:$0xff]
      %2896 = xla_tuple %v2894, %v2895
      %vm2897 = vcmp.gt.s32.totalorder %v2891, %v2894
      %vm2898 = vcmp.eq.s32.totalorder %v2891, %v2894
      %vm2899 = vcmp.lt.s32.totalorder %v2892, %v2895
      %vm2900 = vmand %vm2898, %vm2899
      %vm2901 = vmor %vm2897, %vm2900
      %v2902 = vsel %vm2901, %v2891, %v2894
      %2903 = vst [vmem:[#allocation11] sm:$0xff] %v2902
      %v2904 = vsel %vm2901, %v2894, %v2891
      %2905 = vst [vmem:[#allocation12] sm:$0xff] %v2904
      %v2906 = vsel %vm2901, %v2892, %v2895
      %2907 = vst [vmem:[#allocation13] sm:$0xff] %v2906
      %v2908 = vsel %vm2901, %v2895, %v2892
      %2909 = vst [vmem:[#allocation14] sm:$0xff] %v2908
      %2910 = xla_tuple %2905, %2909
      %2911 = xla_tuple [#allocation11], [#allocation13]
      %v2912 = vld [vmem:[#allocation11] sm:$0xff]
      %v2913 = vld [vmem:[#allocation13] sm:$0xff]
      %2914 = xla_tuple %v2912, %v2913
      %v2916 = vunpack.c.l.s4 839939668
      %v2917 = vunpack.c.0.s8 %v2916
      %v2918 = vperm.slane %v2912, %v2917
      %v2920 = vunpack.c.l.s4 839939668
      %v2921 = vunpack.c.0.s8 %v2920
      %v2922 = vperm.slane %v2913, %v2921
      %2923 = xla_tuple %v2918, %v2922
      %vm2924 = vcmp.gt.s32.totalorder %v2912, %v2918
      %vm2925 = vcmp.eq.s32.totalorder %v2912, %v2918
      %vm2926 = vcmp.lt.s32.totalorder %v2913, %v2922
      %vm2927 = vmand %vm2925, %vm2926
      %vm2928 = vmor %vm2924, %vm2927
      %v2929 = vlaneseq
      %v2930 = vshrl.u32 %v2929, 7
      %v2931 = vand.u32 %v2930, 4
      %vm2932 = vcmp.ne.s32.totalorder %v2931, 0
      %vm2933 = vmxor %vm2928, %vm2932
      %v2934 = vsel %vm2933, %v2912, %v2918
      %v2935 = vsel %vm2933, %v2913, %v2922
      %2936 = xla_tuple %v2934, %v2935
      %v2938 = vunpack.c.l.s4 1417023538
      %v2939 = vunpack.c.0.s8 %v2938
      %v2940 = vperm.slane %v2934, %v2939
      %v2942 = vunpack.c.l.s4 1417023538
      %v2943 = vunpack.c.0.s8 %v2942
      %v2944 = vperm.slane %v2935, %v2943
      %2945 = xla_tuple %v2940, %v2944
      %vm2946 = vcmp.gt.s32.totalorder %v2934, %v2940
      %vm2947 = vcmp.eq.s32.totalorder %v2934, %v2940
      %vm2948 = vcmp.lt.s32.totalorder %v2935, %v2944
      %vm2949 = vmand %vm2947, %vm2948
      %vm2950 = vmor %vm2946, %vm2949
      %v2951 = vlaneseq
      %v2952 = vshrl.u32 %v2951, 7
      %v2953 = vand.u32 %v2952, 2
      %vm2954 = vcmp.ne.s32.totalorder %v2953, 0
      %vm2955 = vmxor %vm2950, %vm2954
      %v2956 = vsel %vm2955, %v2934, %v2940
      %v2957 = vsel %vm2955, %v2935, %v2944
      %2958 = xla_tuple %v2956, %v2957
      %v2960 = vunpack.c.l.s4 1732584193
      %v2961 = vunpack.c.0.s8 %v2960
      %v2962 = vperm.slane %v2956, %v2961
      %v2964 = vunpack.c.l.s4 1732584193
      %v2965 = vunpack.c.0.s8 %v2964
      %v2966 = vperm.slane %v2957, %v2965
      %2967 = xla_tuple %v2962, %v2966
      %vm2968 = vcmp.gt.s32.totalorder %v2956, %v2962
      %vm2969 = vcmp.eq.s32.totalorder %v2956, %v2962
      %vm2970 = vcmp.lt.s32.totalorder %v2957, %v2966
      %vm2971 = vmand %vm2969, %vm2970
      %vm2972 = vmor %vm2968, %vm2971
      %v2973 = vlaneseq
      %v2974 = vshrl.u32 %v2973, 7
      %v2975 = vand.u32 %v2974, 1
      %vm2976 = vcmp.ne.s32.totalorder %v2975, 0
      %vm2977 = vmxor %vm2972, %vm2976
      %v2978 = vsel %vm2977, %v2956, %v2962
      %v2979 = vsel %vm2977, %v2957, %v2966
      %2980 = xla_tuple %v2978, %v2979
      %2981 = vst [vmem:[#allocation11] sm:$0xff] %v2978
      %2982 = vst [vmem:[#allocation13] sm:$0xff] %v2979
      %2983 = xla_tuple %2981, %2982
      %v2984 = vld [vmem:[#allocation11] sm:$0xff]
      %v2985 = vld [vmem:[#allocation13] sm:$0xff]
      %2986 = xla_tuple %v2984, %v2985
      %v2988 = vunpack.c.l.s4 839939668
      %v2989 = vunpack.c.0.s8 %v2988
      %v2990 = vperm.slane %v2984, %v2989
      %v2992 = vunpack.c.l.s4 839939668
      %v2993 = vunpack.c.0.s8 %v2992
      %v2994 = vperm.slane %v2985, %v2993
      %2995 = xla_tuple %v2990, %v2994
      %vm2996 = vcmp.gt.s32.totalorder %v2984, %v2990
      %vm2997 = vcmp.eq.s32.totalorder %v2984, %v2990
      %vm2998 = vcmp.lt.s32.totalorder %v2985, %v2994
      %vm2999 = vmand %vm2997, %vm2998
      %vm3000 = vmor %vm2996, %vm2999
      %v3001 = vlaneseq
      %v3002 = vshrl.u32 %v3001, 7
      %v3003 = vand.u32 %v3002, 4
      %vm3004 = vcmp.ne.s32.totalorder %v3003, 0
      %vm3005 = vmxor %vm3000, %vm3004
      %v3006 = vsel %vm3005, %v2984, %v2990
      %v3007 = vsel %vm3005, %v2985, %v2994
      %3008 = xla_tuple %v3006, %v3007
      %v3010 = vunpack.c.l.s4 1417023538
      %v3011 = vunpack.c.0.s8 %v3010
      %v3012 = vperm.slane %v3006, %v3011
      %v3014 = vunpack.c.l.s4 1417023538
      %v3015 = vunpack.c.0.s8 %v3014
      %v3016 = vperm.slane %v3007, %v3015
      %3017 = xla_tuple %v3012, %v3016
      %vm3018 = vcmp.gt.s32.totalorder %v3006, %v3012
      %vm3019 = vcmp.eq.s32.totalorder %v3006, %v3012
      %vm3020 = vcmp.lt.s32.totalorder %v3007, %v3016
      %vm3021 = vmand %vm3019, %vm3020
      %vm3022 = vmor %vm3018, %vm3021
      %v3023 = vlaneseq
      %v3024 = vshrl.u32 %v3023, 7
      %v3025 = vand.u32 %v3024, 2
      %vm3026 = vcmp.ne.s32.totalorder %v3025, 0
      %vm3027 = vmxor %vm3022, %vm3026
      %v3028 = vsel %vm3027, %v3006, %v3012
      %v3029 = vsel %vm3027, %v3007, %v3016
      %3030 = xla_tuple %v3028, %v3029
      %v3032 = vunpack.c.l.s4 1732584193
      %v3033 = vunpack.c.0.s8 %v3032
      %v3034 = vperm.slane %v3028, %v3033
      %v3036 = vunpack.c.l.s4 1732584193
      %v3037 = vunpack.c.0.s8 %v3036
      %v3038 = vperm.slane %v3029, %v3037
      %3039 = xla_tuple %v3034, %v3038
      %vm3040 = vcmp.gt.s32.totalorder %v3028, %v3034
      %vm3041 = vcmp.eq.s32.totalorder %v3028, %v3034
      %vm3042 = vcmp.lt.s32.totalorder %v3029, %v3038
      %vm3043 = vmand %vm3041, %vm3042
      %vm3044 = vmor %vm3040, %vm3043
      %v3045 = vlaneseq
      %v3046 = vshrl.u32 %v3045, 7
      %v3047 = vand.u32 %v3046, 1
      %vm3048 = vcmp.ne.s32.totalorder %v3047, 0
      %vm3049 = vmxor %vm3044, %vm3048
      %v3050 = vsel %vm3049, %v3028, %v3034
      %v3051 = vsel %vm3049, %v3029, %v3038
      %3052 = xla_tuple %v3050, %v3051
      %3053 = vst [vmem:[#allocation11] sm:$0xff] %v3050
      %3054 = vst [vmem:[#allocation13] sm:$0xff] %v3051
      %3055 = xla_tuple %3053, %3054
      %3056 = xla_tuple [#allocation12], [#allocation14]
      %v3057 = vld [vmem:[#allocation12] sm:$0xff]
      %v3058 = vld [vmem:[#allocation14] sm:$0xff]
      %3059 = xla_tuple %v3057, %v3058
      %v3061 = vunpack.c.l.s4 839939668
      %v3062 = vunpack.c.0.s8 %v3061
      %v3063 = vperm.slane %v3057, %v3062
      %v3065 = vunpack.c.l.s4 839939668
      %v3066 = vunpack.c.0.s8 %v3065
      %v3067 = vperm.slane %v3058, %v3066
      %3068 = xla_tuple %v3063, %v3067
      %vm3069 = vcmp.gt.s32.totalorder %v3057, %v3063
      %vm3070 = vcmp.eq.s32.totalorder %v3057, %v3063
      %vm3071 = vcmp.lt.s32.totalorder %v3058, %v3067
      %vm3072 = vmand %vm3070, %vm3071
      %vm3073 = vmor %vm3069, %vm3072
      %v3074 = vlaneseq
      %v3075 = vshrl.u32 %v3074, 7
      %v3076 = vand.u32 %v3075, 4
      %vm3077 = vcmp.ne.s32.totalorder %v3076, 0
      %vm3078 = vmxor %vm3073, %vm3077
      %v3079 = vsel %vm3078, %v3057, %v3063
      %v3080 = vsel %vm3078, %v3058, %v3067
      %3081 = xla_tuple %v3079, %v3080
      %v3083 = vunpack.c.l.s4 1417023538
      %v3084 = vunpack.c.0.s8 %v3083
      %v3085 = vperm.slane %v3079, %v3084
      %v3087 = vunpack.c.l.s4 1417023538
      %v3088 = vunpack.c.0.s8 %v3087
      %v3089 = vperm.slane %v3080, %v3088
      %3090 = xla_tuple %v3085, %v3089
      %vm3091 = vcmp.gt.s32.totalorder %v3079, %v3085
      %vm3092 = vcmp.eq.s32.totalorder %v3079, %v3085
      %vm3093 = vcmp.lt.s32.totalorder %v3080, %v3089
      %vm3094 = vmand %vm3092, %vm3093
      %vm3095 = vmor %vm3091, %vm3094
      %v3096 = vlaneseq
      %v3097 = vshrl.u32 %v3096, 7
      %v3098 = vand.u32 %v3097, 2
      %vm3099 = vcmp.ne.s32.totalorder %v3098, 0
      %vm3100 = vmxor %vm3095, %vm3099
      %v3101 = vsel %vm3100, %v3079, %v3085
      %v3102 = vsel %vm3100, %v3080, %v3089
      %3103 = xla_tuple %v3101, %v3102
      %v3105 = vunpack.c.l.s4 1732584193
      %v3106 = vunpack.c.0.s8 %v3105
      %v3107 = vperm.slane %v3101, %v3106
      %v3109 = vunpack.c.l.s4 1732584193
      %v3110 = vunpack.c.0.s8 %v3109
      %v3111 = vperm.slane %v3102, %v3110
      %3112 = xla_tuple %v3107, %v3111
      %vm3113 = vcmp.gt.s32.totalorder %v3101, %v3107
      %vm3114 = vcmp.eq.s32.totalorder %v3101, %v3107
      %vm3115 = vcmp.lt.s32.totalorder %v3102, %v3111
      %vm3116 = vmand %vm3114, %vm3115
      %vm3117 = vmor %vm3113, %vm3116
      %v3118 = vlaneseq
      %v3119 = vshrl.u32 %v3118, 7
      %v3120 = vand.u32 %v3119, 1
      %vm3121 = vcmp.ne.s32.totalorder %v3120, 0
      %vm3122 = vmxor %vm3117, %vm3121
      %v3123 = vsel %vm3122, %v3101, %v3107
      %v3124 = vsel %vm3122, %v3102, %v3111
      %3125 = xla_tuple %v3123, %v3124
      %3126 = vst [vmem:[#allocation12] sm:$0xff] %v3123
      %3127 = vst [vmem:[#allocation14] sm:$0xff] %v3124
      %3128 = xla_tuple %3126, %3127
      %v3129 = vld [vmem:[#allocation12] sm:$0xff]
      %v3130 = vld [vmem:[#allocation14] sm:$0xff]
      %3131 = xla_tuple %v3129, %v3130
      %v3133 = vunpack.c.l.s4 839939668
      %v3134 = vunpack.c.0.s8 %v3133
      %v3135 = vperm.slane %v3129, %v3134
      %v3137 = vunpack.c.l.s4 839939668
      %v3138 = vunpack.c.0.s8 %v3137
      %v3139 = vperm.slane %v3130, %v3138
      %3140 = xla_tuple %v3135, %v3139
      %vm3141 = vcmp.gt.s32.totalorder %v3129, %v3135
      %vm3142 = vcmp.eq.s32.totalorder %v3129, %v3135
      %vm3143 = vcmp.lt.s32.totalorder %v3130, %v3139
      %vm3144 = vmand %vm3142, %vm3143
      %vm3145 = vmor %vm3141, %vm3144
      %v3146 = vlaneseq
      %v3147 = vshrl.u32 %v3146, 7
      %v3148 = vand.u32 %v3147, 4
      %vm3149 = vcmp.ne.s32.totalorder %v3148, 0
      %vm3150 = vmxor %vm3145, %vm3149
      %v3151 = vsel %vm3150, %v3129, %v3135
      %v3152 = vsel %vm3150, %v3130, %v3139
      %3153 = xla_tuple %v3151, %v3152
      %v3155 = vunpack.c.l.s4 1417023538
      %v3156 = vunpack.c.0.s8 %v3155
      %v3157 = vperm.slane %v3151, %v3156
      %v3159 = vunpack.c.l.s4 1417023538
      %v3160 = vunpack.c.0.s8 %v3159
      %v3161 = vperm.slane %v3152, %v3160
      %3162 = xla_tuple %v3157, %v3161
      %vm3163 = vcmp.gt.s32.totalorder %v3151, %v3157
      %vm3164 = vcmp.eq.s32.totalorder %v3151, %v3157
      %vm3165 = vcmp.lt.s32.totalorder %v3152, %v3161
      %vm3166 = vmand %vm3164, %vm3165
      %vm3167 = vmor %vm3163, %vm3166
      %v3168 = vlaneseq
      %v3169 = vshrl.u32 %v3168, 7
      %v3170 = vand.u32 %v3169, 2
      %vm3171 = vcmp.ne.s32.totalorder %v3170, 0
      %vm3172 = vmxor %vm3167, %vm3171
      %v3173 = vsel %vm3172, %v3151, %v3157
      %v3174 = vsel %vm3172, %v3152, %v3161
      %3175 = xla_tuple %v3173, %v3174
      %v3177 = vunpack.c.l.s4 1732584193
      %v3178 = vunpack.c.0.s8 %v3177
      %v3179 = vperm.slane %v3173, %v3178
      %v3181 = vunpack.c.l.s4 1732584193
      %v3182 = vunpack.c.0.s8 %v3181
      %v3183 = vperm.slane %v3174, %v3182
      %3184 = xla_tuple %v3179, %v3183
      %vm3185 = vcmp.gt.s32.totalorder %v3173, %v3179
      %vm3186 = vcmp.eq.s32.totalorder %v3173, %v3179
      %vm3187 = vcmp.lt.s32.totalorder %v3174, %v3183
      %vm3188 = vmand %vm3186, %vm3187
      %vm3189 = vmor %vm3185, %vm3188
      %v3190 = vlaneseq
      %v3191 = vshrl.u32 %v3190, 7
      %v3192 = vand.u32 %v3191, 1
      %vm3193 = vcmp.ne.s32.totalorder %v3192, 0
      %vm3194 = vmxor %vm3189, %vm3193
      %v3195 = vsel %vm3194, %v3173, %v3179
      %v3196 = vsel %vm3194, %v3174, %v3183
      %3197 = xla_tuple %v3195, %v3196
      %3198 = vst [vmem:[#allocation12] sm:$0xff] %v3195
      %3199 = vst [vmem:[#allocation14] sm:$0xff] %v3196
      %3200 = xla_tuple %3198, %3199
    %v3201 = vld [vmem:[#allocation11] sm:$0xff]
    %vm3202 = vcmp.lt.s32.totalorder %v3201, 0
    %v3203 = vsub.s32 2147483647, %v3201
    %v3204 = vsel %vm3202, %v3203, %v3201
    %3205 = vst [vmem:[#allocation11] sm:$0xff] %v3204
    %v3206 = vld [vmem:[#allocation11] sm:$0xff]
    %3207 = vst [vmem:[#allocation7] sm:$0xff] %v3206
    %v3208 = vld [vmem:[#allocation13] sm:$0xff]
    %3209 = vst [vmem:[#allocation9] sm:$0xff] %v3208
    %s3211 = ssub.s32 2, 1
    %v3212 = vld [vmem:[#allocation7] sm:%s3211]
    %s3214 = ssub.s32 2, 1
    %3215 = vst [vmem:[#allocation8] sm:%s3214] %v3212
    %s3217 = ssub.s32 2, 1
    %v3218 = vld [vmem:[#allocation9] sm:%s3217]
    %s3220 = ssub.s32 2, 1
    %3221 = vst [vmem:[#allocation10] sm:%s3220] %v3218
    // Predicated region
    $region52: #{custom-call} parent=1 // pred_check
      _
    $region53: #{custom-call} parent=1 // pred_check_branch
      %3223 = sbr.rel (0) target = $region55
    $region54: #{custom-call} parent=1 // pred_region
      // Predicated region
      $region56: #{custom-call} parent=54 // pred_check
        _
      $region57: #{custom-call} parent=54 // pred_check_branch
        %3225 = sbr.rel target = $region59
      $region58: #{custom-call} parent=54 // pred_region
        // Predicated region
        $region71: #{custom-call} parent=58 // pred_check
          _
        $region72: #{custom-call} parent=58 // pred_check_branch
          %3241 = sbr.rel (0) target = $region74
        $region73: #{custom-call} parent=58 // pred_region
          %s3243 = ssub.s32 2, 1
          loop: start=0, step=1, limit=1
          $region75: #{custom-call} parent=73 // loop_pre_header
            _
          $region76: #{custom-call} parent=73 // loop_header
            %s3245 = sphi 0, %s3249
            %p3246 = scmp.ge.s32.totalorder %s3245, 1
            %s3250 = sphi [#allocation8], [#allocation8]
            %s3251 = sphi %s1, %s1
          $region77: #{custom-call} parent=73 // loop_header_branch
            %3248 = sbr.rel (%p3246) target = $region81
          $region78: #{custom-call} parent=73 // loop_body
            %v3252 = vld [vmem:[%s3250] sm:%s3243]
            %3253 = vst [vmem:[%s3251] sm:%s3243] %v3252
          $region79: #{custom-call} parent=73 // loop_footer
            %s3249 = sadd.s32 1, %s3245
          $region80: #{custom-call} parent=73 // loop_footer_branch
            %3244 = sbr.rel target = $region76
          $region81: #{custom-call} parent=73 // loop_exit
            _
        $region74: #{custom-call} parent=58 // pred_fallthru
          _
      $region59: #{custom-call} parent=54 // pred_fallthru
        _
      // Predicated region
      $region60: #{custom-call} parent=54 // pred_check
        _
      $region61: #{custom-call} parent=54 // pred_check_branch
        %3227 = sbr.rel (0) target = $region63
      $region62: #{custom-call} parent=54 // pred_region
        %s3229 = ssub.s32 2, 1
        loop: start=0, step=1, limit=1
        $region64: #{custom-call} parent=62 // loop_pre_header
          _
        $region65: #{custom-call} parent=62 // loop_header
          %s3231 = sphi 0, %s3235
          %p3232 = scmp.ge.s32.totalorder %s3231, 1
          %s3236 = sphi [#allocation8], [#allocation8]
          %s3237 = sphi %s1, %s1
        $region66: #{custom-call} parent=62 // loop_header_branch
          %3234 = sbr.rel (%p3232) target = $region70
        $region67: #{custom-call} parent=62 // loop_body
          %v3238 = vld [vmem:[%s3236] sm:%s3229]
          %3239 = vst [vmem:[%s3237] sm:%s3229] %v3238
        $region68: #{custom-call} parent=62 // loop_footer
          %s3235 = sadd.s32 1, %s3231
        $region69: #{custom-call} parent=62 // loop_footer_branch
          %3230 = sbr.rel target = $region65
        $region70: #{custom-call} parent=62 // loop_exit
          _
      $region63: #{custom-call} parent=54 // pred_fallthru
        _
    $region55: #{custom-call} parent=1 // pred_fallthru
      _
    %3254 = vnop
    // Predicated region
    $region82: #{custom-call} parent=1 // pred_check
      _
    $region83: #{custom-call} parent=1 // pred_check_branch
      %3256 = sbr.rel (0) target = $region85
    $region84: #{custom-call} parent=1 // pred_region
      // Predicated region
      $region86: #{custom-call} parent=84 // pred_check
        _
      $region87: #{custom-call} parent=84 // pred_check_branch
        %3258 = sbr.rel target = $region89
      $region88: #{custom-call} parent=84 // pred_region
        // Predicated region
        $region101: #{custom-call} parent=88 // pred_check
          _
        $region102: #{custom-call} parent=88 // pred_check_branch
          %3274 = sbr.rel (0) target = $region104
        $region103: #{custom-call} parent=88 // pred_region
          %s3276 = ssub.s32 2, 1
          loop: start=0, step=1, limit=1
          $region105: #{custom-call} parent=103 // loop_pre_header
            _
          $region106: #{custom-call} parent=103 // loop_header
            %s3278 = sphi 0, %s3282
            %p3279 = scmp.ge.s32.totalorder %s3278, 1
            %s3283 = sphi [#allocation10], [#allocation10]
            %s3284 = sphi %s2, %s2
          $region107: #{custom-call} parent=103 // loop_header_branch
            %3281 = sbr.rel (%p3279) target = $region111
          $region108: #{custom-call} parent=103 // loop_body
            %v3285 = vld [vmem:[%s3283] sm:%s3276]
            %3286 = vst [vmem:[%s3284] sm:%s3276] %v3285
          $region109: #{custom-call} parent=103 // loop_footer
            %s3282 = sadd.s32 1, %s3278
          $region110: #{custom-call} parent=103 // loop_footer_branch
            %3277 = sbr.rel target = $region106
          $region111: #{custom-call} parent=103 // loop_exit
            _
        $region104: #{custom-call} parent=88 // pred_fallthru
          _
      $region89: #{custom-call} parent=84 // pred_fallthru
        _
      // Predicated region
      $region90: #{custom-call} parent=84 // pred_check
        _
      $region91: #{custom-call} parent=84 // pred_check_branch
        %3260 = sbr.rel (0) target = $region93
      $region92: #{custom-call} parent=84 // pred_region
        %s3262 = ssub.s32 2, 1
        loop: start=0, step=1, limit=1
        $region94: #{custom-call} parent=92 // loop_pre_header
          _
        $region95: #{custom-call} parent=92 // loop_header
          %s3264 = sphi 0, %s3268
          %p3265 = scmp.ge.s32.totalorder %s3264, 1
          %s3269 = sphi [#allocation10], [#allocation10]
          %s3270 = sphi %s2, %s2
        $region96: #{custom-call} parent=92 // loop_header_branch
          %3267 = sbr.rel (%p3265) target = $region100
        $region97: #{custom-call} parent=92 // loop_body
          %v3271 = vld [vmem:[%s3269] sm:%s3262]
          %3272 = vst [vmem:[%s3270] sm:%s3262] %v3271
        $region98: #{custom-call} parent=92 // loop_footer
          %s3268 = sadd.s32 1, %s3264
        $region99: #{custom-call} parent=92 // loop_footer_branch
          %3263 = sbr.rel target = $region95
        $region100: #{custom-call} parent=92 // loop_exit
          _
      $region93: #{custom-call} parent=84 // pred_fallthru
        _
    $region85: #{custom-call} parent=1 // pred_fallthru
      _
    %3287 = vnop

// kernel: llama4_text_moe.1
$region0: #{llama4_text_moe.1}
  #allocation0 [shape = 'u32[]', space=smem, size = 0x4, offset = 0x4, fixed_abs, tag = 'smem constant byte address 0x4 - core index']
  #allocation1 [shape = 'u32[72,128]{1,0:T(1,128)}', space=vmem, size = 0x9000, scoped, tag = 'internal scratch']
  #allocation2 [shape = 'f32[8,128]{1,0:T(8,128)}', space=vmem, size = 0x1000, scoped, tag = 'scratch operand']
  #allocation3 [shape = 's32[1]{0}', space=sflag, size = 0x4, scoped, tag = 'scoped memory for llama4_text_moe.1']
  #allocation4 [shape = 'u8[1024]{0}', space=smem, size = 0x400, scoped, tag = 'prefetched SMEM operand 0']
  #allocation5 [shape = 'u8[1024]{0}', space=smem, size = 0x400, scoped, tag = 'prefetched SMEM operand 1']
  %s0 = inlined_call_operand.vmem [shape: s32[2,9], index: 0, kind: input, shape index: {}]
  %s1 = inlined_call_operand.vmem [shape: s32[2,9], index: 1, kind: input, shape index: {}]
  %s2 = inlined_call_operand.vmem [shape: f32[16,128], index: 2, kind: input, shape index: {}]
  %s3 = inlined_call_operand.vmem [shape: f32[2,9,8,1], index: 3, kind: input, shape index: {}]
  %s4 = inlined_call_operand.vmem [shape: bf16[9,128,512], index: 4, kind: input, shape index: {}]
  %s5 = inlined_call_operand.vmem [shape: bf16[9,256,128], index: 5, kind: input, shape index: {}]
  %s6 = inlined_call_operand.hbm [shape: f32[16,128], index: 6, kind: output, shape index: {}]
  %s7 = sld [smem:[#allocation0]]
  $region99: #{llama4_text_moe.1} parent=0
    _
  %s9 = ssub.s32 1, %s7
  %s10 = scalar_select 0, %s9, %s7
  %s12 = sshll.u32 %s0, 4
  %s13 = int_to_ptr.vmem [resolvable:$true] %s12
  %15 = dma.vmem_to_smem %s13, 32, [#allocation4], [#allocation3]
  %s17 = sshll.u32 %s1, 4
  %s18 = int_to_ptr.vmem [resolvable:$true] %s17
  %20 = dma.vmem_to_smem %s18, 32, [#allocation5], [#allocation3]
  %22 = dma.done [#allocation3], 64
  %23 = sfence
  $region1: #{llama4_text_moe.1} parent=0
    #allocation6 [shape = 'u8[131072]{0}', space=vmem, size = 0x20000, scoped, tag = 'input window, operand 4']
    #allocation7 [shape = 'u8[8192]{0}', space=vmem, size = 0x2000, scoped, tag = 'output window, operand 0']
    #allocation8 [shape = 's32[2]{0}', space=sflag, size = 0x8, scoped, tag = 'scoped memory for llama4_text_moe.1']
    %24 = vsyncpa [#allocation8], 0
    %s25 = scalar_lea.sflag [#allocation8], 1
    %26 = vsyncpa %s25, 0
    loop: start=0, step=1, limit=38
    $region2: #{llama4_text_moe.1} parent=1 // loop_pre_header
      _
    $region3: #{llama4_text_moe.1} parent=1 // loop_header
      %s28 = sphi 0, %s32
      %p29 = scmp.ge.s32.totalorder %s28, 38
      %s35 = sphi 0, %s54
      %s36 = sphi 0, %s50
      %s37 = sphi 0, %s46
      %s38 = sphi 0, %s35
      %s39 = sphi 0, %s36
      %s40 = sphi 0, %s37
      %s41 = sphi 0, %s38
      %s42 = sphi 0, %s39
      %s43 = sphi 0, %s40
      %s57 = sphi 0, %s59
      %s60 = sphi 0, %s57
      %s61 = sphi 0, %s60
      %s77 = sphi 0, %s61
      %s85 = sphi 0, %s87
      %s88 = sphi 0, %s85
      %s89 = sphi 0, %s88
      %s105 = sphi 0, %s89
      %s129 = sphi 0, %s131
      %s132 = sphi 0, %s129
      %s133 = sphi 0, %s132
      %s149 = sphi 0, %s133
      %s173 = sphi 0, %s175
      %s176 = sphi 0, %s173
      %s177 = sphi 0, %s176
      %s193 = sphi 0, %s177
      %s199 = sphi 0, %s201
      %s202 = sphi 0, %s199
      %s203 = sphi 0, %s202
      %s219 = sphi 0, %s203
    $region4: #{llama4_text_moe.1} parent=1 // loop_header_branch
      %31 = sbr.rel (%p29) target = $region8
    $region5: #{llama4_text_moe.1} parent=1 // loop_body
      %s33 = ssub.s32 %s28, 1
      %s34 = ssub.s32 %s28, 2
      %s44 = sadd.s32 1, %s37
      %p45 = scmp.ge.s32.totalorder %s44, 9
      %s46 = scalar_select %p45, 0, %s44
      %s47 = sadd.s32 1, %s36
      %s48 = scalar_select %p45, %s47, %s36
      %p49 = scmp.ge.s32.totalorder %s48, 2
      %s50 = scalar_select %p49, 0, %s48
      %s51 = sadd.s32 1, %s35
      %s52 = scalar_select %p49, %s51, %s35
      %p53 = scmp.ge.s32.totalorder %s52, 2
      %s54 = scalar_select %p53, 0, %s52
      %s55 = ssub.s32 %s35, %s54
      %p56 = scmp.eq.s32.totalorder %s55, 0
      %s58 = sadd.s32 %s57, 1
      %s59 = scalar_select %p56, %s57, %s58
      %p62 = pneg %p56
      %p63 = scmp.eq.s32.totalorder %s28, 35
      %p64 = por %p62, %p63
      %p65 = scmp.ne.s32.totalorder %s57, %s60
      %p66 = scmp.eq.s32.totalorder %s28, 0
      %p67 = por %p65, %p66
      %p68 = scmp.ne.s32.totalorder %s57, %s60
      %p69 = scmp.eq.s32.totalorder %s33, 35
      %p70 = por %p68, %p69
      %p71 = scmp.ne.s32.totalorder %s60, %s61
      %p72 = scmp.eq.s32.totalorder %s33, 0
      %p73 = por %p71, %p72
      %p74 = scmp.ne.s32.totalorder %s60, %s61
      %p75 = scmp.eq.s32.totalorder %s34, 35
      %p76 = por %p74, %p75
      %p78 = scmp.ne.s32.totalorder %s61, %s77
      %p79 = scmp.eq.s32.totalorder %s34, 0
      %p80 = por %p78, %p79
      %s81 = ssub.s32 %s35, %s54
      %s82 = ssub.s32 %s37, %s46
      %s83 = sor.u32 %s81, %s82
      %p84 = scmp.eq.s32.totalorder %s83, 0
      %s86 = sadd.s32 %s85, 1
      %s87 = scalar_select %p84, %s85, %s86
      %p90 = pneg %p84
      %p91 = scmp.eq.s32.totalorder %s28, 35
      %p92 = por %p90, %p91
      %p93 = scmp.ne.s32.totalorder %s85, %s88
      %p94 = scmp.eq.s32.totalorder %s28, 0
      %p95 = por %p93, %p94
      %p96 = scmp.ne.s32.totalorder %s85, %s88
      %p97 = scmp.eq.s32.totalorder %s33, 35
      %p98 = por %p96, %p97
      %p99 = scmp.ne.s32.totalorder %s88, %s89
      %p100 = scmp.eq.s32.totalorder %s33, 0
      %p101 = por %p99, %p100
      %p102 = scmp.ne.s32.totalorder %s88, %s89
      %p103 = scmp.eq.s32.totalorder %s34, 35
      %p104 = por %p102, %p103
      %p106 = scmp.ne.s32.totalorder %s89, %s105
      %p107 = scmp.eq.s32.totalorder %s34, 0
      %p108 = por %p106, %p107
      %s109 = sshra.s32 %s37, 7
      %s110 = sand.u32 %s37, 127
      %s111 = sadd.s32 %s109, %s35
      %s112 = smul.u32 %s111, 128
      %s113 = sshra.s32 %s37, 7
      %s114 = sand.u32 %s37, 127
      %s115 = sadd.s32 %s112, %s114
      %s116 = sld [smem:[#allocation5 + %s115]]
      %s117 = sshra.s32 %s46, 7
      %s118 = sand.u32 %s46, 127
      %s119 = sadd.s32 %s117, %s54
      %s120 = smul.u32 %s119, 128
      %s121 = sshra.s32 %s46, 7
      %s122 = sand.u32 %s46, 127
      %s123 = sadd.s32 %s120, %s122
      %s124 = sld [smem:[#allocation5 + %s123]]
      %s125 = ssub.s32 %s116, %s124
      %s126 = ssub.s32 %s36, %s50
      %s127 = sor.u32 %s125, %s126
      %p128 = scmp.eq.s32.totalorder %s127, 0
      %s130 = sadd.s32 %s129, 1
      %s131 = scalar_select %p128, %s129, %s130
      %p134 = pneg %p128
      %p135 = scmp.eq.s32.totalorder %s28, 35
      %p136 = por %p134, %p135
      %p137 = scmp.ne.s32.totalorder %s129, %s132
      %p138 = scmp.eq.s32.totalorder %s28, 0
      %p139 = por %p137, %p138
      %p140 = scmp.ne.s32.totalorder %s129, %s132
      %p141 = scmp.eq.s32.totalorder %s33, 35
      %p142 = por %p140, %p141
      %p143 = scmp.ne.s32.totalorder %s132, %s133
      %p144 = scmp.eq.s32.totalorder %s33, 0
      %p145 = por %p143, %p144
      %p146 = scmp.ne.s32.totalorder %s132, %s133
      %p147 = scmp.eq.s32.totalorder %s34, 35
      %p148 = por %p146, %p147
      %p150 = scmp.ne.s32.totalorder %s133, %s149
      %p151 = scmp.eq.s32.totalorder %s34, 0
      %p152 = por %p150, %p151
      %s153 = sshra.s32 %s37, 7
      %s154 = sand.u32 %s37, 127
      %s155 = sadd.s32 %s153, %s35
      %s156 = smul.u32 %s155, 128
      %s157 = sshra.s32 %s37, 7
      %s158 = sand.u32 %s37, 127
      %s159 = sadd.s32 %s156, %s158
      %s160 = sld [smem:[#allocation5 + %s159]]
      %s161 = sshra.s32 %s46, 7
      %s162 = sand.u32 %s46, 127
      %s163 = sadd.s32 %s161, %s54
      %s164 = smul.u32 %s163, 128
      %s165 = sshra.s32 %s46, 7
      %s166 = sand.u32 %s46, 127
      %s167 = sadd.s32 %s164, %s166
      %s168 = sld [smem:[#allocation5 + %s167]]
      %s169 = ssub.s32 %s160, %s168
      %s170 = ssub.s32 %s36, %s50
      %s171 = sor.u32 %s169, %s170
      %p172 = scmp.eq.s32.totalorder %s171, 0
      %s174 = sadd.s32 %s173, 1
      %s175 = scalar_select %p172, %s173, %s174
      %p178 = pneg %p172
      %p179 = scmp.eq.s32.totalorder %s28, 35
      %p180 = por %p178, %p179
      %p181 = scmp.ne.s32.totalorder %s173, %s176
      %p182 = scmp.eq.s32.totalorder %s28, 0
      %p183 = por %p181, %p182
      %p184 = scmp.ne.s32.totalorder %s173, %s176
      %p185 = scmp.eq.s32.totalorder %s33, 35
      %p186 = por %p184, %p185
      %p187 = scmp.ne.s32.totalorder %s176, %s177
      %p188 = scmp.eq.s32.totalorder %s33, 0
      %p189 = por %p187, %p188
      %p190 = scmp.ne.s32.totalorder %s176, %s177
      %p191 = scmp.eq.s32.totalorder %s34, 35
      %p192 = por %p190, %p191
      %p194 = scmp.ne.s32.totalorder %s177, %s193
      %p195 = scmp.eq.s32.totalorder %s34, 0
      %p196 = por %p194, %p195
      %s197 = ssub.s32 %s35, %s54
      %p198 = scmp.eq.s32.totalorder %s197, 0
      %s200 = sadd.s32 %s199, 1
      %s201 = scalar_select %p198, %s199, %s200
      %p204 = pneg %p198
      %p205 = scmp.eq.s32.totalorder %s28, 35
      %p206 = por %p204, %p205
      %p207 = scmp.ne.s32.totalorder %s199, %s202
      %p208 = scmp.eq.s32.totalorder %s28, 0
      %p209 = por %p207, %p208
      %p210 = scmp.ne.s32.totalorder %s199, %s202
      %p211 = scmp.eq.s32.totalorder %s33, 35
      %p212 = por %p210, %p211
      %p213 = scmp.ne.s32.totalorder %s202, %s203
      %p214 = scmp.eq.s32.totalorder %s33, 0
      %p215 = por %p213, %p214
      %p216 = scmp.ne.s32.totalorder %s202, %s203
      %p217 = scmp.eq.s32.totalorder %s34, 35
      %p218 = por %p216, %p217
      %p220 = scmp.ne.s32.totalorder %s203, %s219
      %p221 = scmp.eq.s32.totalorder %s34, 0
      %p222 = por %p220, %p221
      %p223 = scmp.le.s32.totalorder 1, %s28
      %p224 = scmp.lt.s32.totalorder %s28, 37
      %p225 = pnand %p223, %p224
      %p226 = pneg %p225
      // Predicated region
      $region9: #{llama4_text_moe.1} parent=5 // pred_check
        _
      $region10: #{llama4_text_moe.1} parent=5 // pred_check_branch
        %228 = sbr.rel (%p225) target = $region12
      $region11: #{llama4_text_moe.1} parent=5 // pred_region
        %s229 = ssub.s32 %s28, 1
      $region12: #{llama4_text_moe.1} parent=5 // pred_fallthru
        _
      %p230 = scmp.lt.s32.totalorder %s28, 36
      // Predicated region
      $region13: #{llama4_text_moe.1} parent=5 // pred_check
        %p231 = pneg %p230
      $region14: #{llama4_text_moe.1} parent=5 // pred_check_branch
        %233 = sbr.rel (%p231) target = $region16
      $region15: #{llama4_text_moe.1} parent=5 // pred_region
        // Predicated region
        $region17: #{llama4_text_moe.1} parent=15 // pred_check
          %p234 = pneg %p67
        $region18: #{llama4_text_moe.1} parent=15 // pred_check_branch
          %236 = sbr.rel (%p234) target = $region20
        $region19: #{llama4_text_moe.1} parent=15 // pred_region
          %p237 = scmp.lt.s32.totalorder %s35, 1
          %s238 = scalar_select %p237, %s35, 1
          %s239 = smul.addr %s238, 8
          %s240 = scalar_lea.vmem %s2, %s239
        $region20: #{llama4_text_moe.1} parent=15 // pred_fallthru
          _
        // Predicated region
        $region21: #{llama4_text_moe.1} parent=15 // pred_check
          %p241 = pneg %p95
        $region22: #{llama4_text_moe.1} parent=15 // pred_check_branch
          %243 = sbr.rel (%p241) target = $region24
        $region23: #{llama4_text_moe.1} parent=15 // pred_region
          %p244 = scmp.lt.s32.totalorder %s35, 1
          %s245 = scalar_select %p244, %s35, 1
          %p246 = scmp.lt.s32.totalorder %s37, 8
          %s247 = scalar_select %p246, %s37, 8
          %s248 = smul.addr %s245, 9
          %s249 = sadd.s32 %s247, %s248
          %s250 = smul.addr %s249, 8
          %s251 = scalar_lea.vmem %s3, %s250
        $region24: #{llama4_text_moe.1} parent=15 // pred_fallthru
          _
        // Predicated region
        $region25: #{llama4_text_moe.1} parent=15 // pred_check
          %p252 = pneg %p139
        $region26: #{llama4_text_moe.1} parent=15 // pred_check_branch
          %254 = sbr.rel (%p252) target = $region28
        $region27: #{llama4_text_moe.1} parent=15 // pred_region
          %s255 = sand.u32 %s129, 1
          %s256 = sand.u32 %s129, 1
          %s257 = smul.addr %s256, 128
          %s258 = scalar_lea.vmem [#allocation6], %s257
          %s259 = sshra.s32 %s37, 7
          %s260 = sand.u32 %s37, 127
          %s261 = sadd.s32 %s259, %s35
          %s262 = smul.u32 %s261, 128
          %s263 = sshra.s32 %s37, 7
          %s264 = sand.u32 %s37, 127
          %s265 = sadd.s32 %s262, %s264
          %s266 = sld [smem:[#allocation5 + %s265]]
          %s267 = smul.u32 2, %s36
          %s268 = smul.addr %s266, 64
          %s269 = sadd.s32 %s267, %s268
          %s270 = smul.addr %s269, 4
          %s271 = scalar_lea.vmem %s4, %s270
          // Predicated region
          $region29: #{llama4_text_moe.1} parent=27 // pred_check
            _
          $region30: #{llama4_text_moe.1} parent=27 // pred_check_branch
            %273 = sbr.rel (0) target = $region32
          $region31: #{llama4_text_moe.1} parent=27 // pred_region
            // Predicated region
            $region33: #{llama4_text_moe.1} parent=31 // pred_check
              _
            $region34: #{llama4_text_moe.1} parent=31 // pred_check_branch
              %275 = sbr.rel (0) target = $region36
            $region35: #{llama4_text_moe.1} parent=31 // pred_region
              // Predicated region
              $region48: #{llama4_text_moe.1} parent=35 // pred_check
                _
              $region49: #{llama4_text_moe.1} parent=35 // pred_check_branch
                %321 = sbr.rel (0) target = $region51
              $region50: #{llama4_text_moe.1} parent=35 // pred_region
                loop: start=0, step=1, limit=1
                $region52: #{llama4_text_moe.1} parent=50 // loop_pre_header
                  _
                $region53: #{llama4_text_moe.1} parent=50 // loop_header
                  %s323 = sphi 0, %s327
                  %p324 = scmp.ge.s32.totalorder %s323, 1
                  %s328 = sphi %s271, %s271
                  %s329 = sphi %s258, %s258
                $region54: #{llama4_text_moe.1} parent=50 // loop_header_branch
                  %326 = sbr.rel (%p324) target = $region58
                $region55: #{llama4_text_moe.1} parent=50 // loop_body
                  %v330 = vld [vmem:[%s328] sm:$0xff]
                  %331 = vst [vmem:[%s329] sm:$0xff] %v330
                  %v332 = vld [vmem:[%s328 + $0x10] sm:$0xff]
                  %333 = vst [vmem:[%s329 + $0x8] sm:$0xff] %v332
                  %v334 = vld [vmem:[%s328 + $0x20] sm:$0xff]
                  %335 = vst [vmem:[%s329 + $0x10] sm:$0xff] %v334
                  %v336 = vld [vmem:[%s328 + $0x30] sm:$0xff]
                  %337 = vst [vmem:[%s329 + $0x18] sm:$0xff] %v336
                  %v338 = vld [vmem:[%s328 + $0x40] sm:$0xff]
                  %339 = vst [vmem:[%s329 + $0x20] sm:$0xff] %v338
                  %v340 = vld [vmem:[%s328 + $0x50] sm:$0xff]
                  %341 = vst [vmem:[%s329 + $0x28] sm:$0xff] %v340
                  %v342 = vld [vmem:[%s328 + $0x60] sm:$0xff]
                  %343 = vst [vmem:[%s329 + $0x30] sm:$0xff] %v342
                  %v344 = vld [vmem:[%s328 + $0x70] sm:$0xff]
                  %345 = vst [vmem:[%s329 + $0x38] sm:$0xff] %v344
                  %v346 = vld [vmem:[%s328 + $0x80] sm:$0xff]
                  %347 = vst [vmem:[%s329 + $0x40] sm:$0xff] %v346
                  %v348 = vld [vmem:[%s328 + $0x90] sm:$0xff]
                  %349 = vst [vmem:[%s329 + $0x48] sm:$0xff] %v348
                  %v350 = vld [vmem:[%s328 + $0xa0] sm:$0xff]
                  %351 = vst [vmem:[%s329 + $0x50] sm:$0xff] %v350
                  %v352 = vld [vmem:[%s328 + $0xb0] sm:$0xff]
                  %353 = vst [vmem:[%s329 + $0x58] sm:$0xff] %v352
                  %v354 = vld [vmem:[%s328 + $0xc0] sm:$0xff]
                  %355 = vst [vmem:[%s329 + $0x60] sm:$0xff] %v354
                  %v356 = vld [vmem:[%s328 + $0xd0] sm:$0xff]
                  %357 = vst [vmem:[%s329 + $0x68] sm:$0xff] %v356
                  %v358 = vld [vmem:[%s328 + $0xe0] sm:$0xff]
                  %359 = vst [vmem:[%s329 + $0x70] sm:$0xff] %v358
                  %v360 = vld [vmem:[%s328 + $0xf0] sm:$0xff]
                  %361 = vst [vmem:[%s329 + $0x78] sm:$0xff] %v360
                $region56: #{llama4_text_moe.1} parent=50 // loop_footer
                  %s327 = sadd.s32 1, %s323
                $region57: #{llama4_text_moe.1} parent=50 // loop_footer_branch
                  %322 = sbr.rel target = $region53
                $region58: #{llama4_text_moe.1} parent=50 // loop_exit
                  _
              $region51: #{llama4_text_moe.1} parent=35 // pred_fallthru
                _
              // Predicated region
              $region59: #{llama4_text_moe.1} parent=35 // pred_check
                _
              $region60: #{llama4_text_moe.1} parent=35 // pred_check_branch
                %363 = sbr.rel target = $region62
              $region61: #{llama4_text_moe.1} parent=35 // pred_region
                _
              $region62: #{llama4_text_moe.1} parent=35 // pred_fallthru
                _
            $region36: #{llama4_text_moe.1} parent=31 // pred_fallthru
              _
            // Predicated region
            $region37: #{llama4_text_moe.1} parent=31 // pred_check
              _
            $region38: #{llama4_text_moe.1} parent=31 // pred_check_branch
              %277 = sbr.rel target = $region40
            $region39: #{llama4_text_moe.1} parent=31 // pred_region
              %s279 = ssub.s32 256, 1
              loop: start=0, step=1, limit=1
              $region41: #{llama4_text_moe.1} parent=39 // loop_pre_header
                _
              $region42: #{llama4_text_moe.1} parent=39 // loop_header
                %s281 = sphi 0, %s285
                %p282 = scmp.ge.s32.totalorder %s281, 1
                %s286 = sphi %s271, %s271
                %s287 = sphi %s258, %s258
              $region43: #{llama4_text_moe.1} parent=39 // loop_header_branch
                %284 = sbr.rel (%p282) target = $region47
              $region44: #{llama4_text_moe.1} parent=39 // loop_body
                %v288 = vld [vmem:[%s286] sm:%s279]
                %289 = vst [vmem:[%s287] sm:%s279] %v288
                %v290 = vld [vmem:[%s286 + $0x10] sm:%s279]
                %291 = vst [vmem:[%s287 + $0x8] sm:%s279] %v290
                %v292 = vld [vmem:[%s286 + $0x20] sm:%s279]
                %293 = vst [vmem:[%s287 + $0x10] sm:%s279] %v292
                %v294 = vld [vmem:[%s286 + $0x30] sm:%s279]
                %295 = vst [vmem:[%s287 + $0x18] sm:%s279] %v294
                %v296 = vld [vmem:[%s286 + $0x40] sm:%s279]
                %297 = vst [vmem:[%s287 + $0x20] sm:%s279] %v296
                %v298 = vld [vmem:[%s286 + $0x50] sm:%s279]
                %299 = vst [vmem:[%s287 + $0x28] sm:%s279] %v298
                %v300 = vld [vmem:[%s286 + $0x60] sm:%s279]
                %301 = vst [vmem:[%s287 + $0x30] sm:%s279] %v300
                %v302 = vld [vmem:[%s286 + $0x70] sm:%s279]
                %303 = vst [vmem:[%s287 + $0x38] sm:%s279] %v302
                %v304 = vld [vmem:[%s286 + $0x80] sm:%s279]
                %305 = vst [vmem:[%s287 + $0x40] sm:%s279] %v304
                %v306 = vld [vmem:[%s286 + $0x90] sm:%s279]
                %307 = vst [vmem:[%s287 + $0x48] sm:%s279] %v306
                %v308 = vld [vmem:[%s286 + $0xa0] sm:%s279]
                %309 = vst [vmem:[%s287 + $0x50] sm:%s279] %v308
                %v310 = vld [vmem:[%s286 + $0xb0] sm:%s279]
                %311 = vst [vmem:[%s287 + $0x58] sm:%s279] %v310
                %v312 = vld [vmem:[%s286 + $0xc0] sm:%s279]
                %313 = vst [vmem:[%s287 + $0x60] sm:%s279] %v312
                %v314 = vld [vmem:[%s286 + $0xd0] sm:%s279]
                %315 = vst [vmem:[%s287 + $0x68] sm:%s279] %v314
                %v316 = vld [vmem:[%s286 + $0xe0] sm:%s279]
                %317 = vst [vmem:[%s287 + $0x70] sm:%s279] %v316
                %v318 = vld [vmem:[%s286 + $0xf0] sm:%s279]
                %319 = vst [vmem:[%s287 + $0x78] sm:%s279] %v318
              $region45: #{llama4_text_moe.1} parent=39 // loop_footer
                %s285 = sadd.s32 1, %s281
              $region46: #{llama4_text_moe.1} parent=39 // loop_footer_branch
                %280 = sbr.rel target = $region42
              $region47: #{llama4_text_moe.1} parent=39 // loop_exit
                _
            $region40: #{llama4_text_moe.1} parent=31 // pred_fallthru
              _
          $region32: #{llama4_text_moe.1} parent=27 // pred_fallthru
            _
          %364 = vnop
        $region28: #{llama4_text_moe.1} parent=15 // pred_fallthru
          _
        // Predicated region
        $region63: #{llama4_text_moe.1} parent=15 // pred_check
          %p365 = pneg %p183
        $region64: #{llama4_text_moe.1} parent=15 // pred_check_branch
          %367 = sbr.rel (%p365) target = $region66
        $region65: #{llama4_text_moe.1} parent=15 // pred_region
          %s368 = sshra.s32 %s37, 7
          %s369 = sand.u32 %s37, 127
          %s370 = sadd.s32 %s368, %s35
          %s371 = smul.u32 %s370, 128
          %s372 = sshra.s32 %s37, 7
          %s373 = sand.u32 %s37, 127
          %s374 = sadd.s32 %s371, %s373
          %s375 = sld [smem:[#allocation5 + %s374]]
          %s376 = smul.u32 16, %s36
          %p377 = scmp.lt.s32.totalorder %s375, 8
          %s378 = scalar_select %p377, %s375, 8
          %p379 = scmp.lt.s32.totalorder %s376, 31
          %s380 = scalar_select %p379, %s376, 31
          %s381 = smul.addr %s378, 32
          %s382 = sadd.s32 %s380, %s381
          %s383 = smul.addr %s382, 4
          %s384 = scalar_lea.vmem %s5, %s383
          %s385 = sshra.s32 %s37, 7
          %s386 = sand.u32 %s37, 127
          %s387 = sadd.s32 %s385, %s35
          %s388 = smul.u32 %s387, 128
          %s389 = sshra.s32 %s37, 7
          %s390 = sand.u32 %s37, 127
          %s391 = sadd.s32 %s388, %s390
          %s392 = sld [smem:[#allocation5 + %s391]]
          %s393 = smul.u32 16, %s36
        $region66: #{llama4_text_moe.1} parent=15 // pred_fallthru
          _
      $region16: #{llama4_text_moe.1} parent=5 // pred_fallthru
        _
      %p394 = scmp.le.s32.totalorder 1, %s28
      %p395 = scmp.lt.s32.totalorder %s28, 37
      %p396 = pnand %p394, %p395
      %p397 = pneg %p396
      // Predicated region
      $region67: #{llama4_text_moe.1} parent=5 // pred_check
        _
      $region68: #{llama4_text_moe.1} parent=5 // pred_check_branch
        %399 = sbr.rel (%p396) target = $region70
      $region69: #{llama4_text_moe.1} parent=5 // pred_region
        %s400 = ssub.s32 %s28, 1
        %s401 = sand.u32 %s132, 1
        %s402 = sand.u32 %s132, 1
        %s403 = smul.addr %s402, 128
        %s404 = scalar_lea.vmem [#allocation6], %s403
        // Predicated region
        $region71: #{llama4_text_moe.1} parent=69 // pred_check
          %p405 = pneg %p145
        $region72: #{llama4_text_moe.1} parent=69 // pred_check_branch
          %407 = sbr.rel (%p405) target = $region74
        $region73: #{llama4_text_moe.1} parent=69 // pred_region
          _
        $region74: #{llama4_text_moe.1} parent=69 // pred_fallthru
          _
        %p408 = scmp.lt.s32.totalorder %s38, 1
        %s409 = scalar_select %p408, %s38, 1
        %s410 = smul.addr %s409, 8
        %s411 = scalar_lea.vmem %s2, %s410
        %p412 = pneg %p73
        %p413 = pneg %p70
        %p414 = scmp.lt.s32.totalorder %s38, 1
        %s415 = scalar_select %p414, %s38, 1
        %p416 = scmp.lt.s32.totalorder %s40, 8
        %s417 = scalar_select %p416, %s40, 8
        %s418 = smul.addr %s415, 9
        %s419 = sadd.s32 %s417, %s418
        %s420 = smul.addr %s419, 8
        %s421 = scalar_lea.vmem %s3, %s420
        %p422 = pneg %p101
        %p423 = pneg %p98
        %s424 = sand.u32 %s132, 1
        %s425 = sand.u32 %s132, 1
        %s426 = smul.addr %s425, 128
        %s427 = scalar_lea.vmem [#allocation6], %s426
        %p428 = pneg %p145
        %p429 = pneg %p142
        %s430 = sshra.s32 %s40, 7
        %s431 = sand.u32 %s40, 127
        %s432 = sadd.s32 %s430, %s38
        %s433 = smul.u32 %s432, 128
        %s434 = sshra.s32 %s40, 7
        %s435 = sand.u32 %s40, 127
        %s436 = sadd.s32 %s433, %s435
        %s437 = sld [smem:[#allocation5 + %s436]]
        %s438 = smul.u32 16, %s39
        %p439 = scmp.lt.s32.totalorder %s437, 8
        %s440 = scalar_select %p439, %s437, 8
        %p441 = scmp.lt.s32.totalorder %s438, 31
        %s442 = scalar_select %p441, %s438, 31
        %s443 = smul.addr %s440, 32
        %s444 = sadd.s32 %s442, %s443
        %s445 = smul.addr %s444, 4
        %s446 = scalar_lea.vmem %s5, %s445
        %p447 = pneg %p189
        %p448 = pneg %p186
        %p449 = pneg %p215
        %p450 = pneg %p212
        %s451 = sand.u32 %s202, 1
        %s452 = scalar_lea.sflag [#allocation8], %s451
        %s453 = sand.u32 %s202, 1
        %s454 = smul.addr %s453, 8
        %s455 = scalar_lea.vmem [#allocation7], %s454
        %p456 = scmp.lt.s32.totalorder %s38, 1
        %s457 = scalar_select %p456, %s38, 1
        %s458 = smul.addr %s457, 8
        %s459 = scalar_lea.vmem %s2, %s458
        %p460 = scmp.lt.s32.totalorder %s38, 1
        %s461 = scalar_select %p460, %s38, 1
        %p462 = scmp.lt.s32.totalorder %s40, 8
        %s463 = scalar_select %p462, %s40, 8
        %s464 = smul.addr %s461, 9
        %s465 = sadd.s32 %s463, %s464
        %s466 = smul.addr %s465, 8
        %s467 = scalar_lea.vmem %s3, %s466
        %s468 = sshra.s32 %s40, 7
        %s469 = sand.u32 %s40, 127
        %s470 = sadd.s32 %s468, %s38
        %s471 = smul.u32 %s470, 128
        %s472 = sshra.s32 %s40, 7
        %s473 = sand.u32 %s40, 127
        %s474 = sadd.s32 %s471, %s473
        %s475 = sld [smem:[#allocation5 + %s474]]
        %s476 = smul.u32 2, %s39
        %s477 = sshra.s32 %s40, 7
        %s478 = sand.u32 %s40, 127
        %s479 = sadd.s32 %s477, %s38
        %s480 = smul.u32 %s479, 128
        %s481 = sshra.s32 %s40, 7
        %s482 = sand.u32 %s40, 127
        %s483 = sadd.s32 %s480, %s482
        %s484 = sld [smem:[#allocation5 + %s483]]
        %s485 = smul.u32 16, %s39
        %p486 = scmp.lt.s32.totalorder %s484, 8
        %s487 = scalar_select %p486, %s484, 8
        %p488 = scmp.lt.s32.totalorder %s485, 31
        %s489 = scalar_select %p488, %s485, 31
        %s490 = smul.addr %s487, 32
        %s491 = sadd.s32 %s489, %s490
        %s492 = smul.addr %s491, 4
        %s493 = scalar_lea.vmem %s5, %s492
        %s494 = sshra.s32 %s40, 7
        %s495 = sand.u32 %s40, 127
        %s496 = sadd.s32 %s494, %s38
        %s497 = smul.u32 %s496, 128
        %s498 = sshra.s32 %s40, 7
        %s499 = sand.u32 %s40, 127
        %s500 = sadd.s32 %s497, %s499
        %s501 = sld [smem:[#allocation5 + %s500]]
        %s502 = smul.u32 16, %s39
        %p503 = scmp.eq.s32.totalorder %s39, 0
        %p504 = scmp.eq.s32.totalorder %s40, 0
        %p505 = pnand %p503, %p504
        %p506 = pneg %p505
        // Predicated region
        $region75: #{llama4_text_moe.1} parent=69 // pred_check
          _
        $region76: #{llama4_text_moe.1} parent=69 // pred_check_branch
          %508 = sbr.rel (%p505) target = $region78
        $region77: #{llama4_text_moe.1} parent=69 // pred_region
          %509 = vst [vmem:[#allocation2] sm:$0xff] 0.0
        $region78: #{llama4_text_moe.1} parent=69 // pred_fallthru
          _
        %s510 = sshra.s32 %s40, 7
        %s511 = sand.u32 %s40, 127
        %s512 = sadd.s32 %s510, %s38
        %s513 = smul.u32 %s512, 128
        %s514 = sshra.s32 %s40, 7
        %s515 = sand.u32 %s40, 127
        %s516 = sadd.s32 %s513, %s515
        %s517 = sld [smem:[#allocation4 + %s516]]
        %p518 = scmp.gt.s32.totalorder %s517, 0
        // Predicated region
        $region79: #{llama4_text_moe.1} parent=69 // pred_check
          %p519 = pneg %p518
        $region80: #{llama4_text_moe.1} parent=69 // pred_check_branch
          %521 = sbr.rel (%p519) target = $region82
        $region81: #{llama4_text_moe.1} parent=69 // pred_region
          %v522 = vld [vmem:[%s467] sm:$0xff]
          %v523 = vld [vmem:[%s459] sm:$0xff]
          %525 = vset.pattern.permute.xlu0 0
          %526 = vperm.xlu0 %525, %v522
          %v527 = vpop.permute.xlu0 %526
          %v529 = vmul.f32 %v523, %v527
          %v530 = vpack.c.bf16 %v529, %v529
          %v531 = vld [vmem:[%s404] sm:$0xff]
          %v532 = vld [vmem:[%s404 + $0x8] sm:$0xff]
          %v533 = vld [vmem:[%s404 + $0x10] sm:$0xff]
          %v534 = vld [vmem:[%s404 + $0x18] sm:$0xff]
          %v535 = vld [vmem:[%s404 + $0x20] sm:$0xff]
          %v536 = vld [vmem:[%s404 + $0x28] sm:$0xff]
          %v537 = vld [vmem:[%s404 + $0x30] sm:$0xff]
          %v538 = vld [vmem:[%s404 + $0x38] sm:$0xff]
          %v539 = vld [vmem:[%s404 + $0x40] sm:$0xff]
          %v540 = vld [vmem:[%s404 + $0x48] sm:$0xff]
          %v541 = vld [vmem:[%s404 + $0x50] sm:$0xff]
          %v542 = vld [vmem:[%s404 + $0x58] sm:$0xff]
          %v543 = vld [vmem:[%s404 + $0x60] sm:$0xff]
          %v544 = vld [vmem:[%s404 + $0x68] sm:$0xff]
          %v545 = vld [vmem:[%s404 + $0x70] sm:$0xff]
          %v546 = vld [vmem:[%s404 + $0x78] sm:$0xff]
          %v563 = vunpack.c.l.b16 %v531
          %v564 = vunpack.c.h.b16 %v531
          %v565 = vunpack.c.l.b16 %v532
          %v566 = vunpack.c.h.b16 %v532
          %v567 = vunpack.c.l.b16 %v533
          %v568 = vunpack.c.h.b16 %v533
          %v569 = vunpack.c.l.b16 %v534
          %v570 = vunpack.c.h.b16 %v534
          %v571 = vunpack.c.l.b16 %v535
          %v572 = vunpack.c.h.b16 %v535
          %v573 = vunpack.c.l.b16 %v536
          %v574 = vunpack.c.h.b16 %v536
          %v575 = vunpack.c.l.b16 %v537
          %v576 = vunpack.c.h.b16 %v537
          %v577 = vunpack.c.l.b16 %v538
          %v578 = vunpack.c.h.b16 %v538
          %v579 = vunpack.c.l.b16 %v539
          %v580 = vunpack.c.h.b16 %v539
          %v581 = vunpack.c.l.b16 %v540
          %v582 = vunpack.c.h.b16 %v540
          %v583 = vunpack.c.l.b16 %v541
          %v584 = vunpack.c.h.b16 %v541
          %v585 = vunpack.c.l.b16 %v542
          %v586 = vunpack.c.h.b16 %v542
          %v587 = vunpack.c.l.b16 %v543
          %v588 = vunpack.c.h.b16 %v543
          %v589 = vunpack.c.l.b16 %v544
          %v590 = vunpack.c.h.b16 %v544
          %v591 = vunpack.c.l.b16 %v545
          %v592 = vunpack.c.h.b16 %v545
          %v593 = vunpack.c.l.b16 %v546
          %v594 = vunpack.c.h.b16 %v546
          %v595 = vpack.c.b16 %v565, %v563
          %v596 = vpack.c.b16 %v566, %v564
          %v597 = vpack.c.b16 %v569, %v567
          %v598 = vpack.c.b16 %v570, %v568
          %v599 = vpack.c.b16 %v573, %v571
          %v600 = vpack.c.b16 %v574, %v572
          %v601 = vpack.c.b16 %v577, %v575
          %v602 = vpack.c.b16 %v578, %v576
          %v603 = vpack.c.b16 %v581, %v579
          %v604 = vpack.c.b16 %v582, %v580
          %v605 = vpack.c.b16 %v585, %v583
          %v606 = vpack.c.b16 %v586, %v584
          %v607 = vpack.c.b16 %v589, %v587
          %v608 = vpack.c.b16 %v590, %v588
          %v609 = vpack.c.b16 %v593, %v591
          %v610 = vpack.c.b16 %v594, %v592
          %627 = vmatpush.bf16.msra.mxu0 %v609
          %628 = vmatpush.bf16.msra.mxu0 %v607
          %629 = vmatpush.bf16.msra.mxu0 %v605
          %630 = vmatpush.bf16.msra.mxu0 %v603
          %631 = vmatpush.bf16.msra.mxu0 %v601
          %632 = vmatpush.bf16.msra.mxu0 %v599
          %633 = vmatpush.bf16.msra.mxu0 %v597
          %634 = vmatpush.bf16.msra.mxu0 %v595
          %635 = vmatmul.bf16.gmra.mxu0 %v530
          %v636 = vpop.f32.mrf.mxu0
          %v637 = vadd.f32 0.0, %v636
          %v638 = vpop.f32.mrf.mxu0
          %639 = vdwg.mxu0
          %640 = vmatpush.bf16.msra.mxu0 %v610
          %641 = vmatpush.bf16.msra.mxu0 %v608
          %642 = vmatpush.bf16.msra.mxu0 %v606
          %643 = vmatpush.bf16.msra.mxu0 %v604
          %644 = vmatpush.bf16.msra.mxu0 %v602
          %645 = vmatpush.bf16.msra.mxu0 %v600
          %646 = vmatpush.bf16.msra.mxu0 %v598
          %647 = vmatpush.bf16.msra.mxu0 %v596
          %648 = vmatmul.bf16.gmra.mxu0 %v530
          %v649 = vpop.f32.mrf.mxu0
          %v650 = vadd.f32 0.0, %v649
          %v651 = vpop.f32.mrf.mxu0
          %652 = vdwg.mxu0
          %v653 = vxor.u32 %v637, 2147483648
          %v654 = vmul.f32 %v653, 1.442695
          %v655 = vpow.pop %v654
          %v656 = vadd.f32 %v655, 1.0
          %v657 = vrcp.pop %v656
          %v658 = vmul.f32 %v656, %v657
          %v659 = vsub.f32 1.0, %v658
          %v660 = vmul.f32 %v657, %v659
          %v661 = vadd.f32 %v657, %v660
          %vm662 = vweird.f32 %v656
          %vm663 = vweird.f32 %v657
          %vm664 = vmor %vm662, %vm663
          %v665 = vsel %vm664, %v657, %v661
          %v666 = vand.u32 2147483647, %v656
          %vm667 = vcmp.eq.f32.partialorder %v666, 8.507059e+37
          %v668 = vand.u32 %v656, 2147483648
          %v669 = vor.u32 1.1754944e-38, %v668
          %v670 = vsel %vm667, %v669, %v665
          %v671 = vmul.f32 1.0, %v670
          %v672 = vmul.f32 %v637, %v671
          %v673 = vmul.f32 %v650, %v672
          %v674 = vpack.c.bf16 %v673, %v673
          %v675 = vld [vmem:[#allocation2] sm:$0xff]
          %v676 = vld [vmem:[%s493] sm:$0xf]
          %v677 = vld [vmem:[%s493 + $0x4] sm:$0xf]
          %v678 = vld [vmem:[%s493 + $0x8] sm:$0xf]
          %v679 = vld [vmem:[%s493 + $0xc] sm:$0xf]
          %v680 = vld [vmem:[%s493 + $0x10] sm:$0xf]
          %v681 = vld [vmem:[%s493 + $0x14] sm:$0xf]
          %v682 = vld [vmem:[%s493 + $0x18] sm:$0xf]
          %v683 = vld [vmem:[%s493 + $0x1c] sm:$0xf]
          %v684 = vld [vmem:[%s493 + $0x20] sm:$0xf]
          %v685 = vld [vmem:[%s493 + $0x24] sm:$0xf]
          %v686 = vld [vmem:[%s493 + $0x28] sm:$0xf]
          %v687 = vld [vmem:[%s493 + $0x2c] sm:$0xf]
          %v688 = vld [vmem:[%s493 + $0x30] sm:$0xf]
          %v689 = vld [vmem:[%s493 + $0x34] sm:$0xf]
          %v690 = vld [vmem:[%s493 + $0x38] sm:$0xf]
          %v691 = vld [vmem:[%s493 + $0x3c] sm:$0xf]
          %v708 = vunpack.c.l.b16 %v676
          %v709 = vunpack.c.l.b16 %v677
          %v710 = vunpack.c.l.b16 %v678
          %v711 = vunpack.c.l.b16 %v679
          %v712 = vunpack.c.l.b16 %v680
          %v713 = vunpack.c.l.b16 %v681
          %v714 = vunpack.c.l.b16 %v682
          %v715 = vunpack.c.l.b16 %v683
          %v716 = vunpack.c.l.b16 %v684
          %v717 = vunpack.c.l.b16 %v685
          %v718 = vunpack.c.l.b16 %v686
          %v719 = vunpack.c.l.b16 %v687
          %v720 = vunpack.c.l.b16 %v688
          %v721 = vunpack.c.l.b16 %v689
          %v722 = vunpack.c.l.b16 %v690
          %v723 = vunpack.c.l.b16 %v691
          %v724 = vpack.c.b16 %v709, %v708
          %v725 = vpack.c.b16 %v711, %v710
          %v726 = vpack.c.b16 %v713, %v712
          %v727 = vpack.c.b16 %v715, %v714
          %v728 = vpack.c.b16 %v717, %v716
          %v729 = vpack.c.b16 %v719, %v718
          %v730 = vpack.c.b16 %v721, %v720
          %v731 = vpack.c.b16 %v723, %v722
          %740 = vmatpush.bf16.msra.mxu0 %v731
          %741 = vmatpush.bf16.msra.mxu0 %v730
          %742 = vmatpush.bf16.msra.mxu0 %v729
          %743 = vmatpush.bf16.msra.mxu0 %v728
          %744 = vmatpush.bf16.msra.mxu0 %v727
          %745 = vmatpush.bf16.msra.mxu0 %v726
          %746 = vmatpush.bf16.msra.mxu0 %v725
          %747 = vmatpush.bf16.msra.mxu0 %v724
          %748 = vmatmul.bf16.gmra.mxu0 %v674
          %v749 = vpop.f32.mrf.mxu0
          %v750 = vadd.f32 0.0, %v749
          %v751 = vpop.f32.mrf.mxu0
          %752 = vdwg.mxu0
          %v753 = vadd.f32 %v675, %v750
          %754 = vst [vmem:[#allocation2] sm:$0xff] %v753
        $region82: #{llama4_text_moe.1} parent=69 // pred_fallthru
          _
        %p755 = scmp.eq.s32.totalorder %s39, 1
        %p756 = scmp.eq.s32.totalorder %s40, 8
        %p757 = pnand %p755, %p756
        %p758 = pneg %p757
        // Predicated region
        $region83: #{llama4_text_moe.1} parent=69 // pred_check
          _
        $region84: #{llama4_text_moe.1} parent=69 // pred_check_branch
          %760 = sbr.rel (%p757) target = $region86
        $region85: #{llama4_text_moe.1} parent=69 // pred_region
          %v761 = vld [vmem:[#allocation2] sm:$0xff]
          %762 = vst [vmem:[%s455] sm:$0xff] %v761
        $region86: #{llama4_text_moe.1} parent=69 // pred_fallthru
          _
        %s763 = sand.u32 %s202, 1
        %s764 = scalar_lea.sflag [#allocation8], %s763
        %s765 = sand.u32 %s202, 1
        %s766 = smul.addr %s765, 8
        %s767 = scalar_lea.vmem [#allocation7], %s766
        // Predicated region
        $region87: #{llama4_text_moe.1} parent=69 // pred_check
          %p768 = pneg %p212
        $region88: #{llama4_text_moe.1} parent=69 // pred_check_branch
          %770 = sbr.rel (%p768) target = $region90
        $region89: #{llama4_text_moe.1} parent=69 // pred_region
          %772 = vsyncadd %s764, 0
          %s773 = smul.addr %s38, 8
          %s774 = scalar_lea.hbm %s6, %s773
          %s776 = sshll.u32 %s767, 4
          %s777 = int_to_ptr.vmem [resolvable:$true] %s776
          %s778 = sshll.u32 %s774, 4
          %s779 = int_to_ptr.hbm [resolvable:$true] %s778
          %781 = dma.vmem_to_hbm [thread:$0]  %s777, 128, %s779, %s764
        $region90: #{llama4_text_moe.1} parent=69 // pred_fallthru
          _
      $region70: #{llama4_text_moe.1} parent=5 // pred_fallthru
        _
      %p782 = scmp.le.s32.totalorder 2, %s28
      // Predicated region
      $region91: #{llama4_text_moe.1} parent=5 // pred_check
        %p783 = pneg %p782
      $region92: #{llama4_text_moe.1} parent=5 // pred_check_branch
        %785 = sbr.rel (%p783) target = $region94
      $region93: #{llama4_text_moe.1} parent=5 // pred_region
        %s786 = ssub.s32 %s28, 2
        // Predicated region
        $region95: #{llama4_text_moe.1} parent=93 // pred_check
          %p787 = pneg %p218
        $region96: #{llama4_text_moe.1} parent=93 // pred_check_branch
          %789 = sbr.rel (%p787) target = $region98
        $region97: #{llama4_text_moe.1} parent=93 // pred_region
          %s790 = sand.u32 %s203, 1
          %s791 = scalar_lea.sflag [#allocation8], %s790
          %s792 = sand.u32 %s203, 1
          %s793 = smul.addr %s792, 8
          %s794 = scalar_lea.vmem [#allocation7], %s793
          %796 = dma.done %s791, 128
        $region98: #{llama4_text_moe.1} parent=93 // pred_fallthru
          _
      $region94: #{llama4_text_moe.1} parent=5 // pred_fallthru
        _
    $region6: #{llama4_text_moe.1} parent=1 // loop_footer
      %s32 = sadd.s32 1, %s28
    $region7: #{llama4_text_moe.1} parent=1 // loop_footer_branch
      %27 = sbr.rel target = $region3
    $region8: #{llama4_text_moe.1} parent=1 // loop_exit
      _
    %797 = vsyncpa [#allocation8], 1
    %s798 = scalar_lea.sflag [#allocation8], 1
    %799 = vsyncpa %s798, 1

</llo_original>
